<compile_context>
chip_gen: v5e
topology: v5e:2x2
jax: 0.10.0
libtpu: 0.0.40
codegen_flags: <defaults>
</compile_context>

<pallas_src>
import functools

import jax
import jax.numpy as jnp
from jax.experimental import pallas as pl
from jax.experimental.pallas import tpu as pltpu

LEAKY_SLOPE = 0.01
BN_EPS = 1e-5
LANE = 128


def _round_up(n, k):
    return ((n + k - 1) // k) * k


# ----------------------------- Pallas kernels ------------------------------

def _gemm_bias_act_kernel(w_ref, c_ref, b_ref, o_ref, *, act):
    """(N, K) @ (K, tm) + bias, fused activation.  Output is lane-dense in M."""
    acc = jnp.dot(w_ref[...], c_ref[...], preferred_element_type=jnp.float32)
    acc = acc + b_ref[...]
    if act == "leaky":
        acc = jnp.where(acc >= 0, acc, LEAKY_SLOPE * acc)
    elif act == "tanh":
        acc = jnp.tanh(acc)
    o_ref[...] = acc.astype(o_ref.dtype)


def gemm_bias_act(w_mat, cols, bias, act=None):
    """w_mat (N,K), cols (K,M) -> (N,M) f32, M tiled on the lane axis."""
    N, K = w_mat.shape
    M = cols.shape[1]
    mp = _round_up(max(M, LANE), LANE)
    if mp != M:
        cols = jnp.pad(cols, ((0, 0), (0, mp - M)))
    tm = 256 if mp % 256 == 0 else LANE
    out = pl.pallas_call(
        functools.partial(_gemm_bias_act_kernel, act=act),
        out_shape=jax.ShapeDtypeStruct((N, mp), jnp.float32),
        grid=(mp // tm,),
        in_specs=[
            pl.BlockSpec((N, K), lambda i: (0, 0)),
            pl.BlockSpec((K, tm), lambda i: (0, i)),
            pl.BlockSpec((N, 1), lambda i: (0, 0)),
        ],
        out_specs=pl.BlockSpec((N, tm), lambda i: (0, i)),
        compiler_params=pltpu.CompilerParams(
            dimension_semantics=("parallel",)),
    )(w_mat.astype(jnp.bfloat16), cols.astype(jnp.bfloat16),
      bias.reshape(N, 1).astype(jnp.float32))
    return out[:, :M]


def _conv_bn_res_act_kernel(*refs, act, m_valid, has_res, proj):
    """Fused: conv GEMM -> BN (batch stats over M) -> (+residual) -> act."""
    if proj:
        c_ref, w_ref, g_ref, be_ref, r_ref, rw_ref, rb_ref, o_ref = refs
    elif has_res:
        c_ref, w_ref, g_ref, be_ref, r_ref, o_ref = refs
    else:
        c_ref, w_ref, g_ref, be_ref, o_ref = refs

    # conv as transposed GEMM: (C_out, K) @ (K, Mp) -> lane-dense output.
    acc = jnp.dot(w_ref[...], c_ref[...], preferred_element_type=jnp.float32)

    # Training-mode BatchNorm2d statistics over the valid M columns.
    # Padded columns of `cols` are exact zeros -> they contribute 0 to both sums.
    inv_m = 1.0 / m_valid
    mean = jnp.sum(acc, axis=1, keepdims=True) * inv_m
    var = jnp.sum(acc * acc, axis=1, keepdims=True) * inv_m - mean * mean
    var = jnp.maximum(var, 0.0)
    scale = g_ref[...] * jax.lax.rsqrt(var + BN_EPS)
    shift = be_ref[...] - mean * scale
    y = acc * scale + shift

    if has_res:
        if proj:  # fused 1x1 projection shortcut (with its bias)
            y = y + (jnp.dot(rw_ref[...], r_ref[...],
                             preferred_element_type=jnp.float32) + rb_ref[...])
        else:     # identity shortcut
            y = y + r_ref[...]

    if act == "leaky":
        y = jnp.where(y >= 0, y, LEAKY_SLOPE * y)
    o_ref[...] = y.astype(o_ref.dtype)


def fused_conv_bn_act(cols, w_mat, gamma, beta, m_valid, residual=None,
                      res_w=None, res_b=None, act="leaky"):
    """act(BN(w_mat @ cols) + residual) in a single pallas_call.

    cols (K, M), w_mat (C_out, K); residual (C_res, M) optionally projected by
    res_w (C_out, C_res) / res_b (C_out,).  Returns (C_out, M) f32.
    """
    C_out, K = w_mat.shape
    M = cols.shape[1]
    mp = _round_up(max(M, LANE), LANE)
    if mp != M:
        cols = jnp.pad(cols, ((0, 0), (0, mp - M)))

    args = [cols.astype(jnp.bfloat16), w_mat.astype(jnp.bfloat16),
            gamma.reshape(C_out, 1), beta.reshape(C_out, 1)]
    in_specs = [
        pl.BlockSpec((K, mp), lambda i: (0, 0)),
        pl.BlockSpec((C_out, K), lambda i: (0, 0)),
        pl.BlockSpec((C_out, 1), lambda i: (0, 0)),
        pl.BlockSpec((C_out, 1), lambda i: (0, 0)),
    ]

    has_res = residual is not None
    proj = res_w is not None
    if has_res:
        r = residual
        if mp != M:
            r = jnp.pad(r, ((0, 0), (0, mp - M)))
        args.append(r)
        in_specs.append(pl.BlockSpec((r.shape[0], mp), lambda i: (0, 0)))
        if proj:
            args.append(res_w)
            args.append(res_b.reshape(C_out, 1))
            in_specs.append(pl.BlockSpec(res_w.shape, lambda i: (0, 0)))
            in_specs.append(pl.BlockSpec((C_out, 1), lambda i: (0, 0)))

    out = pl.pallas_call(
        functools.partial(_conv_bn_res_act_kernel, act=act,
                          m_valid=float(m_valid), has_res=has_res, proj=proj),
        out_shape=jax.ShapeDtypeStruct((C_out, mp), jnp.float32),
        grid=(1,),
        in_specs=in_specs,
        out_specs=pl.BlockSpec((C_out, mp), lambda i: (0, 0)),
        compiler_params=pltpu.CompilerParams(
            dimension_semantics=("arbitrary",)),
    )(*args)
    return out[:, :M]


# ------------------------------ conv glue -----------------------------------

def _im2col_T(x_sp, kh, kw, stride):
    """x_sp: (C, B, Hp, Wp) (already spatially padded).

    Returns transposed im2col (kh*kw*C, B*Ho*Wo) and (B, Ho, Wo).
    Row ordering: K index = (i*kw + j)*C + c  (matches _w_mat below).
    """
    C, B, Hp, Wp = x_sp.shape
    Ho = (Hp - kh) // stride + 1
    Wo = (Wp - kw) // stride + 1
    taps = []
    for i in range(kh):
        for j in range(kw):
            taps.append(
                x_sp[:, :, i:i + stride * Ho:stride, j:j + stride * Wo:stride]
                .reshape(C, B * Ho * Wo))
    return jnp.concatenate(taps, axis=0), (B, Ho, Wo)


def _w_mat(w):
    """torch Conv2d weight (C_out, C_in, kh, kw) -> (C_out, kh*kw*C_in)."""
    C_out, C_in, kh, kw = w.shape
    return jnp.transpose(w, (0, 2, 3, 1)).reshape(C_out, kh * kw * C_in)


def conv_block_fused(x, bhw, w, gamma, beta, padding, residual=None,
                     res_w=None, res_b=None, act="leaky"):
    """3x3 (or kxk, stride 1) conv fused with BN (+residual) + activation."""
    B, H, W = bhw
    C_in = x.shape[0]
    kh, kw = w.shape[2], w.shape[3]
    xs = x.reshape(C_in, B, H, W)
    if padding:
        xs = jnp.pad(xs, ((0, 0), (0, 0),
                          (padding, padding), (padding, padding)))
    cols, (_, Ho, Wo) = _im2col_T(xs, kh, kw, 1)
    out = fused_conv_bn_act(cols, _w_mat(w), gamma, beta, B * Ho * Wo,
                            residual=residual, res_w=res_w, res_b=res_b,
                            act=act)
    return out


def downsample(x, bhw, w, b):
    """1x1 stride-2 conv + LeakyReLU (the stride is folded into the cols)."""
    B, H, W = bhw
    C_in = x.shape[0]
    C_out = w.shape[0]
    xs = x.reshape(C_in, B, H, W)[:, :, ::2, ::2]
    Ho, Wo = xs.shape[2], xs.shape[3]
    cols = xs.reshape(C_in, B * Ho * Wo)
    out = gemm_bias_act(w.reshape(C_out, C_in), cols, b, act="leaky")
    return out, (B, Ho, Wo)


def upsample_convT2x2(x, bhw, w, b):
    """ConvTranspose2d(k=2, s=2) + LeakyReLU as a sub-pixel (pixel-shuffle) GEMM."""
    B, H, W = bhw
    C_in, C_out = w.shape[0], w.shape[1]
    # rows ordered (di, dj, co):  W'[(di*2+dj)*C_out + co, ci] = w[ci, co, di, dj]
    w_mat = jnp.transpose(w, (2, 3, 1, 0)).reshape(4 * C_out, C_in)
    bias4 = jnp.tile(b, 4)
    y = gemm_bias_act(w_mat, x, bias4, act="leaky")        # (4*C_out, B*H*W)
    y = y.reshape(2, 2, C_out, B, H, W)                    # (di, dj, co, b, i, j)
    y = jnp.transpose(y, (2, 3, 4, 0, 5, 1)).reshape(C_out, B, 2 * H, 2 * W)
    return y.reshape(C_out, B * 2 * H * 2 * W), (B, 2 * H, 2 * W)


def convT3x3_s2_bn_act(x, bhw, w, gamma, beta):
    """ConvTranspose2d(k=3, s=2, p=1, op=1) fused with BN + LeakyReLU.

    Zero-insertion + flipped-kernel conv (exact PyTorch semantics); bias is
    skipped because the following training-mode BN cancels it.
    """
    # TODO(synk): sub-pixel 4-phase decomposition would avoid the inserted zeros
    # (single small final layer, negligible at these sizes).
    B, H, W = bhw
    C_in, C_out = w.shape[0], w.shape[1]
    xs = x.reshape(C_in, B, H, W)
    Hd, Wd = (H - 1) * 2 + 1, (W - 1) * 2 + 1
    xd = jnp.zeros((C_in, B, Hd, Wd), x.dtype).at[:, :, ::2, ::2].set(xs)
    # pad = k-1-p = 1 each side; output_padding = 1 on bottom/right
    xd = jnp.pad(xd, ((0, 0), (0, 0), (1, 2), (1, 2)))
    w_eq = jnp.transpose(jnp.flip(w, axis=(2, 3)), (1, 0, 2, 3))  # (C_out,C_in,3,3)
    cols, (_, Ho, Wo) = _im2col_T(xd, 3, 3, 1)
    out = fused_conv_bn_act(cols, _w_mat(w_eq), gamma, beta, B * Ho * Wo,
                            act="leaky")
    return out, (B, Ho, Wo)


def conv3x3_bias_tanh(x, bhw, w, b):
    B, H, W = bhw
    C_in = x.shape[0]
    xs = x.reshape(C_in, B, H, W)
    xs = jnp.pad(xs, ((0, 0), (0, 0), (1, 1), (1, 1)))
    cols, (_, Ho, Wo) = _im2col_T(xs, 3, 3, 1)
    out = gemm_bias_act(_w_mat(w), cols, b, act="tanh")
    return out, (B, Ho, Wo)


# ------------------------------ UNet blocks ---------------------------------

def residual_block(p, x, bhw):
    # conv1 -> BN -> LeakyReLU  (one fused kernel; conv bias elided before BN)
    h = conv_block_fused(x, bhw, p["w1"], p["g1"], p["be1"], padding=1,
                         act="leaky")
    # conv2 -> BN, + shortcut (identity or fused 1x1 projection), LeakyReLU
    if p["ws"] is not None:
        rw = p["ws"].reshape(p["ws"].shape[0], p["ws"].shape[1])
        out = conv_block_fused(h, bhw, p["w2"], p["g2"], p["be2"], padding=1,
                               residual=x, res_w=rw, res_b=p["bs"], act="leaky")
    else:
        out = conv_block_fused(h, bhw, p["w2"], p["g2"], p["be2"], padding=1,
                               residual=x, act="leaky")
    return out


def unet_forward(params, x_nchw):
    B, C_in, H, W = x_nchw.shape
    # NCHW -> internal lane-dense (C, M) layout with M = B*H*W.
    h = jnp.transpose(x_nchw, (1, 0, 2, 3)).reshape(C_in, B * H * W)
    bhw = (B, H, W)

    # ---- encoder: [RB, RB, 1x1 stride-2 conv + LeakyReLU] per level ----
    skips = []
    for enc in params["encoder"]:
        h = residual_block(enc["rb1"], h, bhw)
        h = residual_block(enc["rb2"], h, bhw)
        h, bhw = downsample(h, bhw, enc["dw"], enc["db"])
        skips.append(h)
    skips_rev = skips[::-1]

    # ---- decoder: cat(skip) -> [RB, RB, ConvT k2 s2 + LeakyReLU] ----
    for i, dec in enumerate(params["decoder"]):
        h = jnp.concatenate([h, skips_rev[i]], axis=0)   # channel concat
        h = residual_block(dec["rb1"], h, bhw)
        h = residual_block(dec["rb2"], h, bhw)
        h, bhw = upsample_convT2x2(h, bhw, dec["uw"], dec["ub"])

    # ---- final head ----
    a = jnp.concatenate([h, skips_rev[-1]], axis=0)
    a, bhw = convT3x3_s2_bn_act(a, bhw, params["fl"]["tw"],
                                params["fl"]["g"], params["fl"]["be"])
    a, bhw = conv3x3_bias_tanh(a, bhw, params["fl"]["cw"], params["fl"]["cb"])

    Bf, Hf, Wf = bhw
    C_out = a.shape[0]
    return jnp.transpose(a.reshape(C_out, Bf, Hf, Wf), (1, 0, 2, 3))  # -> NCHW


# --------------------------- deterministic init ------------------------------

def _conv_init(key, c_out, c_in, kh, kw):
    kw_, kb = jax.random.split(key)
    fan_in = c_in * kh * kw
    w = jax.random.normal(kw_, (c_out, c_in, kh, kw), jnp.float32) / jnp.sqrt(fan_in)
    b = jax.random.normal(kb, (c_out,), jnp.float32) * 0.01
    return w, b


def _convT_init(key, c_in, c_out, kh, kw):
    kw_, kb = jax.random.split(key)
    fan_in = c_in * kh * kw
    w = jax.random.normal(kw_, (c_in, c_out, kh, kw), jnp.float32) / jnp.sqrt(fan_in)
    b = jax.random.normal(kb, (c_out,), jnp.float32) * 0.01
    return w, b


def _rb_init(key, c_in, c_out):
    k1, k2, k3 = jax.random.split(key, 3)
    w1, b1 = _conv_init(k1, c_out, c_in, 3, 3)
    w2, b2 = _conv_init(k2, c_out, c_out, 3, 3)
    p = dict(w1=w1, b1=b1, g1=jnp.ones(c_out), be1=jnp.zeros(c_out),
             w2=w2, b2=b2, g2=jnp.ones(c_out), be2=jnp.zeros(c_out),
             ws=None, bs=None)
    if c_in != c_out:
        ws, bs = _conv_init(k3, c_out, c_in, 1, 1)
        p["ws"], p["bs"] = ws, bs
    return p


def init_unet_params(key, in_ch, out_ch, hidden_dims):
    params = {"encoder": [], "decoder": []}
    dims = list(hidden_dims)
    prev = in_ch
    for h in dims:
        key, k1, k2, k3 = jax.random.split(key, 4)
        dw, db = _conv_init(k3, h, h, 1, 1)
        params["encoder"].append(dict(rb1=_rb_init(k1, prev, h),
                                      rb2=_rb_init(k2, h, h),
                                      dw=dw, db=db))
        prev = h
    rdims = dims[::-1]
    for i in range(len(rdims) - 1):
        key, k1, k2, k3 = jax.random.split(key, 4)
        uw, ub = _convT_init(k3, rdims[i + 1], rdims[i + 1], 2, 2)
        params["decoder"].append(dict(rb1=_rb_init(k1, rdims[i] * 2, rdims[i + 1]),
                                      rb2=_rb_init(k2, rdims[i + 1], rdims[i + 1]),
                                      uw=uw, ub=ub))
    key, k1, k2 = jax.random.split(key, 3)
    tw, tb = _convT_init(k1, rdims[-1] * 2, rdims[-1], 3, 3)
    cw, cb = _conv_init(k2, out_ch, rdims[-1], 3, 3)
    # `tb` kept for interface parity; it is cancelled by the following BN.
    params["fl"] = dict(tw=tw, tb=tb, g=jnp.ones(rdims[-1]), be=jnp.zeros(rdims[-1]),
                        cw=cw, cb=cb)
    return params


# ---------------------------------- main -------------------------------------

if __name__ == "__main__":
    key = jax.random.PRNGKey(0)
    kparams, kx = jax.random.split(key)

    input_channels, output_channels = 4, 4
    hidden_dims = [8, 16]
    B, H, W = 2, 16, 16

    params = init_unet_params(kparams, input_channels, output_channels, hidden_dims)
    x = jax.random.normal(kx, (B, input_channels, H, W), jnp.float32)

    out = jax.jit(unet_forward)(params, x)
    jax.block_until_ready(out)

    assert out.shape == (B, output_channels, H, W), out.shape
    assert bool(jnp.all(jnp.isfinite(out)))
    print("KERNEL_OK")
</pallas_src>

<mosaic_0001>
module attributes {stable_mosaic.version = 11 : i64} {
  func.func @_conv_bn_res_act_kernel(%arg0: i32, %arg1: memref<36x512xbf16, #tpu.memory_space<vmem>>, %arg2: memref<8x36xbf16, #tpu.memory_space<vmem>>, %arg3: memref<8x1xf32, #tpu.memory_space<vmem>>, %arg4: memref<8x1xf32, #tpu.memory_space<vmem>>, %arg5: memref<8x512xf32, #tpu.memory_space<vmem>>) attributes {dimension_semantics = [#tpu.dimension_semantics<arbitrary>], iteration_bounds = array<i64: 1>, scalar_prefetch = 0 : i64, scratch_operands = 0 : i64, tpu.core_type = #tpu.core_type<tc>, window_params = [{pipeline_mode = #tpu.pipeline_mode<synchronous>, transform_indices = @transform_0, window_bounds = array<i64: 36, 512>}, {pipeline_mode = #tpu.pipeline_mode<synchronous>, transform_indices = @transform_1, window_bounds = array<i64: 8, 36>}, {pipeline_mode = #tpu.pipeline_mode<synchronous>, transform_indices = @transform_2, window_bounds = array<i64: 8, 1>}, {pipeline_mode = #tpu.pipeline_mode<synchronous>, transform_indices = @transform_3, window_bounds = array<i64: 8, 1>}, {pipeline_mode = #tpu.pipeline_mode<synchronous>, transform_indices = @transform_4, window_bounds = array<i64: 8, 512>}]} {
    %c0 = arith.constant 0 : index
    %c0_0 = arith.constant 0 : index
    %0 = vector.load %arg2[%c0, %c0_0] : memref<8x36xbf16, #tpu.memory_space<vmem>>, vector<8x36xbf16>
    %c0_1 = arith.constant 0 : index
    %c0_2 = arith.constant 0 : index
    %1 = vector.load %arg1[%c0_1, %c0_2] : memref<36x512xbf16, #tpu.memory_space<vmem>>, vector<36x512xbf16>
    %cst = arith.constant dense<0.000000e+00> : vector<8x512xf32>
    %2 = tpu.matmul %0, %1, %cst {dimension_numbers = #tpu.dot_dimension_numbers<[1], [0], [0], [1], [0, 0, 1, 1], [], []>} : vector<8x36xbf16>, vector<36x512xbf16>, vector<8x512xf32> -> vector<8x512xf32>
    %cst_3 = arith.constant dense<0.000000e+00> : vector<8xf32>
    %3 = vector.multi_reduction <add>, %2, %cst_3 [1] : vector<8x512xf32> to vector<8xf32>
    %4 = vector.shape_cast %3 : vector<8xf32> to vector<8x1xf32>
    %cst_4 = arith.constant 0.001953125 : f32
    %5 = vector.broadcast %cst_4 : f32 to vector<8x1xf32>
    %6 = arith.mulf %4, %5 : vector<8x1xf32>
    %7 = arith.mulf %2, %2 : vector<8x512xf32>
    %cst_5 = arith.constant dense<0.000000e+00> : vector<8xf32>
    %8 = vector.multi_reduction <add>, %7, %cst_5 [1] : vector<8x512xf32> to vector<8xf32>
    %9 = vector.shape_cast %8 : vector<8xf32> to vector<8x1xf32>
    %cst_6 = arith.constant 0.001953125 : f32
    %10 = vector.broadcast %cst_6 : f32 to vector<8x1xf32>
    %11 = arith.mulf %9, %10 : vector<8x1xf32>
    %12 = arith.mulf %6, %6 : vector<8x1xf32>
    %13 = arith.subf %11, %12 : vector<8x1xf32>
    %cst_7 = arith.constant 0.000000e+00 : f32
    %14 = vector.broadcast %cst_7 : f32 to vector<8x1xf32>
    %15 = arith.maximumf %13, %14 : vector<8x1xf32>
    %c0_8 = arith.constant 0 : index
    %c0_9 = arith.constant 0 : index
    %16 = vector.load %arg3[%c0_8, %c0_9] : memref<8x1xf32, #tpu.memory_space<vmem>>, vector<8x1xf32>
    %cst_10 = arith.constant 9.99999974E-6 : f32
    %17 = vector.broadcast %cst_10 : f32 to vector<8x1xf32>
    %18 = arith.addf %15, %17 : vector<8x1xf32>
    %19 = math.rsqrt %18 : vector<8x1xf32>
    %20 = arith.mulf %16, %19 : vector<8x1xf32>
    %c0_11 = arith.constant 0 : index
    %c0_12 = arith.constant 0 : index
    %21 = vector.load %arg4[%c0_11, %c0_12] : memref<8x1xf32, #tpu.memory_space<vmem>>, vector<8x1xf32>
    %22 = arith.mulf %6, %20 : vector<8x1xf32>
    %23 = arith.subf %21, %22 : vector<8x1xf32>
    %24 = vector.broadcast %20 : vector<8x1xf32> to vector<8x512xf32>
    %25 = arith.mulf %2, %24 : vector<8x512xf32>
    %26 = vector.broadcast %23 : vector<8x1xf32> to vector<8x512xf32>
    %27 = arith.addf %25, %26 : vector<8x512xf32>
    %cst_13 = arith.constant 0.000000e+00 : f32
    %28 = vector.broadcast %cst_13 : f32 to vector<8x512xf32>
    %29 = arith.cmpf oge, %27, %28 : vector<8x512xf32>
    %cst_14 = arith.constant 0.00999999977 : f32
    %30 = vector.broadcast %cst_14 : f32 to vector<8x512xf32>
    %31 = arith.mulf %30, %27 : vector<8x512xf32>
    %32 = arith.select %29, %27, %31 : vector<8x512xi1>, vector<8x512xf32>
    %c0_15 = arith.constant 0 : index
    %c0_16 = arith.constant 0 : index
    %33 = vector.load %arg5[%c0_15, %c0_16] : memref<8x512xf32, #tpu.memory_space<vmem>>, vector<8x512xf32>
    tpu.vector_store %arg5[%c0_15, %c0_16], %32 {strides = array<i32>} : memref<8x512xf32, #tpu.memory_space<vmem>>, vector<8x512xf32>,
    return
  }
  func.func @transform_0(%arg0: i32) -> (i32, i32) {
    %c0_i32 = arith.constant 0 : i32
    %c0_i32_0 = arith.constant 0 : i32
    %c0_i32_1 = arith.constant 0 : i32
    return %c0_i32, %c0_i32_0 : i32, i32
  }
  func.func @transform_1(%arg0: i32) -> (i32, i32) {
    %c0_i32 = arith.constant 0 : i32
    %c0_i32_0 = arith.constant 0 : i32
    %c0_i32_1 = arith.constant 0 : i32
    return %c0_i32, %c0_i32_0 : i32, i32
  }
  func.func @transform_2(%arg0: i32) -> (i32, i32) {
    %c0_i32 = arith.constant 0 : i32
    %c0_i32_0 = arith.constant 0 : i32
    %c0_i32_1 = arith.constant 0 : i32
    return %c0_i32, %c0_i32_0 : i32, i32
  }
  func.func @transform_3(%arg0: i32) -> (i32, i32) {
    %c0_i32 = arith.constant 0 : i32
    %c0_i32_0 = arith.constant 0 : i32
    %c0_i32_1 = arith.constant 0 : i32
    return %c0_i32, %c0_i32_0 : i32, i32
  }
  func.func @transform_4(%arg0: i32) -> (i32, i32) {
    %c0_i32 = arith.constant 0 : i32
    %c0_i32_0 = arith.constant 0 : i32
    %c0_i32_1 = arith.constant 0 : i32
    return %c0_i32, %c0_i32_0 : i32, i32
  }
}

module attributes {stable_mosaic.version = 11 : i64} {
  func.func @_conv_bn_res_act_kernel(%arg0: i32, %arg1: memref<72x512xbf16, #tpu.memory_space<vmem>>, %arg2: memref<8x72xbf16, #tpu.memory_space<vmem>>, %arg3: memref<8x1xf32, #tpu.memory_space<vmem>>, %arg4: memref<8x1xf32, #tpu.memory_space<vmem>>, %arg5: memref<4x512xf32, #tpu.memory_space<vmem>>, %arg6: memref<8x4xf32, #tpu.memory_space<vmem>>, %arg7: memref<8x1xf32, #tpu.memory_space<vmem>>, %arg8: memref<8x512xf32, #tpu.memory_space<vmem>>) attributes {dimension_semantics = [#tpu.dimension_semantics<arbitrary>], iteration_bounds = array<i64: 1>, scalar_prefetch = 0 : i64, scratch_operands = 0 : i64, tpu.core_type = #tpu.core_type<tc>, window_params = [{pipeline_mode = #tpu.pipeline_mode<synchronous>, transform_indices = @transform_0, window_bounds = array<i64: 72, 512>}, {pipeline_mode = #tpu.pipeline_mode<synchronous>, transform_indices = @transform_1, window_bounds = array<i64: 8, 72>}, {pipeline_mode = #tpu.pipeline_mode<synchronous>, transform_indices = @transform_2, window_bounds = array<i64: 8, 1>}, {pipeline_mode = #tpu.pipeline_mode<synchronous>, transform_indices = @transform_3, window_bounds = array<i64: 8, 1>}, {pipeline_mode = #tpu.pipeline_mode<synchronous>, transform_indices = @transform_4, window_bounds = array<i64: 4, 512>}, {pipeline_mode = #tpu.pipeline_mode<synchronous>, transform_indices = @transform_5, window_bounds = array<i64: 8, 4>}, {pipeline_mode = #tpu.pipeline_mode<synchronous>, transform_indices = @transform_6, window_bounds = array<i64: 8, 1>}, {pipeline_mode = #tpu.pipeline_mode<synchronous>, transform_indices = @transform_7, window_bounds = array<i64: 8, 512>}]} {
    %c0 = arith.constant 0 : index
    %c0_0 = arith.constant 0 : index
    %0 = vector.load %arg2[%c0, %c0_0] : memref<8x72xbf16, #tpu.memory_space<vmem>>, vector<8x72xbf16>
    %c0_1 = arith.constant 0 : index
    %c0_2 = arith.constant 0 : index
    %1 = vector.load %arg1[%c0_1, %c0_2] : memref<72x512xbf16, #tpu.memory_space<vmem>>, vector<72x512xbf16>
    %cst = arith.constant dense<0.000000e+00> : vector<8x512xf32>
    %2 = tpu.matmul %0, %1, %cst {dimension_numbers = #tpu.dot_dimension_numbers<[1], [0], [0], [1], [0, 0, 1, 1], [], []>} : vector<8x72xbf16>, vector<72x512xbf16>, vector<8x512xf32> -> vector<8x512xf32>
    %cst_3 = arith.constant dense<0.000000e+00> : vector<8xf32>
    %3 = vector.multi_reduction <add>, %2, %cst_3 [1] : vector<8x512xf32> to vector<8xf32>
    %4 = vector.shape_cast %3 : vector<8xf32> to vector<8x1xf32>
    %cst_4 = arith.constant 0.001953125 : f32
    %5 = vector.broadcast %cst_4 : f32 to vector<8x1xf32>
    %6 = arith.mulf %4, %5 : vector<8x1xf32>
    %7 = arith.mulf %2, %2 : vector<8x512xf32>
    %cst_5 = arith.constant dense<0.000000e+00> : vector<8xf32>
    %8 = vector.multi_reduction <add>, %7, %cst_5 [1] : vector<8x512xf32> to vector<8xf32>
    %9 = vector.shape_cast %8 : vector<8xf32> to vector<8x1xf32>
    %cst_6 = arith.constant 0.001953125 : f32
    %10 = vector.broadcast %cst_6 : f32 to vector<8x1xf32>
    %11 = arith.mulf %9, %10 : vector<8x1xf32>
    %12 = arith.mulf %6, %6 : vector<8x1xf32>
    %13 = arith.subf %11, %12 : vector<8x1xf32>
    %cst_7 = arith.constant 0.000000e+00 : f32
    %14 = vector.broadcast %cst_7 : f32 to vector<8x1xf32>
    %15 = arith.maximumf %13, %14 : vector<8x1xf32>
    %c0_8 = arith.constant 0 : index
    %c0_9 = arith.constant 0 : index
    %16 = vector.load %arg3[%c0_8, %c0_9] : memref<8x1xf32, #tpu.memory_space<vmem>>, vector<8x1xf32>
    %cst_10 = arith.constant 9.99999974E-6 : f32
    %17 = vector.broadcast %cst_10 : f32 to vector<8x1xf32>
    %18 = arith.addf %15, %17 : vector<8x1xf32>
    %19 = math.rsqrt %18 : vector<8x1xf32>
    %20 = arith.mulf %16, %19 : vector<8x1xf32>
    %c0_11 = arith.constant 0 : index
    %c0_12 = arith.constant 0 : index
    %21 = vector.load %arg4[%c0_11, %c0_12] : memref<8x1xf32, #tpu.memory_space<vmem>>, vector<8x1xf32>
    %22 = arith.mulf %6, %20 : vector<8x1xf32>
    %23 = arith.subf %21, %22 : vector<8x1xf32>
    %24 = vector.broadcast %20 : vector<8x1xf32> to vector<8x512xf32>
    %25 = arith.mulf %2, %24 : vector<8x512xf32>
    %26 = vector.broadcast %23 : vector<8x1xf32> to vector<8x512xf32>
    %27 = arith.addf %25, %26 : vector<8x512xf32>
    %c0_13 = arith.constant 0 : index
    %c0_14 = arith.constant 0 : index
    %28 = vector.load %arg6[%c0_13, %c0_14] : memref<8x4xf32, #tpu.memory_space<vmem>>, vector<8x4xf32>
    %c0_15 = arith.constant 0 : index
    %c0_16 = arith.constant 0 : index
    %29 = vector.load %arg5[%c0_15, %c0_16] : memref<4x512xf32, #tpu.memory_space<vmem>>, vector<4x512xf32>
    %cst_17 = arith.constant dense<0.000000e+00> : vector<8x512xf32>
    %30 = tpu.matmul %28, %29, %cst_17 {dimension_numbers = #tpu.dot_dimension_numbers<[1], [0], [0], [1], [0, 0, 1, 1], [], []>} : vector<8x4xf32>, vector<4x512xf32>, vector<8x512xf32> -> vector<8x512xf32>
    %c0_18 = arith.constant 0 : index
    %c0_19 = arith.constant 0 : index
    %31 = vector.load %arg7[%c0_18, %c0_19] : memref<8x1xf32, #tpu.memory_space<vmem>>, vector<8x1xf32>
    %32 = vector.broadcast %31 : vector<8x1xf32> to vector<8x512xf32>
    %33 = arith.addf %30, %32 : vector<8x512xf32>
    %34 = arith.addf %27, %33 : vector<8x512xf32>
    %cst_20 = arith.constant 0.000000e+00 : f32
    %35 = vector.broadcast %cst_20 : f32 to vector<8x512xf32>
    %36 = arith.cmpf oge, %34, %35 : vector<8x512xf32>
    %cst_21 = arith.constant 0.00999999977 : f32
    %37 = vector.broadcast %cst_21 : f32 to vector<8x512xf32>
    %38 = arith.mulf %37, %34 : vector<8x512xf32>
    %39 = arith.select %36, %34, %38 : vector<8x512xi1>, vector<8x512xf32>
    %c0_22 = arith.constant 0 : index
    %c0_23 = arith.constant 0 : index
    %40 = vector.load %arg8[%c0_22, %c0_23] : memref<8x512xf32, #tpu.memory_space<vmem>>, vector<8x512xf32>
    tpu.vector_store %arg8[%c0_22, %c0_23], %39 {strides = array<i32>} : memref<8x512xf32, #tpu.memory_space<vmem>>, vector<8x512xf32>,
    return
  }
  func.func @transform_0(%arg0: i32) -> (i32, i32) {
    %c0_i32 = arith.constant 0 : i32
    %c0_i32_0 = arith.constant 0 : i32
    %c0_i32_1 = arith.constant 0 : i32
    return %c0_i32, %c0_i32_0 : i32, i32
  }
  func.func @transform_1(%arg0: i32) -> (i32, i32) {
    %c0_i32 = arith.constant 0 : i32
    %c0_i32_0 = arith.constant 0 : i32
    %c0_i32_1 = arith.constant 0 : i32
    return %c0_i32, %c0_i32_0 : i32, i32
  }
  func.func @transform_2(%arg0: i32) -> (i32, i32) {
    %c0_i32 = arith.constant 0 : i32
    %c0_i32_0 = arith.constant 0 : i32
    %c0_i32_1 = arith.constant 0 : i32
    return %c0_i32, %c0_i32_0 : i32, i32
  }
  func.func @transform_3(%arg0: i32) -> (i32, i32) {
    %c0_i32 = arith.constant 0 : i32
    %c0_i32_0 = arith.constant 0 : i32
    %c0_i32_1 = arith.constant 0 : i32
    return %c0_i32, %c0_i32_0 : i32, i32
  }
  func.func @transform_4(%arg0: i32) -> (i32, i32) {
    %c0_i32 = arith.constant 0 : i32
    %c0_i32_0 = arith.constant 0 : i32
    %c0_i32_1 = arith.constant 0 : i32
    return %c0_i32, %c0_i32_0 : i32, i32
  }
  func.func @transform_5(%arg0: i32) -> (i32, i32) {
    %c0_i32 = arith.constant 0 : i32
    %c0_i32_0 = arith.constant 0 : i32
    %c0_i32_1 = arith.constant 0 : i32
    return %c0_i32, %c0_i32_0 : i32, i32
  }
  func.func @transform_6(%arg0: i32) -> (i32, i32) {
    %c0_i32 = arith.constant 0 : i32
    %c0_i32_0 = arith.constant 0 : i32
    %c0_i32_1 = arith.constant 0 : i32
    return %c0_i32, %c0_i32_0 : i32, i32
  }
  func.func @transform_7(%arg0: i32) -> (i32, i32) {
    %c0_i32 = arith.constant 0 : i32
    %c0_i32_0 = arith.constant 0 : i32
    %c0_i32_1 = arith.constant 0 : i32
    return %c0_i32, %c0_i32_0 : i32, i32
  }
}

module attributes {stable_mosaic.version = 11 : i64} {
  func.func @_conv_bn_res_act_kernel(%arg0: i32, %arg1: memref<72x512xbf16, #tpu.memory_space<vmem>>, %arg2: memref<8x72xbf16, #tpu.memory_space<vmem>>, %arg3: memref<8x1xf32, #tpu.memory_space<vmem>>, %arg4: memref<8x1xf32, #tpu.memory_space<vmem>>, %arg5: memref<8x512xf32, #tpu.memory_space<vmem>>) attributes {dimension_semantics = [#tpu.dimension_semantics<arbitrary>], iteration_bounds = array<i64: 1>, scalar_prefetch = 0 : i64, scratch_operands = 0 : i64, tpu.core_type = #tpu.core_type<tc>, window_params = [{pipeline_mode = #tpu.pipeline_mode<synchronous>, transform_indices = @transform_0, window_bounds = array<i64: 72, 512>}, {pipeline_mode = #tpu.pipeline_mode<synchronous>, transform_indices = @transform_1, window_bounds = array<i64: 8, 72>}, {pipeline_mode = #tpu.pipeline_mode<synchronous>, transform_indices = @transform_2, window_bounds = array<i64: 8, 1>}, {pipeline_mode = #tpu.pipeline_mode<synchronous>, transform_indices = @transform_3, window_bounds = array<i64: 8, 1>}, {pipeline_mode = #tpu.pipeline_mode<synchronous>, transform_indices = @transform_4, window_bounds = array<i64: 8, 512>}]} {
    %c0 = arith.constant 0 : index
    %c0_0 = arith.constant 0 : index
    %0 = vector.load %arg2[%c0, %c0_0] : memref<8x72xbf16, #tpu.memory_space<vmem>>, vector<8x72xbf16>
    %c0_1 = arith.constant 0 : index
    %c0_2 = arith.constant 0 : index
    %1 = vector.load %arg1[%c0_1, %c0_2] : memref<72x512xbf16, #tpu.memory_space<vmem>>, vector<72x512xbf16>
    %cst = arith.constant dense<0.000000e+00> : vector<8x512xf32>
    %2 = tpu.matmul %0, %1, %cst {dimension_numbers = #tpu.dot_dimension_numbers<[1], [0], [0], [1], [0, 0, 1, 1], [], []>} : vector<8x72xbf16>, vector<72x512xbf16>, vector<8x512xf32> -> vector<8x512xf32>
    %cst_3 = arith.constant dense<0.000000e+00> : vector<8xf32>
    %3 = vector.multi_reduction <add>, %2, %cst_3 [1] : vector<8x512xf32> to vector<8xf32>
    %4 = vector.shape_cast %3 : vector<8xf32> to vector<8x1xf32>
    %cst_4 = arith.constant 0.001953125 : f32
    %5 = vector.broadcast %cst_4 : f32 to vector<8x1xf32>
    %6 = arith.mulf %4, %5 : vector<8x1xf32>
    %7 = arith.mulf %2, %2 : vector<8x512xf32>
    %cst_5 = arith.constant dense<0.000000e+00> : vector<8xf32>
    %8 = vector.multi_reduction <add>, %7, %cst_5 [1] : vector<8x512xf32> to vector<8xf32>
    %9 = vector.shape_cast %8 : vector<8xf32> to vector<8x1xf32>
    %cst_6 = arith.constant 0.001953125 : f32
    %10 = vector.broadcast %cst_6 : f32 to vector<8x1xf32>
    %11 = arith.mulf %9, %10 : vector<8x1xf32>
    %12 = arith.mulf %6, %6 : vector<8x1xf32>
    %13 = arith.subf %11, %12 : vector<8x1xf32>
    %cst_7 = arith.constant 0.000000e+00 : f32
    %14 = vector.broadcast %cst_7 : f32 to vector<8x1xf32>
    %15 = arith.maximumf %13, %14 : vector<8x1xf32>
    %c0_8 = arith.constant 0 : index
    %c0_9 = arith.constant 0 : index
    %16 = vector.load %arg3[%c0_8, %c0_9] : memref<8x1xf32, #tpu.memory_space<vmem>>, vector<8x1xf32>
    %cst_10 = arith.constant 9.99999974E-6 : f32
    %17 = vector.broadcast %cst_10 : f32 to vector<8x1xf32>
    %18 = arith.addf %15, %17 : vector<8x1xf32>
    %19 = math.rsqrt %18 : vector<8x1xf32>
    %20 = arith.mulf %16, %19 : vector<8x1xf32>
    %c0_11 = arith.constant 0 : index
    %c0_12 = arith.constant 0 : index
    %21 = vector.load %arg4[%c0_11, %c0_12] : memref<8x1xf32, #tpu.memory_space<vmem>>, vector<8x1xf32>
    %22 = arith.mulf %6, %20 : vector<8x1xf32>
    %23 = arith.subf %21, %22 : vector<8x1xf32>
    %24 = vector.broadcast %20 : vector<8x1xf32> to vector<8x512xf32>
    %25 = arith.mulf %2, %24 : vector<8x512xf32>
    %26 = vector.broadcast %23 : vector<8x1xf32> to vector<8x512xf32>
    %27 = arith.addf %25, %26 : vector<8x512xf32>
    %cst_13 = arith.constant 0.000000e+00 : f32
    %28 = vector.broadcast %cst_13 : f32 to vector<8x512xf32>
    %29 = arith.cmpf oge, %27, %28 : vector<8x512xf32>
    %cst_14 = arith.constant 0.00999999977 : f32
    %30 = vector.broadcast %cst_14 : f32 to vector<8x512xf32>
    %31 = arith.mulf %30, %27 : vector<8x512xf32>
    %32 = arith.select %29, %27, %31 : vector<8x512xi1>, vector<8x512xf32>
    %c0_15 = arith.constant 0 : index
    %c0_16 = arith.constant 0 : index
    %33 = vector.load %arg5[%c0_15, %c0_16] : memref<8x512xf32, #tpu.memory_space<vmem>>, vector<8x512xf32>
    tpu.vector_store %arg5[%c0_15, %c0_16], %32 {strides = array<i32>} : memref<8x512xf32, #tpu.memory_space<vmem>>, vector<8x512xf32>,
    return
  }
  func.func @transform_0(%arg0: i32) -> (i32, i32) {
    %c0_i32 = arith.constant 0 : i32
    %c0_i32_0 = arith.constant 0 : i32
    %c0_i32_1 = arith.constant 0 : i32
    return %c0_i32, %c0_i32_0 : i32, i32
  }
  func.func @transform_1(%arg0: i32) -> (i32, i32) {
    %c0_i32 = arith.constant 0 : i32
    %c0_i32_0 = arith.constant 0 : i32
    %c0_i32_1 = arith.constant 0 : i32
    return %c0_i32, %c0_i32_0 : i32, i32
  }
  func.func @transform_2(%arg0: i32) -> (i32, i32) {
    %c0_i32 = arith.constant 0 : i32
    %c0_i32_0 = arith.constant 0 : i32
    %c0_i32_1 = arith.constant 0 : i32
    return %c0_i32, %c0_i32_0 : i32, i32
  }
  func.func @transform_3(%arg0: i32) -> (i32, i32) {
    %c0_i32 = arith.constant 0 : i32
    %c0_i32_0 = arith.constant 0 : i32
    %c0_i32_1 = arith.constant 0 : i32
    return %c0_i32, %c0_i32_0 : i32, i32
  }
  func.func @transform_4(%arg0: i32) -> (i32, i32) {
    %c0_i32 = arith.constant 0 : i32
    %c0_i32_0 = arith.constant 0 : i32
    %c0_i32_1 = arith.constant 0 : i32
    return %c0_i32, %c0_i32_0 : i32, i32
  }
}

module attributes {stable_mosaic.version = 11 : i64} {
  func.func @_conv_bn_res_act_kernel(%arg0: i32, %arg1: memref<72x512xbf16, #tpu.memory_space<vmem>>, %arg2: memref<8x72xbf16, #tpu.memory_space<vmem>>, %arg3: memref<8x1xf32, #tpu.memory_space<vmem>>, %arg4: memref<8x1xf32, #tpu.memory_space<vmem>>, %arg5: memref<8x512xf32, #tpu.memory_space<vmem>>, %arg6: memref<8x512xf32, #tpu.memory_space<vmem>>) attributes {dimension_semantics = [#tpu.dimension_semantics<arbitrary>], iteration_bounds = array<i64: 1>, scalar_prefetch = 0 : i64, scratch_operands = 0 : i64, tpu.core_type = #tpu.core_type<tc>, window_params = [{pipeline_mode = #tpu.pipeline_mode<synchronous>, transform_indices = @transform_0, window_bounds = array<i64: 72, 512>}, {pipeline_mode = #tpu.pipeline_mode<synchronous>, transform_indices = @transform_1, window_bounds = array<i64: 8, 72>}, {pipeline_mode = #tpu.pipeline_mode<synchronous>, transform_indices = @transform_2, window_bounds = array<i64: 8, 1>}, {pipeline_mode = #tpu.pipeline_mode<synchronous>, transform_indices = @transform_3, window_bounds = array<i64: 8, 1>}, {pipeline_mode = #tpu.pipeline_mode<synchronous>, transform_indices = @transform_4, window_bounds = array<i64: 8, 512>}, {pipeline_mode = #tpu.pipeline_mode<synchronous>, transform_indices = @transform_5, window_bounds = array<i64: 8, 512>}]} {
    %c0 = arith.constant 0 : index
    %c0_0 = arith.constant 0 : index
    %0 = vector.load %arg2[%c0, %c0_0] : memref<8x72xbf16, #tpu.memory_space<vmem>>, vector<8x72xbf16>
    %c0_1 = arith.constant 0 : index
    %c0_2 = arith.constant 0 : index
    %1 = vector.load %arg1[%c0_1, %c0_2] : memref<72x512xbf16, #tpu.memory_space<vmem>>, vector<72x512xbf16>
    %cst = arith.constant dense<0.000000e+00> : vector<8x512xf32>
    %2 = tpu.matmul %0, %1, %cst {dimension_numbers = #tpu.dot_dimension_numbers<[1], [0], [0], [1], [0, 0, 1, 1], [], []>} : vector<8x72xbf16>, vector<72x512xbf16>, vector<8x512xf32> -> vector<8x512xf32>
    %cst_3 = arith.constant dense<0.000000e+00> : vector<8xf32>
    %3 = vector.multi_reduction <add>, %2, %cst_3 [1] : vector<8x512xf32> to vector<8xf32>
    %4 = vector.shape_cast %3 : vector<8xf32> to vector<8x1xf32>
    %cst_4 = arith.constant 0.001953125 : f32
    %5 = vector.broadcast %cst_4 : f32 to vector<8x1xf32>
    %6 = arith.mulf %4, %5 : vector<8x1xf32>
    %7 = arith.mulf %2, %2 : vector<8x512xf32>
    %cst_5 = arith.constant dense<0.000000e+00> : vector<8xf32>
    %8 = vector.multi_reduction <add>, %7, %cst_5 [1] : vector<8x512xf32> to vector<8xf32>
    %9 = vector.shape_cast %8 : vector<8xf32> to vector<8x1xf32>
    %cst_6 = arith.constant 0.001953125 : f32
    %10 = vector.broadcast %cst_6 : f32 to vector<8x1xf32>
    %11 = arith.mulf %9, %10 : vector<8x1xf32>
    %12 = arith.mulf %6, %6 : vector<8x1xf32>
    %13 = arith.subf %11, %12 : vector<8x1xf32>
    %cst_7 = arith.constant 0.000000e+00 : f32
    %14 = vector.broadcast %cst_7 : f32 to vector<8x1xf32>
    %15 = arith.maximumf %13, %14 : vector<8x1xf32>
    %c0_8 = arith.constant 0 : index
    %c0_9 = arith.constant 0 : index
    %16 = vector.load %arg3[%c0_8, %c0_9] : memref<8x1xf32, #tpu.memory_space<vmem>>, vector<8x1xf32>
    %cst_10 = arith.constant 9.99999974E-6 : f32
    %17 = vector.broadcast %cst_10 : f32 to vector<8x1xf32>
    %18 = arith.addf %15, %17 : vector<8x1xf32>
    %19 = math.rsqrt %18 : vector<8x1xf32>
    %20 = arith.mulf %16, %19 : vector<8x1xf32>
    %c0_11 = arith.constant 0 : index
    %c0_12 = arith.constant 0 : index
    %21 = vector.load %arg4[%c0_11, %c0_12] : memref<8x1xf32, #tpu.memory_space<vmem>>, vector<8x1xf32>
    %22 = arith.mulf %6, %20 : vector<8x1xf32>
    %23 = arith.subf %21, %22 : vector<8x1xf32>
    %24 = vector.broadcast %20 : vector<8x1xf32> to vector<8x512xf32>
    %25 = arith.mulf %2, %24 : vector<8x512xf32>
    %26 = vector.broadcast %23 : vector<8x1xf32> to vector<8x512xf32>
    %27 = arith.addf %25, %26 : vector<8x512xf32>
    %c0_13 = arith.constant 0 : index
    %c0_14 = arith.constant 0 : index
    %28 = vector.load %arg5[%c0_13, %c0_14] : memref<8x512xf32, #tpu.memory_space<vmem>>, vector<8x512xf32>
    %29 = arith.addf %27, %28 : vector<8x512xf32>
    %cst_15 = arith.constant 0.000000e+00 : f32
    %30 = vector.broadcast %cst_15 : f32 to vector<8x512xf32>
    %31 = arith.cmpf oge, %29, %30 : vector<8x512xf32>
    %cst_16 = arith.constant 0.00999999977 : f32
    %32 = vector.broadcast %cst_16 : f32 to vector<8x512xf32>
    %33 = arith.mulf %32, %29 : vector<8x512xf32>
    %34 = arith.select %31, %29, %33 : vector<8x512xi1>, vector<8x512xf32>
    %c0_17 = arith.constant 0 : index
    %c0_18 = arith.constant 0 : index
    %35 = vector.load %arg6[%c0_17, %c0_18] : memref<8x512xf32, #tpu.memory_space<vmem>>, vector<8x512xf32>
    tpu.vector_store %arg6[%c0_17, %c0_18], %34 {strides = array<i32>} : memref<8x512xf32, #tpu.memory_space<vmem>>, vector<8x512xf32>,
    return
  }
  func.func @transform_0(%arg0: i32) -> (i32, i32) {
    %c0_i32 = arith.constant 0 : i32
    %c0_i32_0 = arith.constant 0 : i32
    %c0_i32_1 = arith.constant 0 : i32
    return %c0_i32, %c0_i32_0 : i32, i32
  }
  func.func @transform_1(%arg0: i32) -> (i32, i32) {
    %c0_i32 = arith.constant 0 : i32
    %c0_i32_0 = arith.constant 0 : i32
    %c0_i32_1 = arith.constant 0 : i32
    return %c0_i32, %c0_i32_0 : i32, i32
  }
  func.func @transform_2(%arg0: i32) -> (i32, i32) {
    %c0_i32 = arith.constant 0 : i32
    %c0_i32_0 = arith.constant 0 : i32
    %c0_i32_1 = arith.constant 0 : i32
    return %c0_i32, %c0_i32_0 : i32, i32
  }
  func.func @transform_3(%arg0: i32) -> (i32, i32) {
    %c0_i32 = arith.constant 0 : i32
    %c0_i32_0 = arith.constant 0 : i32
    %c0_i32_1 = arith.constant 0 : i32
    return %c0_i32, %c0_i32_0 : i32, i32
  }
  func.func @transform_4(%arg0: i32) -> (i32, i32) {
    %c0_i32 = arith.constant 0 : i32
    %c0_i32_0 = arith.constant 0 : i32
    %c0_i32_1 = arith.constant 0 : i32
    return %c0_i32, %c0_i32_0 : i32, i32
  }
  func.func @transform_5(%arg0: i32) -> (i32, i32) {
    %c0_i32 = arith.constant 0 : i32
    %c0_i32_0 = arith.constant 0 : i32
    %c0_i32_1 = arith.constant 0 : i32
    return %c0_i32, %c0_i32_0 : i32, i32
  }
}

module attributes {stable_mosaic.version = 11 : i64} {
  func.func @_gemm_bias_act_kernel(%arg0: i32, %arg1: memref<8x8xbf16, #tpu.memory_space<vmem>>, %arg2: memref<8x128xbf16, #tpu.memory_space<vmem>>, %arg3: memref<8x1xf32, #tpu.memory_space<vmem>>, %arg4: memref<8x128xf32, #tpu.memory_space<vmem>>) attributes {dimension_semantics = [#tpu.dimension_semantics<parallel>], iteration_bounds = array<i64: 1>, scalar_prefetch = 0 : i64, scratch_operands = 0 : i64, tpu.core_type = #tpu.core_type<tc>, window_params = [{pipeline_mode = #tpu.pipeline_mode<synchronous>, transform_indices = @transform_0, window_bounds = array<i64: 8, 8>}, {transform_indices = @transform_1, window_bounds = array<i64: 8, 128>}, {pipeline_mode = #tpu.pipeline_mode<synchronous>, transform_indices = @transform_2, window_bounds = array<i64: 8, 1>}, {transform_indices = @transform_3, window_bounds = array<i64: 8, 128>}]} {
    %c0 = arith.constant 0 : index
    %c0_0 = arith.constant 0 : index
    %0 = vector.load %arg1[%c0, %c0_0] : memref<8x8xbf16, #tpu.memory_space<vmem>>, vector<8x8xbf16>
    %c0_1 = arith.constant 0 : index
    %c0_2 = arith.constant 0 : index
    %1 = vector.load %arg2[%c0_1, %c0_2] : memref<8x128xbf16, #tpu.memory_space<vmem>>, vector<8x128xbf16>
    %cst = arith.constant dense<0.000000e+00> : vector<8x128xf32>
    %2 = tpu.matmul %0, %1, %cst {dimension_numbers = #tpu.dot_dimension_numbers<[1], [0], [0], [1], [0, 0, 1, 1], [], []>} : vector<8x8xbf16>, vector<8x128xbf16>, vector<8x128xf32> -> vector<8x128xf32>
    %c0_3 = arith.constant 0 : index
    %c0_4 = arith.constant 0 : index
    %3 = vector.load %arg3[%c0_3, %c0_4] : memref<8x1xf32, #tpu.memory_space<vmem>>, vector<8x1xf32>
    %4 = vector.broadcast %3 : vector<8x1xf32> to vector<8x128xf32>
    %5 = arith.addf %2, %4 : vector<8x128xf32>
    %cst_5 = arith.constant 0.000000e+00 : f32
    %6 = vector.broadcast %cst_5 : f32 to vector<8x128xf32>
    %7 = arith.cmpf oge, %5, %6 : vector<8x128xf32>
    %cst_6 = arith.constant 0.00999999977 : f32
    %8 = vector.broadcast %cst_6 : f32 to vector<8x128xf32>
    %9 = arith.mulf %8, %5 : vector<8x128xf32>
    %10 = arith.select %7, %5, %9 : vector<8x128xi1>, vector<8x128xf32>
    %c0_7 = arith.constant 0 : index
    %c0_8 = arith.constant 0 : index
    %11 = vector.load %arg4[%c0_7, %c0_8] : memref<8x128xf32, #tpu.memory_space<vmem>>, vector<8x128xf32>
    tpu.vector_store %arg4[%c0_7, %c0_8], %10 {strides = array<i32>} : memref<8x128xf32, #tpu.memory_space<vmem>>, vector<8x128xf32>,
    return
  }
  func.func @transform_0(%arg0: i32) -> (i32, i32) {
    %c0_i32 = arith.constant 0 : i32
    %c0_i32_0 = arith.constant 0 : i32
    %c0_i32_1 = arith.constant 0 : i32
    return %c0_i32, %c0_i32_0 : i32, i32
  }
  func.func @transform_1(%arg0: i32) -> (i32, i32) {
    %c0_i32 = arith.constant 0 : i32
    %c0_i32_0 = arith.constant 0 : i32
    return %c0_i32, %arg0 : i32, i32
  }
  func.func @transform_2(%arg0: i32) -> (i32, i32) {
    %c0_i32 = arith.constant 0 : i32
    %c0_i32_0 = arith.constant 0 : i32
    %c0_i32_1 = arith.constant 0 : i32
    return %c0_i32, %c0_i32_0 : i32, i32
  }
  func.func @transform_3(%arg0: i32) -> (i32, i32) {
    %c0_i32 = arith.constant 0 : i32
    %c0_i32_0 = arith.constant 0 : i32
    return %c0_i32, %arg0 : i32, i32
  }
}

module attributes {stable_mosaic.version = 11 : i64} {
  func.func @_conv_bn_res_act_kernel(%arg0: i32, %arg1: memref<72x128xbf16, #tpu.memory_space<vmem>>, %arg2: memref<16x72xbf16, #tpu.memory_space<vmem>>, %arg3: memref<16x1xf32, #tpu.memory_space<vmem>>, %arg4: memref<16x1xf32, #tpu.memory_space<vmem>>, %arg5: memref<16x128xf32, #tpu.memory_space<vmem>>) attributes {dimension_semantics = [#tpu.dimension_semantics<arbitrary>], iteration_bounds = array<i64: 1>, scalar_prefetch = 0 : i64, scratch_operands = 0 : i64, tpu.core_type = #tpu.core_type<tc>, window_params = [{pipeline_mode = #tpu.pipeline_mode<synchronous>, transform_indices = @transform_0, window_bounds = array<i64: 72, 128>}, {pipeline_mode = #tpu.pipeline_mode<synchronous>, transform_indices = @transform_1, window_bounds = array<i64: 16, 72>}, {pipeline_mode = #tpu.pipeline_mode<synchronous>, transform_indices = @transform_2, window_bounds = array<i64: 16, 1>}, {pipeline_mode = #tpu.pipeline_mode<synchronous>, transform_indices = @transform_3, window_bounds = array<i64: 16, 1>}, {pipeline_mode = #tpu.pipeline_mode<synchronous>, transform_indices = @transform_4, window_bounds = array<i64: 16, 128>}]} {
    %c0 = arith.constant 0 : index
    %c0_0 = arith.constant 0 : index
    %0 = vector.load %arg2[%c0, %c0_0] : memref<16x72xbf16, #tpu.memory_space<vmem>>, vector<16x72xbf16>
    %c0_1 = arith.constant 0 : index
    %c0_2 = arith.constant 0 : index
    %1 = vector.load %arg1[%c0_1, %c0_2] : memref<72x128xbf16, #tpu.memory_space<vmem>>, vector<72x128xbf16>
    %cst = arith.constant dense<0.000000e+00> : vector<16x128xf32>
    %2 = tpu.matmul %0, %1, %cst {dimension_numbers = #tpu.dot_dimension_numbers<[1], [0], [0], [1], [0, 0, 1, 1], [], []>} : vector<16x72xbf16>, vector<72x128xbf16>, vector<16x128xf32> -> vector<16x128xf32>
    %cst_3 = arith.constant dense<0.000000e+00> : vector<16xf32>
    %3 = vector.multi_reduction <add>, %2, %cst_3 [1] : vector<16x128xf32> to vector<16xf32>
    %4 = vector.shape_cast %3 : vector<16xf32> to vector<16x1xf32>
    %cst_4 = arith.constant 7.812500e-03 : f32
    %5 = vector.broadcast %cst_4 : f32 to vector<16x1xf32>
    %6 = arith.mulf %4, %5 : vector<16x1xf32>
    %7 = arith.mulf %2, %2 : vector<16x128xf32>
    %cst_5 = arith.constant dense<0.000000e+00> : vector<16xf32>
    %8 = vector.multi_reduction <add>, %7, %cst_5 [1] : vector<16x128xf32> to vector<16xf32>
    %9 = vector.shape_cast %8 : vector<16xf32> to vector<16x1xf32>
    %cst_6 = arith.constant 7.812500e-03 : f32
    %10 = vector.broadcast %cst_6 : f32 to vector<16x1xf32>
    %11 = arith.mulf %9, %10 : vector<16x1xf32>
    %12 = arith.mulf %6, %6 : vector<16x1xf32>
    %13 = arith.subf %11, %12 : vector<16x1xf32>
    %cst_7 = arith.constant 0.000000e+00 : f32
    %14 = vector.broadcast %cst_7 : f32 to vector<16x1xf32>
    %15 = arith.maximumf %13, %14 : vector<16x1xf32>
    %c0_8 = arith.constant 0 : index
    %c0_9 = arith.constant 0 : index
    %16 = vector.load %arg3[%c0_8, %c0_9] : memref<16x1xf32, #tpu.memory_space<vmem>>, vector<16x1xf32>
    %cst_10 = arith.constant 9.99999974E-6 : f32
    %17 = vector.broadcast %cst_10 : f32 to vector<16x1xf32>
    %18 = arith.addf %15, %17 : vector<16x1xf32>
    %19 = math.rsqrt %18 : vector<16x1xf32>
    %20 = arith.mulf %16, %19 : vector<16x1xf32>
    %c0_11 = arith.constant 0 : index
    %c0_12 = arith.constant 0 : index
    %21 = vector.load %arg4[%c0_11, %c0_12] : memref<16x1xf32, #tpu.memory_space<vmem>>, vector<16x1xf32>
    %22 = arith.mulf %6, %20 : vector<16x1xf32>
    %23 = arith.subf %21, %22 : vector<16x1xf32>
    %24 = vector.broadcast %20 : vector<16x1xf32> to vector<16x128xf32>
    %25 = arith.mulf %2, %24 : vector<16x128xf32>
    %26 = vector.broadcast %23 : vector<16x1xf32> to vector<16x128xf32>
    %27 = arith.addf %25, %26 : vector<16x128xf32>
    %cst_13 = arith.constant 0.000000e+00 : f32
    %28 = vector.broadcast %cst_13 : f32 to vector<16x128xf32>
    %29 = arith.cmpf oge, %27, %28 : vector<16x128xf32>
    %cst_14 = arith.constant 0.00999999977 : f32
    %30 = vector.broadcast %cst_14 : f32 to vector<16x128xf32>
    %31 = arith.mulf %30, %27 : vector<16x128xf32>
    %32 = arith.select %29, %27, %31 : vector<16x128xi1>, vector<16x128xf32>
    %c0_15 = arith.constant 0 : index
    %c0_16 = arith.constant 0 : index
    %33 = vector.load %arg5[%c0_15, %c0_16] : memref<16x128xf32, #tpu.memory_space<vmem>>, vector<16x128xf32>
    tpu.vector_store %arg5[%c0_15, %c0_16], %32 {strides = array<i32>} : memref<16x128xf32, #tpu.memory_space<vmem>>, vector<16x128xf32>,
    return
  }
  func.func @transform_0(%arg0: i32) -> (i32, i32) {
    %c0_i32 = arith.constant 0 : i32
    %c0_i32_0 = arith.constant 0 : i32
    %c0_i32_1 = arith.constant 0 : i32
    return %c0_i32, %c0_i32_0 : i32, i32
  }
  func.func @transform_1(%arg0: i32) -> (i32, i32) {
    %c0_i32 = arith.constant 0 : i32
    %c0_i32_0 = arith.constant 0 : i32
    %c0_i32_1 = arith.constant 0 : i32
    return %c0_i32, %c0_i32_0 : i32, i32
  }
  func.func @transform_2(%arg0: i32) -> (i32, i32) {
    %c0_i32 = arith.constant 0 : i32
    %c0_i32_0 = arith.constant 0 : i32
    %c0_i32_1 = arith.constant 0 : i32
    return %c0_i32, %c0_i32_0 : i32, i32
  }
  func.func @transform_3(%arg0: i32) -> (i32, i32) {
    %c0_i32 = arith.constant 0 : i32
    %c0_i32_0 = arith.constant 0 : i32
    %c0_i32_1 = arith.constant 0 : i32
    return %c0_i32, %c0_i32_0 : i32, i32
  }
  func.func @transform_4(%arg0: i32) -> (i32, i32) {
    %c0_i32 = arith.constant 0 : i32
    %c0_i32_0 = arith.constant 0 : i32
    %c0_i32_1 = arith.constant 0 : i32
    return %c0_i32, %c0_i32_0 : i32, i32
  }
}

module attributes {stable_mosaic.version = 11 : i64} {
  func.func @_conv_bn_res_act_kernel(%arg0: i32, %arg1: memref<144x128xbf16, #tpu.memory_space<vmem>>, %arg2: memref<16x144xbf16, #tpu.memory_space<vmem>>, %arg3: memref<16x1xf32, #tpu.memory_space<vmem>>, %arg4: memref<16x1xf32, #tpu.memory_space<vmem>>, %arg5: memref<16x128xf32, #tpu.memory_space<vmem>>) attributes {dimension_semantics = [#tpu.dimension_semantics<arbitrary>], iteration_bounds = array<i64: 1>, scalar_prefetch = 0 : i64, scratch_operands = 0 : i64, tpu.core_type = #tpu.core_type<tc>, window_params = [{pipeline_mode = #tpu.pipeline_mode<synchronous>, transform_indices = @transform_0, window_bounds = array<i64: 144, 128>}, {pipeline_mode = #tpu.pipeline_mode<synchronous>, transform_indices = @transform_1, window_bounds = array<i64: 16, 144>}, {pipeline_mode = #tpu.pipeline_mode<synchronous>, transform_indices = @transform_2, window_bounds = array<i64: 16, 1>}, {pipeline_mode = #tpu.pipeline_mode<synchronous>, transform_indices = @transform_3, window_bounds = array<i64: 16, 1>}, {pipeline_mode = #tpu.pipeline_mode<synchronous>, transform_indices = @transform_4, window_bounds = array<i64: 16, 128>}]} {
    %c0 = arith.constant 0 : index
    %c0_0 = arith.constant 0 : index
    %0 = vector.load %arg2[%c0, %c0_0] : memref<16x144xbf16, #tpu.memory_space<vmem>>, vector<16x144xbf16>
    %c0_1 = arith.constant 0 : index
    %c0_2 = arith.constant 0 : index
    %1 = vector.load %arg1[%c0_1, %c0_2] : memref<144x128xbf16, #tpu.memory_space<vmem>>, vector<144x128xbf16>
    %cst = arith.constant dense<0.000000e+00> : vector<16x128xf32>
    %2 = tpu.matmul %0, %1, %cst {dimension_numbers = #tpu.dot_dimension_numbers<[1], [0], [0], [1], [0, 0, 1, 1], [], []>} : vector<16x144xbf16>, vector<144x128xbf16>, vector<16x128xf32> -> vector<16x128xf32>
    %cst_3 = arith.constant dense<0.000000e+00> : vector<16xf32>
    %3 = vector.multi_reduction <add>, %2, %cst_3 [1] : vector<16x128xf32> to vector<16xf32>
    %4 = vector.shape_cast %3 : vector<16xf32> to vector<16x1xf32>
    %cst_4 = arith.constant 7.812500e-03 : f32
    %5 = vector.broadcast %cst_4 : f32 to vector<16x1xf32>
    %6 = arith.mulf %4, %5 : vector<16x1xf32>
    %7 = arith.mulf %2, %2 : vector<16x128xf32>
    %cst_5 = arith.constant dense<0.000000e+00> : vector<16xf32>
    %8 = vector.multi_reduction <add>, %7, %cst_5 [1] : vector<16x128xf32> to vector<16xf32>
    %9 = vector.shape_cast %8 : vector<16xf32> to vector<16x1xf32>
    %cst_6 = arith.constant 7.812500e-03 : f32
    %10 = vector.broadcast %cst_6 : f32 to vector<16x1xf32>
    %11 = arith.mulf %9, %10 : vector<16x1xf32>
    %12 = arith.mulf %6, %6 : vector<16x1xf32>
    %13 = arith.subf %11, %12 : vector<16x1xf32>
    %cst_7 = arith.constant 0.000000e+00 : f32
    %14 = vector.broadcast %cst_7 : f32 to vector<16x1xf32>
    %15 = arith.maximumf %13, %14 : vector<16x1xf32>
    %c0_8 = arith.constant 0 : index
    %c0_9 = arith.constant 0 : index
    %16 = vector.load %arg3[%c0_8, %c0_9] : memref<16x1xf32, #tpu.memory_space<vmem>>, vector<16x1xf32>
    %cst_10 = arith.constant 9.99999974E-6 : f32
    %17 = vector.broadcast %cst_10 : f32 to vector<16x1xf32>
    %18 = arith.addf %15, %17 : vector<16x1xf32>
    %19 = math.rsqrt %18 : vector<16x1xf32>
    %20 = arith.mulf %16, %19 : vector<16x1xf32>
    %c0_11 = arith.constant 0 : index
    %c0_12 = arith.constant 0 : index
    %21 = vector.load %arg4[%c0_11, %c0_12] : memref<16x1xf32, #tpu.memory_space<vmem>>, vector<16x1xf32>
    %22 = arith.mulf %6, %20 : vector<16x1xf32>
    %23 = arith.subf %21, %22 : vector<16x1xf32>
    %24 = vector.broadcast %20 : vector<16x1xf32> to vector<16x128xf32>
    %25 = arith.mulf %2, %24 : vector<16x128xf32>
    %26 = vector.broadcast %23 : vector<16x1xf32> to vector<16x128xf32>
    %27 = arith.addf %25, %26 : vector<16x128xf32>
    %cst_13 = arith.constant 0.000000e+00 : f32
    %28 = vector.broadcast %cst_13 : f32 to vector<16x128xf32>
    %29 = arith.cmpf oge, %27, %28 : vector<16x128xf32>
    %cst_14 = arith.constant 0.00999999977 : f32
    %30 = vector.broadcast %cst_14 : f32 to vector<16x128xf32>
    %31 = arith.mulf %30, %27 : vector<16x128xf32>
    %32 = arith.select %29, %27, %31 : vector<16x128xi1>, vector<16x128xf32>
    %c0_15 = arith.constant 0 : index
    %c0_16 = arith.constant 0 : index
    %33 = vector.load %arg5[%c0_15, %c0_16] : memref<16x128xf32, #tpu.memory_space<vmem>>, vector<16x128xf32>
    tpu.vector_store %arg5[%c0_15, %c0_16], %32 {strides = array<i32>} : memref<16x128xf32, #tpu.memory_space<vmem>>, vector<16x128xf32>,
    return
  }
  func.func @transform_0(%arg0: i32) -> (i32, i32) {
    %c0_i32 = arith.constant 0 : i32
    %c0_i32_0 = arith.constant 0 : i32
    %c0_i32_1 = arith.constant 0 : i32
    return %c0_i32, %c0_i32_0 : i32, i32
  }
  func.func @transform_1(%arg0: i32) -> (i32, i32) {
    %c0_i32 = arith.constant 0 : i32
    %c0_i32_0 = arith.constant 0 : i32
    %c0_i32_1 = arith.constant 0 : i32
    return %c0_i32, %c0_i32_0 : i32, i32
  }
  func.func @transform_2(%arg0: i32) -> (i32, i32) {
    %c0_i32 = arith.constant 0 : i32
    %c0_i32_0 = arith.constant 0 : i32
    %c0_i32_1 = arith.constant 0 : i32
    return %c0_i32, %c0_i32_0 : i32, i32
  }
  func.func @transform_3(%arg0: i32) -> (i32, i32) {
    %c0_i32 = arith.constant 0 : i32
    %c0_i32_0 = arith.constant 0 : i32
    %c0_i32_1 = arith.constant 0 : i32
    return %c0_i32, %c0_i32_0 : i32, i32
  }
  func.func @transform_4(%arg0: i32) -> (i32, i32) {
    %c0_i32 = arith.constant 0 : i32
    %c0_i32_0 = arith.constant 0 : i32
    %c0_i32_1 = arith.constant 0 : i32
    return %c0_i32, %c0_i32_0 : i32, i32
  }
}

module attributes {stable_mosaic.version = 11 : i64} {
  func.func @_conv_bn_res_act_kernel(%arg0: i32, %arg1: memref<144x128xbf16, #tpu.memory_space<vmem>>, %arg2: memref<16x144xbf16, #tpu.memory_space<vmem>>, %arg3: memref<16x1xf32, #tpu.memory_space<vmem>>, %arg4: memref<16x1xf32, #tpu.memory_space<vmem>>, %arg5: memref<8x128xf32, #tpu.memory_space<vmem>>, %arg6: memref<16x8xf32, #tpu.memory_space<vmem>>, %arg7: memref<16x1xf32, #tpu.memory_space<vmem>>, %arg8: memref<16x128xf32, #tpu.memory_space<vmem>>) attributes {dimension_semantics = [#tpu.dimension_semantics<arbitrary>], iteration_bounds = array<i64: 1>, scalar_prefetch = 0 : i64, scratch_operands = 0 : i64, tpu.core_type = #tpu.core_type<tc>, window_params = [{pipeline_mode = #tpu.pipeline_mode<synchronous>, transform_indices = @transform_0, window_bounds = array<i64: 144, 128>}, {pipeline_mode = #tpu.pipeline_mode<synchronous>, transform_indices = @transform_1, window_bounds = array<i64: 16, 144>}, {pipeline_mode = #tpu.pipeline_mode<synchronous>, transform_indices = @transform_2, window_bounds = array<i64: 16, 1>}, {pipeline_mode = #tpu.pipeline_mode<synchronous>, transform_indices = @transform_3, window_bounds = array<i64: 16, 1>}, {pipeline_mode = #tpu.pipeline_mode<synchronous>, transform_indices = @transform_4, window_bounds = array<i64: 8, 128>}, {pipeline_mode = #tpu.pipeline_mode<synchronous>, transform_indices = @transform_5, window_bounds = array<i64: 16, 8>}, {pipeline_mode = #tpu.pipeline_mode<synchronous>, transform_indices = @transform_6, window_bounds = array<i64: 16, 1>}, {pipeline_mode = #tpu.pipeline_mode<synchronous>, transform_indices = @transform_7, window_bounds = array<i64: 16, 128>}]} {
    %c0 = arith.constant 0 : index
    %c0_0 = arith.constant 0 : index
    %0 = vector.load %arg2[%c0, %c0_0] : memref<16x144xbf16, #tpu.memory_space<vmem>>, vector<16x144xbf16>
    %c0_1 = arith.constant 0 : index
    %c0_2 = arith.constant 0 : index
    %1 = vector.load %arg1[%c0_1, %c0_2] : memref<144x128xbf16, #tpu.memory_space<vmem>>, vector<144x128xbf16>
    %cst = arith.constant dense<0.000000e+00> : vector<16x128xf32>
    %2 = tpu.matmul %0, %1, %cst {dimension_numbers = #tpu.dot_dimension_numbers<[1], [0], [0], [1], [0, 0, 1, 1], [], []>} : vector<16x144xbf16>, vector<144x128xbf16>, vector<16x128xf32> -> vector<16x128xf32>
    %cst_3 = arith.constant dense<0.000000e+00> : vector<16xf32>
    %3 = vector.multi_reduction <add>, %2, %cst_3 [1] : vector<16x128xf32> to vector<16xf32>
    %4 = vector.shape_cast %3 : vector<16xf32> to vector<16x1xf32>
    %cst_4 = arith.constant 7.812500e-03 : f32
    %5 = vector.broadcast %cst_4 : f32 to vector<16x1xf32>
    %6 = arith.mulf %4, %5 : vector<16x1xf32>
    %7 = arith.mulf %2, %2 : vector<16x128xf32>
    %cst_5 = arith.constant dense<0.000000e+00> : vector<16xf32>
    %8 = vector.multi_reduction <add>, %7, %cst_5 [1] : vector<16x128xf32> to vector<16xf32>
    %9 = vector.shape_cast %8 : vector<16xf32> to vector<16x1xf32>
    %cst_6 = arith.constant 7.812500e-03 : f32
    %10 = vector.broadcast %cst_6 : f32 to vector<16x1xf32>
    %11 = arith.mulf %9, %10 : vector<16x1xf32>
    %12 = arith.mulf %6, %6 : vector<16x1xf32>
    %13 = arith.subf %11, %12 : vector<16x1xf32>
    %cst_7 = arith.constant 0.000000e+00 : f32
    %14 = vector.broadcast %cst_7 : f32 to vector<16x1xf32>
    %15 = arith.maximumf %13, %14 : vector<16x1xf32>
    %c0_8 = arith.constant 0 : index
    %c0_9 = arith.constant 0 : index
    %16 = vector.load %arg3[%c0_8, %c0_9] : memref<16x1xf32, #tpu.memory_space<vmem>>, vector<16x1xf32>
    %cst_10 = arith.constant 9.99999974E-6 : f32
    %17 = vector.broadcast %cst_10 : f32 to vector<16x1xf32>
    %18 = arith.addf %15, %17 : vector<16x1xf32>
    %19 = math.rsqrt %18 : vector<16x1xf32>
    %20 = arith.mulf %16, %19 : vector<16x1xf32>
    %c0_11 = arith.constant 0 : index
    %c0_12 = arith.constant 0 : index
    %21 = vector.load %arg4[%c0_11, %c0_12] : memref<16x1xf32, #tpu.memory_space<vmem>>, vector<16x1xf32>
    %22 = arith.mulf %6, %20 : vector<16x1xf32>
    %23 = arith.subf %21, %22 : vector<16x1xf32>
    %24 = vector.broadcast %20 : vector<16x1xf32> to vector<16x128xf32>
    %25 = arith.mulf %2, %24 : vector<16x128xf32>
    %26 = vector.broadcast %23 : vector<16x1xf32> to vector<16x128xf32>
    %27 = arith.addf %25, %26 : vector<16x128xf32>
    %c0_13 = arith.constant 0 : index
    %c0_14 = arith.constant 0 : index
    %28 = vector.load %arg6[%c0_13, %c0_14] : memref<16x8xf32, #tpu.memory_space<vmem>>, vector<16x8xf32>
    %c0_15 = arith.constant 0 : index
    %c0_16 = arith.constant 0 : index
    %29 = vector.load %arg5[%c0_15, %c0_16] : memref<8x128xf32, #tpu.memory_space<vmem>>, vector<8x128xf32>
    %cst_17 = arith.constant dense<0.000000e+00> : vector<16x128xf32>
    %30 = tpu.matmul %28, %29, %cst_17 {dimension_numbers = #tpu.dot_dimension_numbers<[1], [0], [0], [1], [0, 0, 1, 1], [], []>} : vector<16x8xf32>, vector<8x128xf32>, vector<16x128xf32> -> vector<16x128xf32>
    %c0_18 = arith.constant 0 : index
    %c0_19 = arith.constant 0 : index
    %31 = vector.load %arg7[%c0_18, %c0_19] : memref<16x1xf32, #tpu.memory_space<vmem>>, vector<16x1xf32>
    %32 = vector.broadcast %31 : vector<16x1xf32> to vector<16x128xf32>
    %33 = arith.addf %30, %32 : vector<16x128xf32>
    %34 = arith.addf %27, %33 : vector<16x128xf32>
    %cst_20 = arith.constant 0.000000e+00 : f32
    %35 = vector.broadcast %cst_20 : f32 to vector<16x128xf32>
    %36 = arith.cmpf oge, %34, %35 : vector<16x128xf32>
    %cst_21 = arith.constant 0.00999999977 : f32
    %37 = vector.broadcast %cst_21 : f32 to vector<16x128xf32>
    %38 = arith.mulf %37, %34 : vector<16x128xf32>
    %39 = arith.select %36, %34, %38 : vector<16x128xi1>, vector<16x128xf32>
    %c0_22 = arith.constant 0 : index
    %c0_23 = arith.constant 0 : index
    %40 = vector.load %arg8[%c0_22, %c0_23] : memref<16x128xf32, #tpu.memory_space<vmem>>, vector<16x128xf32>
    tpu.vector_store %arg8[%c0_22, %c0_23], %39 {strides = array<i32>} : memref<16x128xf32, #tpu.memory_space<vmem>>, vector<16x128xf32>,
    return
  }
  func.func @transform_0(%arg0: i32) -> (i32, i32) {
    %c0_i32 = arith.constant 0 : i32
    %c0_i32_0 = arith.constant 0 : i32
    %c0_i32_1 = arith.constant 0 : i32
    return %c0_i32, %c0_i32_0 : i32, i32
  }
  func.func @transform_1(%arg0: i32) -> (i32, i32) {
    %c0_i32 = arith.constant 0 : i32
    %c0_i32_0 = arith.constant 0 : i32
    %c0_i32_1 = arith.constant 0 : i32
    return %c0_i32, %c0_i32_0 : i32, i32
  }
  func.func @transform_2(%arg0: i32) -> (i32, i32) {
    %c0_i32 = arith.constant 0 : i32
    %c0_i32_0 = arith.constant 0 : i32
    %c0_i32_1 = arith.constant 0 : i32
    return %c0_i32, %c0_i32_0 : i32, i32
  }
  func.func @transform_3(%arg0: i32) -> (i32, i32) {
    %c0_i32 = arith.constant 0 : i32
    %c0_i32_0 = arith.constant 0 : i32
    %c0_i32_1 = arith.constant 0 : i32
    return %c0_i32, %c0_i32_0 : i32, i32
  }
  func.func @transform_4(%arg0: i32) -> (i32, i32) {
    %c0_i32 = arith.constant 0 : i32
    %c0_i32_0 = arith.constant 0 : i32
    %c0_i32_1 = arith.constant 0 : i32
    return %c0_i32, %c0_i32_0 : i32, i32
  }
  func.func @transform_5(%arg0: i32) -> (i32, i32) {
    %c0_i32 = arith.constant 0 : i32
    %c0_i32_0 = arith.constant 0 : i32
    %c0_i32_1 = arith.constant 0 : i32
    return %c0_i32, %c0_i32_0 : i32, i32
  }
  func.func @transform_6(%arg0: i32) -> (i32, i32) {
    %c0_i32 = arith.constant 0 : i32
    %c0_i32_0 = arith.constant 0 : i32
    %c0_i32_1 = arith.constant 0 : i32
    return %c0_i32, %c0_i32_0 : i32, i32
  }
  func.func @transform_7(%arg0: i32) -> (i32, i32) {
    %c0_i32 = arith.constant 0 : i32
    %c0_i32_0 = arith.constant 0 : i32
    %c0_i32_1 = arith.constant 0 : i32
    return %c0_i32, %c0_i32_0 : i32, i32
  }
}

module attributes {stable_mosaic.version = 11 : i64} {
  func.func @_conv_bn_res_act_kernel(%arg0: i32, %arg1: memref<144x128xbf16, #tpu.memory_space<vmem>>, %arg2: memref<16x144xbf16, #tpu.memory_space<vmem>>, %arg3: memref<16x1xf32, #tpu.memory_space<vmem>>, %arg4: memref<16x1xf32, #tpu.memory_space<vmem>>, %arg5: memref<16x128xf32, #tpu.memory_space<vmem>>, %arg6: memref<16x128xf32, #tpu.memory_space<vmem>>) attributes {dimension_semantics = [#tpu.dimension_semantics<arbitrary>], iteration_bounds = array<i64: 1>, scalar_prefetch = 0 : i64, scratch_operands = 0 : i64, tpu.core_type = #tpu.core_type<tc>, window_params = [{pipeline_mode = #tpu.pipeline_mode<synchronous>, transform_indices = @transform_0, window_bounds = array<i64: 144, 128>}, {pipeline_mode = #tpu.pipeline_mode<synchronous>, transform_indices = @transform_1, window_bounds = array<i64: 16, 144>}, {pipeline_mode = #tpu.pipeline_mode<synchronous>, transform_indices = @transform_2, window_bounds = array<i64: 16, 1>}, {pipeline_mode = #tpu.pipeline_mode<synchronous>, transform_indices = @transform_3, window_bounds = array<i64: 16, 1>}, {pipeline_mode = #tpu.pipeline_mode<synchronous>, transform_indices = @transform_4, window_bounds = array<i64: 16, 128>}, {pipeline_mode = #tpu.pipeline_mode<synchronous>, transform_indices = @transform_5, window_bounds = array<i64: 16, 128>}]} {
    %c0 = arith.constant 0 : index
    %c0_0 = arith.constant 0 : index
    %0 = vector.load %arg2[%c0, %c0_0] : memref<16x144xbf16, #tpu.memory_space<vmem>>, vector<16x144xbf16>
    %c0_1 = arith.constant 0 : index
    %c0_2 = arith.constant 0 : index
    %1 = vector.load %arg1[%c0_1, %c0_2] : memref<144x128xbf16, #tpu.memory_space<vmem>>, vector<144x128xbf16>
    %cst = arith.constant dense<0.000000e+00> : vector<16x128xf32>
    %2 = tpu.matmul %0, %1, %cst {dimension_numbers = #tpu.dot_dimension_numbers<[1], [0], [0], [1], [0, 0, 1, 1], [], []>} : vector<16x144xbf16>, vector<144x128xbf16>, vector<16x128xf32> -> vector<16x128xf32>
    %cst_3 = arith.constant dense<0.000000e+00> : vector<16xf32>
    %3 = vector.multi_reduction <add>, %2, %cst_3 [1] : vector<16x128xf32> to vector<16xf32>
    %4 = vector.shape_cast %3 : vector<16xf32> to vector<16x1xf32>
    %cst_4 = arith.constant 7.812500e-03 : f32
    %5 = vector.broadcast %cst_4 : f32 to vector<16x1xf32>
    %6 = arith.mulf %4, %5 : vector<16x1xf32>
    %7 = arith.mulf %2, %2 : vector<16x128xf32>
    %cst_5 = arith.constant dense<0.000000e+00> : vector<16xf32>
    %8 = vector.multi_reduction <add>, %7, %cst_5 [1] : vector<16x128xf32> to vector<16xf32>
    %9 = vector.shape_cast %8 : vector<16xf32> to vector<16x1xf32>
    %cst_6 = arith.constant 7.812500e-03 : f32
    %10 = vector.broadcast %cst_6 : f32 to vector<16x1xf32>
    %11 = arith.mulf %9, %10 : vector<16x1xf32>
    %12 = arith.mulf %6, %6 : vector<16x1xf32>
    %13 = arith.subf %11, %12 : vector<16x1xf32>
    %cst_7 = arith.constant 0.000000e+00 : f32
    %14 = vector.broadcast %cst_7 : f32 to vector<16x1xf32>
    %15 = arith.maximumf %13, %14 : vector<16x1xf32>
    %c0_8 = arith.constant 0 : index
    %c0_9 = arith.constant 0 : index
    %16 = vector.load %arg3[%c0_8, %c0_9] : memref<16x1xf32, #tpu.memory_space<vmem>>, vector<16x1xf32>
    %cst_10 = arith.constant 9.99999974E-6 : f32
    %17 = vector.broadcast %cst_10 : f32 to vector<16x1xf32>
    %18 = arith.addf %15, %17 : vector<16x1xf32>
    %19 = math.rsqrt %18 : vector<16x1xf32>
    %20 = arith.mulf %16, %19 : vector<16x1xf32>
    %c0_11 = arith.constant 0 : index
    %c0_12 = arith.constant 0 : index
    %21 = vector.load %arg4[%c0_11, %c0_12] : memref<16x1xf32, #tpu.memory_space<vmem>>, vector<16x1xf32>
    %22 = arith.mulf %6, %20 : vector<16x1xf32>
    %23 = arith.subf %21, %22 : vector<16x1xf32>
    %24 = vector.broadcast %20 : vector<16x1xf32> to vector<16x128xf32>
    %25 = arith.mulf %2, %24 : vector<16x128xf32>
    %26 = vector.broadcast %23 : vector<16x1xf32> to vector<16x128xf32>
    %27 = arith.addf %25, %26 : vector<16x128xf32>
    %c0_13 = arith.constant 0 : index
    %c0_14 = arith.constant 0 : index
    %28 = vector.load %arg5[%c0_13, %c0_14] : memref<16x128xf32, #tpu.memory_space<vmem>>, vector<16x128xf32>
    %29 = arith.addf %27, %28 : vector<16x128xf32>
    %cst_15 = arith.constant 0.000000e+00 : f32
    %30 = vector.broadcast %cst_15 : f32 to vector<16x128xf32>
    %31 = arith.cmpf oge, %29, %30 : vector<16x128xf32>
    %cst_16 = arith.constant 0.00999999977 : f32
    %32 = vector.broadcast %cst_16 : f32 to vector<16x128xf32>
    %33 = arith.mulf %32, %29 : vector<16x128xf32>
    %34 = arith.select %31, %29, %33 : vector<16x128xi1>, vector<16x128xf32>
    %c0_17 = arith.constant 0 : index
    %c0_18 = arith.constant 0 : index
    %35 = vector.load %arg6[%c0_17, %c0_18] : memref<16x128xf32, #tpu.memory_space<vmem>>, vector<16x128xf32>
    tpu.vector_store %arg6[%c0_17, %c0_18], %34 {strides = array<i32>} : memref<16x128xf32, #tpu.memory_space<vmem>>, vector<16x128xf32>,
    return
  }
  func.func @transform_0(%arg0: i32) -> (i32, i32) {
    %c0_i32 = arith.constant 0 : i32
    %c0_i32_0 = arith.constant 0 : i32
    %c0_i32_1 = arith.constant 0 : i32
    return %c0_i32, %c0_i32_0 : i32, i32
  }
  func.func @transform_1(%arg0: i32) -> (i32, i32) {
    %c0_i32 = arith.constant 0 : i32
    %c0_i32_0 = arith.constant 0 : i32
    %c0_i32_1 = arith.constant 0 : i32
    return %c0_i32, %c0_i32_0 : i32, i32
  }
  func.func @transform_2(%arg0: i32) -> (i32, i32) {
    %c0_i32 = arith.constant 0 : i32
    %c0_i32_0 = arith.constant 0 : i32
    %c0_i32_1 = arith.constant 0 : i32
    return %c0_i32, %c0_i32_0 : i32, i32
  }
  func.func @transform_3(%arg0: i32) -> (i32, i32) {
    %c0_i32 = arith.constant 0 : i32
    %c0_i32_0 = arith.constant 0 : i32
    %c0_i32_1 = arith.constant 0 : i32
    return %c0_i32, %c0_i32_0 : i32, i32
  }
  func.func @transform_4(%arg0: i32) -> (i32, i32) {
    %c0_i32 = arith.constant 0 : i32
    %c0_i32_0 = arith.constant 0 : i32
    %c0_i32_1 = arith.constant 0 : i32
    return %c0_i32, %c0_i32_0 : i32, i32
  }
  func.func @transform_5(%arg0: i32) -> (i32, i32) {
    %c0_i32 = arith.constant 0 : i32
    %c0_i32_0 = arith.constant 0 : i32
    %c0_i32_1 = arith.constant 0 : i32
    return %c0_i32, %c0_i32_0 : i32, i32
  }
}

module attributes {stable_mosaic.version = 11 : i64} {
  func.func @_gemm_bias_act_kernel(%arg0: i32, %arg1: memref<16x16xbf16, #tpu.memory_space<vmem>>, %arg2: memref<16x128xbf16, #tpu.memory_space<vmem>>, %arg3: memref<16x1xf32, #tpu.memory_space<vmem>>, %arg4: memref<16x128xf32, #tpu.memory_space<vmem>>) attributes {dimension_semantics = [#tpu.dimension_semantics<parallel>], iteration_bounds = array<i64: 1>, scalar_prefetch = 0 : i64, scratch_operands = 0 : i64, tpu.core_type = #tpu.core_type<tc>, window_params = [{pipeline_mode = #tpu.pipeline_mode<synchronous>, transform_indices = @transform_0, window_bounds = array<i64: 16, 16>}, {transform_indices = @transform_1, window_bounds = array<i64: 16, 128>}, {pipeline_mode = #tpu.pipeline_mode<synchronous>, transform_indices = @transform_2, window_bounds = array<i64: 16, 1>}, {transform_indices = @transform_3, window_bounds = array<i64: 16, 128>}]} {
    %c0 = arith.constant 0 : index
    %c0_0 = arith.constant 0 : index
    %0 = vector.load %arg1[%c0, %c0_0] : memref<16x16xbf16, #tpu.memory_space<vmem>>, vector<16x16xbf16>
    %c0_1 = arith.constant 0 : index
    %c0_2 = arith.constant 0 : index
    %1 = vector.load %arg2[%c0_1, %c0_2] : memref<16x128xbf16, #tpu.memory_space<vmem>>, vector<16x128xbf16>
    %cst = arith.constant dense<0.000000e+00> : vector<16x128xf32>
    %2 = tpu.matmul %0, %1, %cst {dimension_numbers = #tpu.dot_dimension_numbers<[1], [0], [0], [1], [0, 0, 1, 1], [], []>} : vector<16x16xbf16>, vector<16x128xbf16>, vector<16x128xf32> -> vector<16x128xf32>
    %c0_3 = arith.constant 0 : index
    %c0_4 = arith.constant 0 : index
    %3 = vector.load %arg3[%c0_3, %c0_4] : memref<16x1xf32, #tpu.memory_space<vmem>>, vector<16x1xf32>
    %4 = vector.broadcast %3 : vector<16x1xf32> to vector<16x128xf32>
    %5 = arith.addf %2, %4 : vector<16x128xf32>
    %cst_5 = arith.constant 0.000000e+00 : f32
    %6 = vector.broadcast %cst_5 : f32 to vector<16x128xf32>
    %7 = arith.cmpf oge, %5, %6 : vector<16x128xf32>
    %cst_6 = arith.constant 0.00999999977 : f32
    %8 = vector.broadcast %cst_6 : f32 to vector<16x128xf32>
    %9 = arith.mulf %8, %5 : vector<16x128xf32>
    %10 = arith.select %7, %5, %9 : vector<16x128xi1>, vector<16x128xf32>
    %c0_7 = arith.constant 0 : index
    %c0_8 = arith.constant 0 : index
    %11 = vector.load %arg4[%c0_7, %c0_8] : memref<16x128xf32, #tpu.memory_space<vmem>>, vector<16x128xf32>
    tpu.vector_store %arg4[%c0_7, %c0_8], %10 {strides = array<i32>} : memref<16x128xf32, #tpu.memory_space<vmem>>, vector<16x128xf32>,
    return
  }
  func.func @transform_0(%arg0: i32) -> (i32, i32) {
    %c0_i32 = arith.constant 0 : i32
    %c0_i32_0 = arith.constant 0 : i32
    %c0_i32_1 = arith.constant 0 : i32
    return %c0_i32, %c0_i32_0 : i32, i32
  }
  func.func @transform_1(%arg0: i32) -> (i32, i32) {
    %c0_i32 = arith.constant 0 : i32
    %c0_i32_0 = arith.constant 0 : i32
    return %c0_i32, %arg0 : i32, i32
  }
  func.func @transform_2(%arg0: i32) -> (i32, i32) {
    %c0_i32 = arith.constant 0 : i32
    %c0_i32_0 = arith.constant 0 : i32
    %c0_i32_1 = arith.constant 0 : i32
    return %c0_i32, %c0_i32_0 : i32, i32
  }
  func.func @transform_3(%arg0: i32) -> (i32, i32) {
    %c0_i32 = arith.constant 0 : i32
    %c0_i32_0 = arith.constant 0 : i32
    return %c0_i32, %arg0 : i32, i32
  }
}

module attributes {stable_mosaic.version = 11 : i64} {
  func.func @_conv_bn_res_act_kernel(%arg0: i32, %arg1: memref<288x128xbf16, #tpu.memory_space<vmem>>, %arg2: memref<8x288xbf16, #tpu.memory_space<vmem>>, %arg3: memref<8x1xf32, #tpu.memory_space<vmem>>, %arg4: memref<8x1xf32, #tpu.memory_space<vmem>>, %arg5: memref<8x128xf32, #tpu.memory_space<vmem>>) attributes {dimension_semantics = [#tpu.dimension_semantics<arbitrary>], iteration_bounds = array<i64: 1>, scalar_prefetch = 0 : i64, scratch_operands = 0 : i64, tpu.core_type = #tpu.core_type<tc>, window_params = [{pipeline_mode = #tpu.pipeline_mode<synchronous>, transform_indices = @transform_0, window_bounds = array<i64: 288, 128>}, {pipeline_mode = #tpu.pipeline_mode<synchronous>, transform_indices = @transform_1, window_bounds = array<i64: 8, 288>}, {pipeline_mode = #tpu.pipeline_mode<synchronous>, transform_indices = @transform_2, window_bounds = array<i64: 8, 1>}, {pipeline_mode = #tpu.pipeline_mode<synchronous>, transform_indices = @transform_3, window_bounds = array<i64: 8, 1>}, {pipeline_mode = #tpu.pipeline_mode<synchronous>, transform_indices = @transform_4, window_bounds = array<i64: 8, 128>}]} {
    %c0 = arith.constant 0 : index
    %c0_0 = arith.constant 0 : index
    %0 = vector.load %arg2[%c0, %c0_0] : memref<8x288xbf16, #tpu.memory_space<vmem>>, vector<8x288xbf16>
    %c0_1 = arith.constant 0 : index
    %c0_2 = arith.constant 0 : index
    %1 = vector.load %arg1[%c0_1, %c0_2] : memref<288x128xbf16, #tpu.memory_space<vmem>>, vector<288x128xbf16>
    %cst = arith.constant dense<0.000000e+00> : vector<8x128xf32>
    %2 = tpu.matmul %0, %1, %cst {dimension_numbers = #tpu.dot_dimension_numbers<[1], [0], [0], [1], [0, 0, 1, 1], [], []>} : vector<8x288xbf16>, vector<288x128xbf16>, vector<8x128xf32> -> vector<8x128xf32>
    %cst_3 = arith.constant dense<0.000000e+00> : vector<8xf32>
    %3 = vector.multi_reduction <add>, %2, %cst_3 [1] : vector<8x128xf32> to vector<8xf32>
    %4 = vector.shape_cast %3 : vector<8xf32> to vector<8x1xf32>
    %cst_4 = arith.constant 3.125000e-02 : f32
    %5 = vector.broadcast %cst_4 : f32 to vector<8x1xf32>
    %6 = arith.mulf %4, %5 : vector<8x1xf32>
    %7 = arith.mulf %2, %2 : vector<8x128xf32>
    %cst_5 = arith.constant dense<0.000000e+00> : vector<8xf32>
    %8 = vector.multi_reduction <add>, %7, %cst_5 [1] : vector<8x128xf32> to vector<8xf32>
    %9 = vector.shape_cast %8 : vector<8xf32> to vector<8x1xf32>
    %cst_6 = arith.constant 3.125000e-02 : f32
    %10 = vector.broadcast %cst_6 : f32 to vector<8x1xf32>
    %11 = arith.mulf %9, %10 : vector<8x1xf32>
    %12 = arith.mulf %6, %6 : vector<8x1xf32>
    %13 = arith.subf %11, %12 : vector<8x1xf32>
    %cst_7 = arith.constant 0.000000e+00 : f32
    %14 = vector.broadcast %cst_7 : f32 to vector<8x1xf32>
    %15 = arith.maximumf %13, %14 : vector<8x1xf32>
    %c0_8 = arith.constant 0 : index
    %c0_9 = arith.constant 0 : index
    %16 = vector.load %arg3[%c0_8, %c0_9] : memref<8x1xf32, #tpu.memory_space<vmem>>, vector<8x1xf32>
    %cst_10 = arith.constant 9.99999974E-6 : f32
    %17 = vector.broadcast %cst_10 : f32 to vector<8x1xf32>
    %18 = arith.addf %15, %17 : vector<8x1xf32>
    %19 = math.rsqrt %18 : vector<8x1xf32>
    %20 = arith.mulf %16, %19 : vector<8x1xf32>
    %c0_11 = arith.constant 0 : index
    %c0_12 = arith.constant 0 : index
    %21 = vector.load %arg4[%c0_11, %c0_12] : memref<8x1xf32, #tpu.memory_space<vmem>>, vector<8x1xf32>
    %22 = arith.mulf %6, %20 : vector<8x1xf32>
    %23 = arith.subf %21, %22 : vector<8x1xf32>
    %24 = vector.broadcast %20 : vector<8x1xf32> to vector<8x128xf32>
    %25 = arith.mulf %2, %24 : vector<8x128xf32>
    %26 = vector.broadcast %23 : vector<8x1xf32> to vector<8x128xf32>
    %27 = arith.addf %25, %26 : vector<8x128xf32>
    %cst_13 = arith.constant 0.000000e+00 : f32
    %28 = vector.broadcast %cst_13 : f32 to vector<8x128xf32>
    %29 = arith.cmpf oge, %27, %28 : vector<8x128xf32>
    %cst_14 = arith.constant 0.00999999977 : f32
    %30 = vector.broadcast %cst_14 : f32 to vector<8x128xf32>
    %31 = arith.mulf %30, %27 : vector<8x128xf32>
    %32 = arith.select %29, %27, %31 : vector<8x128xi1>, vector<8x128xf32>
    %c0_15 = arith.constant 0 : index
    %c0_16 = arith.constant 0 : index
    %33 = vector.load %arg5[%c0_15, %c0_16] : memref<8x128xf32, #tpu.memory_space<vmem>>, vector<8x128xf32>
    tpu.vector_store %arg5[%c0_15, %c0_16], %32 {strides = array<i32>} : memref<8x128xf32, #tpu.memory_space<vmem>>, vector<8x128xf32>,
    return
  }
  func.func @transform_0(%arg0: i32) -> (i32, i32) {
    %c0_i32 = arith.constant 0 : i32
    %c0_i32_0 = arith.constant 0 : i32
    %c0_i32_1 = arith.constant 0 : i32
    return %c0_i32, %c0_i32_0 : i32, i32
  }
  func.func @transform_1(%arg0: i32) -> (i32, i32) {
    %c0_i32 = arith.constant 0 : i32
    %c0_i32_0 = arith.constant 0 : i32
    %c0_i32_1 = arith.constant 0 : i32
    return %c0_i32, %c0_i32_0 : i32, i32
  }
  func.func @transform_2(%arg0: i32) -> (i32, i32) {
    %c0_i32 = arith.constant 0 : i32
    %c0_i32_0 = arith.constant 0 : i32
    %c0_i32_1 = arith.constant 0 : i32
    return %c0_i32, %c0_i32_0 : i32, i32
  }
  func.func @transform_3(%arg0: i32) -> (i32, i32) {
    %c0_i32 = arith.constant 0 : i32
    %c0_i32_0 = arith.constant 0 : i32
    %c0_i32_1 = arith.constant 0 : i32
    return %c0_i32, %c0_i32_0 : i32, i32
  }
  func.func @transform_4(%arg0: i32) -> (i32, i32) {
    %c0_i32 = arith.constant 0 : i32
    %c0_i32_0 = arith.constant 0 : i32
    %c0_i32_1 = arith.constant 0 : i32
    return %c0_i32, %c0_i32_0 : i32, i32
  }
}

module attributes {stable_mosaic.version = 11 : i64} {
  func.func @_conv_bn_res_act_kernel(%arg0: i32, %arg1: memref<72x128xbf16, #tpu.memory_space<vmem>>, %arg2: memref<8x72xbf16, #tpu.memory_space<vmem>>, %arg3: memref<8x1xf32, #tpu.memory_space<vmem>>, %arg4: memref<8x1xf32, #tpu.memory_space<vmem>>, %arg5: memref<8x128xf32, #tpu.memory_space<vmem>>) attributes {dimension_semantics = [#tpu.dimension_semantics<arbitrary>], iteration_bounds = array<i64: 1>, scalar_prefetch = 0 : i64, scratch_operands = 0 : i64, tpu.core_type = #tpu.core_type<tc>, window_params = [{pipeline_mode = #tpu.pipeline_mode<synchronous>, transform_indices = @transform_0, window_bounds = array<i64: 72, 128>}, {pipeline_mode = #tpu.pipeline_mode<synchronous>, transform_indices = @transform_1, window_bounds = array<i64: 8, 72>}, {pipeline_mode = #tpu.pipeline_mode<synchronous>, transform_indices = @transform_2, window_bounds = array<i64: 8, 1>}, {pipeline_mode = #tpu.pipeline_mode<synchronous>, transform_indices = @transform_3, window_bounds = array<i64: 8, 1>}, {pipeline_mode = #tpu.pipeline_mode<synchronous>, transform_indices = @transform_4, window_bounds = array<i64: 8, 128>}]} {
    %c0 = arith.constant 0 : index
    %c0_0 = arith.constant 0 : index
    %0 = vector.load %arg2[%c0, %c0_0] : memref<8x72xbf16, #tpu.memory_space<vmem>>, vector<8x72xbf16>
    %c0_1 = arith.constant 0 : index
    %c0_2 = arith.constant 0 : index
    %1 = vector.load %arg1[%c0_1, %c0_2] : memref<72x128xbf16, #tpu.memory_space<vmem>>, vector<72x128xbf16>
    %cst = arith.constant dense<0.000000e+00> : vector<8x128xf32>
    %2 = tpu.matmul %0, %1, %cst {dimension_numbers = #tpu.dot_dimension_numbers<[1], [0], [0], [1], [0, 0, 1, 1], [], []>} : vector<8x72xbf16>, vector<72x128xbf16>, vector<8x128xf32> -> vector<8x128xf32>
    %cst_3 = arith.constant dense<0.000000e+00> : vector<8xf32>
    %3 = vector.multi_reduction <add>, %2, %cst_3 [1] : vector<8x128xf32> to vector<8xf32>
    %4 = vector.shape_cast %3 : vector<8xf32> to vector<8x1xf32>
    %cst_4 = arith.constant 3.125000e-02 : f32
    %5 = vector.broadcast %cst_4 : f32 to vector<8x1xf32>
    %6 = arith.mulf %4, %5 : vector<8x1xf32>
    %7 = arith.mulf %2, %2 : vector<8x128xf32>
    %cst_5 = arith.constant dense<0.000000e+00> : vector<8xf32>
    %8 = vector.multi_reduction <add>, %7, %cst_5 [1] : vector<8x128xf32> to vector<8xf32>
    %9 = vector.shape_cast %8 : vector<8xf32> to vector<8x1xf32>
    %cst_6 = arith.constant 3.125000e-02 : f32
    %10 = vector.broadcast %cst_6 : f32 to vector<8x1xf32>
    %11 = arith.mulf %9, %10 : vector<8x1xf32>
    %12 = arith.mulf %6, %6 : vector<8x1xf32>
    %13 = arith.subf %11, %12 : vector<8x1xf32>
    %cst_7 = arith.constant 0.000000e+00 : f32
    %14 = vector.broadcast %cst_7 : f32 to vector<8x1xf32>
    %15 = arith.maximumf %13, %14 : vector<8x1xf32>
    %c0_8 = arith.constant 0 : index
    %c0_9 = arith.constant 0 : index
    %16 = vector.load %arg3[%c0_8, %c0_9] : memref<8x1xf32, #tpu.memory_space<vmem>>, vector<8x1xf32>
    %cst_10 = arith.constant 9.99999974E-6 : f32
    %17 = vector.broadcast %cst_10 : f32 to vector<8x1xf32>
    %18 = arith.addf %15, %17 : vector<8x1xf32>
    %19 = math.rsqrt %18 : vector<8x1xf32>
    %20 = arith.mulf %16, %19 : vector<8x1xf32>
    %c0_11 = arith.constant 0 : index
    %c0_12 = arith.constant 0 : index
    %21 = vector.load %arg4[%c0_11, %c0_12] : memref<8x1xf32, #tpu.memory_space<vmem>>, vector<8x1xf32>
    %22 = arith.mulf %6, %20 : vector<8x1xf32>
    %23 = arith.subf %21, %22 : vector<8x1xf32>
    %24 = vector.broadcast %20 : vector<8x1xf32> to vector<8x128xf32>
    %25 = arith.mulf %2, %24 : vector<8x128xf32>
    %26 = vector.broadcast %23 : vector<8x1xf32> to vector<8x128xf32>
    %27 = arith.addf %25, %26 : vector<8x128xf32>
    %cst_13 = arith.constant 0.000000e+00 : f32
    %28 = vector.broadcast %cst_13 : f32 to vector<8x128xf32>
    %29 = arith.cmpf oge, %27, %28 : vector<8x128xf32>
    %cst_14 = arith.constant 0.00999999977 : f32
    %30 = vector.broadcast %cst_14 : f32 to vector<8x128xf32>
    %31 = arith.mulf %30, %27 : vector<8x128xf32>
    %32 = arith.select %29, %27, %31 : vector<8x128xi1>, vector<8x128xf32>
    %c0_15 = arith.constant 0 : index
    %c0_16 = arith.constant 0 : index
    %33 = vector.load %arg5[%c0_15, %c0_16] : memref<8x128xf32, #tpu.memory_space<vmem>>, vector<8x128xf32>
    tpu.vector_store %arg5[%c0_15, %c0_16], %32 {strides = array<i32>} : memref<8x128xf32, #tpu.memory_space<vmem>>, vector<8x128xf32>,
    return
  }
  func.func @transform_0(%arg0: i32) -> (i32, i32) {
    %c0_i32 = arith.constant 0 : i32
    %c0_i32_0 = arith.constant 0 : i32
    %c0_i32_1 = arith.constant 0 : i32
    return %c0_i32, %c0_i32_0 : i32, i32
  }
  func.func @transform_1(%arg0: i32) -> (i32, i32) {
    %c0_i32 = arith.constant 0 : i32
    %c0_i32_0 = arith.constant 0 : i32
    %c0_i32_1 = arith.constant 0 : i32
    return %c0_i32, %c0_i32_0 : i32, i32
  }
  func.func @transform_2(%arg0: i32) -> (i32, i32) {
    %c0_i32 = arith.constant 0 : i32
    %c0_i32_0 = arith.constant 0 : i32
    %c0_i32_1 = arith.constant 0 : i32
    return %c0_i32, %c0_i32_0 : i32, i32
  }
  func.func @transform_3(%arg0: i32) -> (i32, i32) {
    %c0_i32 = arith.constant 0 : i32
    %c0_i32_0 = arith.constant 0 : i32
    %c0_i32_1 = arith.constant 0 : i32
    return %c0_i32, %c0_i32_0 : i32, i32
  }
  func.func @transform_4(%arg0: i32) -> (i32, i32) {
    %c0_i32 = arith.constant 0 : i32
    %c0_i32_0 = arith.constant 0 : i32
    %c0_i32_1 = arith.constant 0 : i32
    return %c0_i32, %c0_i32_0 : i32, i32
  }
}

module attributes {stable_mosaic.version = 11 : i64} {
  func.func @_conv_bn_res_act_kernel(%arg0: i32, %arg1: memref<72x128xbf16, #tpu.memory_space<vmem>>, %arg2: memref<8x72xbf16, #tpu.memory_space<vmem>>, %arg3: memref<8x1xf32, #tpu.memory_space<vmem>>, %arg4: memref<8x1xf32, #tpu.memory_space<vmem>>, %arg5: memref<8x128xf32, #tpu.memory_space<vmem>>, %arg6: memref<8x128xf32, #tpu.memory_space<vmem>>) attributes {dimension_semantics = [#tpu.dimension_semantics<arbitrary>], iteration_bounds = array<i64: 1>, scalar_prefetch = 0 : i64, scratch_operands = 0 : i64, tpu.core_type = #tpu.core_type<tc>, window_params = [{pipeline_mode = #tpu.pipeline_mode<synchronous>, transform_indices = @transform_0, window_bounds = array<i64: 72, 128>}, {pipeline_mode = #tpu.pipeline_mode<synchronous>, transform_indices = @transform_1, window_bounds = array<i64: 8, 72>}, {pipeline_mode = #tpu.pipeline_mode<synchronous>, transform_indices = @transform_2, window_bounds = array<i64: 8, 1>}, {pipeline_mode = #tpu.pipeline_mode<synchronous>, transform_indices = @transform_3, window_bounds = array<i64: 8, 1>}, {pipeline_mode = #tpu.pipeline_mode<synchronous>, transform_indices = @transform_4, window_bounds = array<i64: 8, 128>}, {pipeline_mode = #tpu.pipeline_mode<synchronous>, transform_indices = @transform_5, window_bounds = array<i64: 8, 128>}]} {
    %c0 = arith.constant 0 : index
    %c0_0 = arith.constant 0 : index
    %0 = vector.load %arg2[%c0, %c0_0] : memref<8x72xbf16, #tpu.memory_space<vmem>>, vector<8x72xbf16>
    %c0_1 = arith.constant 0 : index
    %c0_2 = arith.constant 0 : index
    %1 = vector.load %arg1[%c0_1, %c0_2] : memref<72x128xbf16, #tpu.memory_space<vmem>>, vector<72x128xbf16>
    %cst = arith.constant dense<0.000000e+00> : vector<8x128xf32>
    %2 = tpu.matmul %0, %1, %cst {dimension_numbers = #tpu.dot_dimension_numbers<[1], [0], [0], [1], [0, 0, 1, 1], [], []>} : vector<8x72xbf16>, vector<72x128xbf16>, vector<8x128xf32> -> vector<8x128xf32>
    %cst_3 = arith.constant dense<0.000000e+00> : vector<8xf32>
    %3 = vector.multi_reduction <add>, %2, %cst_3 [1] : vector<8x128xf32> to vector<8xf32>
    %4 = vector.shape_cast %3 : vector<8xf32> to vector<8x1xf32>
    %cst_4 = arith.constant 3.125000e-02 : f32
    %5 = vector.broadcast %cst_4 : f32 to vector<8x1xf32>
    %6 = arith.mulf %4, %5 : vector<8x1xf32>
    %7 = arith.mulf %2, %2 : vector<8x128xf32>
    %cst_5 = arith.constant dense<0.000000e+00> : vector<8xf32>
    %8 = vector.multi_reduction <add>, %7, %cst_5 [1] : vector<8x128xf32> to vector<8xf32>
    %9 = vector.shape_cast %8 : vector<8xf32> to vector<8x1xf32>
    %cst_6 = arith.constant 3.125000e-02 : f32
    %10 = vector.broadcast %cst_6 : f32 to vector<8x1xf32>
    %11 = arith.mulf %9, %10 : vector<8x1xf32>
    %12 = arith.mulf %6, %6 : vector<8x1xf32>
    %13 = arith.subf %11, %12 : vector<8x1xf32>
    %cst_7 = arith.constant 0.000000e+00 : f32
    %14 = vector.broadcast %cst_7 : f32 to vector<8x1xf32>
    %15 = arith.maximumf %13, %14 : vector<8x1xf32>
    %c0_8 = arith.constant 0 : index
    %c0_9 = arith.constant 0 : index
    %16 = vector.load %arg3[%c0_8, %c0_9] : memref<8x1xf32, #tpu.memory_space<vmem>>, vector<8x1xf32>
    %cst_10 = arith.constant 9.99999974E-6 : f32
    %17 = vector.broadcast %cst_10 : f32 to vector<8x1xf32>
    %18 = arith.addf %15, %17 : vector<8x1xf32>
    %19 = math.rsqrt %18 : vector<8x1xf32>
    %20 = arith.mulf %16, %19 : vector<8x1xf32>
    %c0_11 = arith.constant 0 : index
    %c0_12 = arith.constant 0 : index
    %21 = vector.load %arg4[%c0_11, %c0_12] : memref<8x1xf32, #tpu.memory_space<vmem>>, vector<8x1xf32>
    %22 = arith.mulf %6, %20 : vector<8x1xf32>
    %23 = arith.subf %21, %22 : vector<8x1xf32>
    %24 = vector.broadcast %20 : vector<8x1xf32> to vector<8x128xf32>
    %25 = arith.mulf %2, %24 : vector<8x128xf32>
    %26 = vector.broadcast %23 : vector<8x1xf32> to vector<8x128xf32>
    %27 = arith.addf %25, %26 : vector<8x128xf32>
    %c0_13 = arith.constant 0 : index
    %c0_14 = arith.constant 0 : index
    %28 = vector.load %arg5[%c0_13, %c0_14] : memref<8x128xf32, #tpu.memory_space<vmem>>, vector<8x128xf32>
    %29 = arith.addf %27, %28 : vector<8x128xf32>
    %cst_15 = arith.constant 0.000000e+00 : f32
    %30 = vector.broadcast %cst_15 : f32 to vector<8x128xf32>
    %31 = arith.cmpf oge, %29, %30 : vector<8x128xf32>
    %cst_16 = arith.constant 0.00999999977 : f32
    %32 = vector.broadcast %cst_16 : f32 to vector<8x128xf32>
    %33 = arith.mulf %32, %29 : vector<8x128xf32>
    %34 = arith.select %31, %29, %33 : vector<8x128xi1>, vector<8x128xf32>
    %c0_17 = arith.constant 0 : index
    %c0_18 = arith.constant 0 : index
    %35 = vector.load %arg6[%c0_17, %c0_18] : memref<8x128xf32, #tpu.memory_space<vmem>>, vector<8x128xf32>
    tpu.vector_store %arg6[%c0_17, %c0_18], %34 {strides = array<i32>} : memref<8x128xf32, #tpu.memory_space<vmem>>, vector<8x128xf32>,
    return
  }
  func.func @transform_0(%arg0: i32) -> (i32, i32) {
    %c0_i32 = arith.constant 0 : i32
    %c0_i32_0 = arith.constant 0 : i32
    %c0_i32_1 = arith.constant 0 : i32
    return %c0_i32, %c0_i32_0 : i32, i32
  }
  func.func @transform_1(%arg0: i32) -> (i32, i32) {
    %c0_i32 = arith.constant 0 : i32
    %c0_i32_0 = arith.constant 0 : i32
    %c0_i32_1 = arith.constant 0 : i32
    return %c0_i32, %c0_i32_0 : i32, i32
  }
  func.func @transform_2(%arg0: i32) -> (i32, i32) {
    %c0_i32 = arith.constant 0 : i32
    %c0_i32_0 = arith.constant 0 : i32
    %c0_i32_1 = arith.constant 0 : i32
    return %c0_i32, %c0_i32_0 : i32, i32
  }
  func.func @transform_3(%arg0: i32) -> (i32, i32) {
    %c0_i32 = arith.constant 0 : i32
    %c0_i32_0 = arith.constant 0 : i32
    %c0_i32_1 = arith.constant 0 : i32
    return %c0_i32, %c0_i32_0 : i32, i32
  }
  func.func @transform_4(%arg0: i32) -> (i32, i32) {
    %c0_i32 = arith.constant 0 : i32
    %c0_i32_0 = arith.constant 0 : i32
    %c0_i32_1 = arith.constant 0 : i32
    return %c0_i32, %c0_i32_0 : i32, i32
  }
  func.func @transform_5(%arg0: i32) -> (i32, i32) {
    %c0_i32 = arith.constant 0 : i32
    %c0_i32_0 = arith.constant 0 : i32
    %c0_i32_1 = arith.constant 0 : i32
    return %c0_i32, %c0_i32_0 : i32, i32
  }
}

module attributes {stable_mosaic.version = 11 : i64} {
  func.func @_conv_bn_res_act_kernel(%arg0: i32, %arg1: memref<72x128xbf16, #tpu.memory_space<vmem>>, %arg2: memref<8x72xbf16, #tpu.memory_space<vmem>>, %arg3: memref<8x1xf32, #tpu.memory_space<vmem>>, %arg4: memref<8x1xf32, #tpu.memory_space<vmem>>, %arg5: memref<32x128xf32, #tpu.memory_space<vmem>>, %arg6: memref<8x32xf32, #tpu.memory_space<vmem>>, %arg7: memref<8x1xf32, #tpu.memory_space<vmem>>, %arg8: memref<8x128xf32, #tpu.memory_space<vmem>>) attributes {dimension_semantics = [#tpu.dimension_semantics<arbitrary>], iteration_bounds = array<i64: 1>, scalar_prefetch = 0 : i64, scratch_operands = 0 : i64, tpu.core_type = #tpu.core_type<tc>, window_params = [{pipeline_mode = #tpu.pipeline_mode<synchronous>, transform_indices = @transform_0, window_bounds = array<i64: 72, 128>}, {pipeline_mode = #tpu.pipeline_mode<synchronous>, transform_indices = @transform_1, window_bounds = array<i64: 8, 72>}, {pipeline_mode = #tpu.pipeline_mode<synchronous>, transform_indices = @transform_2, window_bounds = array<i64: 8, 1>}, {pipeline_mode = #tpu.pipeline_mode<synchronous>, transform_indices = @transform_3, window_bounds = array<i64: 8, 1>}, {pipeline_mode = #tpu.pipeline_mode<synchronous>, transform_indices = @transform_4, window_bounds = array<i64: 32, 128>}, {pipeline_mode = #tpu.pipeline_mode<synchronous>, transform_indices = @transform_5, window_bounds = array<i64: 8, 32>}, {pipeline_mode = #tpu.pipeline_mode<synchronous>, transform_indices = @transform_6, window_bounds = array<i64: 8, 1>}, {pipeline_mode = #tpu.pipeline_mode<synchronous>, transform_indices = @transform_7, window_bounds = array<i64: 8, 128>}]} {
    %c0 = arith.constant 0 : index
    %c0_0 = arith.constant 0 : index
    %0 = vector.load %arg2[%c0, %c0_0] : memref<8x72xbf16, #tpu.memory_space<vmem>>, vector<8x72xbf16>
    %c0_1 = arith.constant 0 : index
    %c0_2 = arith.constant 0 : index
    %1 = vector.load %arg1[%c0_1, %c0_2] : memref<72x128xbf16, #tpu.memory_space<vmem>>, vector<72x128xbf16>
    %cst = arith.constant dense<0.000000e+00> : vector<8x128xf32>
    %2 = tpu.matmul %0, %1, %cst {dimension_numbers = #tpu.dot_dimension_numbers<[1], [0], [0], [1], [0, 0, 1, 1], [], []>} : vector<8x72xbf16>, vector<72x128xbf16>, vector<8x128xf32> -> vector<8x128xf32>
    %cst_3 = arith.constant dense<0.000000e+00> : vector<8xf32>
    %3 = vector.multi_reduction <add>, %2, %cst_3 [1] : vector<8x128xf32> to vector<8xf32>
    %4 = vector.shape_cast %3 : vector<8xf32> to vector<8x1xf32>
    %cst_4 = arith.constant 3.125000e-02 : f32
    %5 = vector.broadcast %cst_4 : f32 to vector<8x1xf32>
    %6 = arith.mulf %4, %5 : vector<8x1xf32>
    %7 = arith.mulf %2, %2 : vector<8x128xf32>
    %cst_5 = arith.constant dense<0.000000e+00> : vector<8xf32>
    %8 = vector.multi_reduction <add>, %7, %cst_5 [1] : vector<8x128xf32> to vector<8xf32>
    %9 = vector.shape_cast %8 : vector<8xf32> to vector<8x1xf32>
    %cst_6 = arith.constant 3.125000e-02 : f32
    %10 = vector.broadcast %cst_6 : f32 to vector<8x1xf32>
    %11 = arith.mulf %9, %10 : vector<8x1xf32>
    %12 = arith.mulf %6, %6 : vector<8x1xf32>
    %13 = arith.subf %11, %12 : vector<8x1xf32>
    %cst_7 = arith.constant 0.000000e+00 : f32
    %14 = vector.broadcast %cst_7 : f32 to vector<8x1xf32>
    %15 = arith.maximumf %13, %14 : vector<8x1xf32>
    %c0_8 = arith.constant 0 : index
    %c0_9 = arith.constant 0 : index
    %16 = vector.load %arg3[%c0_8, %c0_9] : memref<8x1xf32, #tpu.memory_space<vmem>>, vector<8x1xf32>
    %cst_10 = arith.constant 9.99999974E-6 : f32
    %17 = vector.broadcast %cst_10 : f32 to vector<8x1xf32>
    %18 = arith.addf %15, %17 : vector<8x1xf32>
    %19 = math.rsqrt %18 : vector<8x1xf32>
    %20 = arith.mulf %16, %19 : vector<8x1xf32>
    %c0_11 = arith.constant 0 : index
    %c0_12 = arith.constant 0 : index
    %21 = vector.load %arg4[%c0_11, %c0_12] : memref<8x1xf32, #tpu.memory_space<vmem>>, vector<8x1xf32>
    %22 = arith.mulf %6, %20 : vector<8x1xf32>
    %23 = arith.subf %21, %22 : vector<8x1xf32>
    %24 = vector.broadcast %20 : vector<8x1xf32> to vector<8x128xf32>
    %25 = arith.mulf %2, %24 : vector<8x128xf32>
    %26 = vector.broadcast %23 : vector<8x1xf32> to vector<8x128xf32>
    %27 = arith.addf %25, %26 : vector<8x128xf32>
    %c0_13 = arith.constant 0 : index
    %c0_14 = arith.constant 0 : index
    %28 = vector.load %arg6[%c0_13, %c0_14] : memref<8x32xf32, #tpu.memory_space<vmem>>, vector<8x32xf32>
    %c0_15 = arith.constant 0 : index
    %c0_16 = arith.constant 0 : index
    %29 = vector.load %arg5[%c0_15, %c0_16] : memref<32x128xf32, #tpu.memory_space<vmem>>, vector<32x128xf32>
    %cst_17 = arith.constant dense<0.000000e+00> : vector<8x128xf32>
    %30 = tpu.matmul %28, %29, %cst_17 {dimension_numbers = #tpu.dot_dimension_numbers<[1], [0], [0], [1], [0, 0, 1, 1], [], []>} : vector<8x32xf32>, vector<32x128xf32>, vector<8x128xf32> -> vector<8x128xf32>
    %c0_18 = arith.constant 0 : index
    %c0_19 = arith.constant 0 : index
    %31 = vector.load %arg7[%c0_18, %c0_19] : memref<8x1xf32, #tpu.memory_space<vmem>>, vector<8x1xf32>
    %32 = vector.broadcast %31 : vector<8x1xf32> to vector<8x128xf32>
    %33 = arith.addf %30, %32 : vector<8x128xf32>
    %34 = arith.addf %27, %33 : vector<8x128xf32>
    %cst_20 = arith.constant 0.000000e+00 : f32
    %35 = vector.broadcast %cst_20 : f32 to vector<8x128xf32>
    %36 = arith.cmpf oge, %34, %35 : vector<8x128xf32>
    %cst_21 = arith.constant 0.00999999977 : f32
    %37 = vector.broadcast %cst_21 : f32 to vector<8x128xf32>
    %38 = arith.mulf %37, %34 : vector<8x128xf32>
    %39 = arith.select %36, %34, %38 : vector<8x128xi1>, vector<8x128xf32>
    %c0_22 = arith.constant 0 : index
    %c0_23 = arith.constant 0 : index
    %40 = vector.load %arg8[%c0_22, %c0_23] : memref<8x128xf32, #tpu.memory_space<vmem>>, vector<8x128xf32>
    tpu.vector_store %arg8[%c0_22, %c0_23], %39 {strides = array<i32>} : memref<8x128xf32, #tpu.memory_space<vmem>>, vector<8x128xf32>,
    return
  }
  func.func @transform_0(%arg0: i32) -> (i32, i32) {
    %c0_i32 = arith.constant 0 : i32
    %c0_i32_0 = arith.constant 0 : i32
    %c0_i32_1 = arith.constant 0 : i32
    return %c0_i32, %c0_i32_0 : i32, i32
  }
  func.func @transform_1(%arg0: i32) -> (i32, i32) {
    %c0_i32 = arith.constant 0 : i32
    %c0_i32_0 = arith.constant 0 : i32
    %c0_i32_1 = arith.constant 0 : i32
    return %c0_i32, %c0_i32_0 : i32, i32
  }
  func.func @transform_2(%arg0: i32) -> (i32, i32) {
    %c0_i32 = arith.constant 0 : i32
    %c0_i32_0 = arith.constant 0 : i32
    %c0_i32_1 = arith.constant 0 : i32
    return %c0_i32, %c0_i32_0 : i32, i32
  }
  func.func @transform_3(%arg0: i32) -> (i32, i32) {
    %c0_i32 = arith.constant 0 : i32
    %c0_i32_0 = arith.constant 0 : i32
    %c0_i32_1 = arith.constant 0 : i32
    return %c0_i32, %c0_i32_0 : i32, i32
  }
  func.func @transform_4(%arg0: i32) -> (i32, i32) {
    %c0_i32 = arith.constant 0 : i32
    %c0_i32_0 = arith.constant 0 : i32
    %c0_i32_1 = arith.constant 0 : i32
    return %c0_i32, %c0_i32_0 : i32, i32
  }
  func.func @transform_5(%arg0: i32) -> (i32, i32) {
    %c0_i32 = arith.constant 0 : i32
    %c0_i32_0 = arith.constant 0 : i32
    %c0_i32_1 = arith.constant 0 : i32
    return %c0_i32, %c0_i32_0 : i32, i32
  }
  func.func @transform_6(%arg0: i32) -> (i32, i32) {
    %c0_i32 = arith.constant 0 : i32
    %c0_i32_0 = arith.constant 0 : i32
    %c0_i32_1 = arith.constant 0 : i32
    return %c0_i32, %c0_i32_0 : i32, i32
  }
  func.func @transform_7(%arg0: i32) -> (i32, i32) {
    %c0_i32 = arith.constant 0 : i32
    %c0_i32_0 = arith.constant 0 : i32
    %c0_i32_1 = arith.constant 0 : i32
    return %c0_i32, %c0_i32_0 : i32, i32
  }
}

module attributes {stable_mosaic.version = 11 : i64} {
  func.func @_gemm_bias_act_kernel(%arg0: i32, %arg1: memref<32x8xbf16, #tpu.memory_space<vmem>>, %arg2: memref<8x128xbf16, #tpu.memory_space<vmem>>, %arg3: memref<32x1xf32, #tpu.memory_space<vmem>>, %arg4: memref<32x128xf32, #tpu.memory_space<vmem>>) attributes {dimension_semantics = [#tpu.dimension_semantics<parallel>], iteration_bounds = array<i64: 1>, scalar_prefetch = 0 : i64, scratch_operands = 0 : i64, tpu.core_type = #tpu.core_type<tc>, window_params = [{pipeline_mode = #tpu.pipeline_mode<synchronous>, transform_indices = @transform_0, window_bounds = array<i64: 32, 8>}, {transform_indices = @transform_1, window_bounds = array<i64: 8, 128>}, {pipeline_mode = #tpu.pipeline_mode<synchronous>, transform_indices = @transform_2, window_bounds = array<i64: 32, 1>}, {transform_indices = @transform_3, window_bounds = array<i64: 32, 128>}]} {
    %c0 = arith.constant 0 : index
    %c0_0 = arith.constant 0 : index
    %0 = vector.load %arg1[%c0, %c0_0] : memref<32x8xbf16, #tpu.memory_space<vmem>>, vector<32x8xbf16>
    %c0_1 = arith.constant 0 : index
    %c0_2 = arith.constant 0 : index
    %1 = vector.load %arg2[%c0_1, %c0_2] : memref<8x128xbf16, #tpu.memory_space<vmem>>, vector<8x128xbf16>
    %cst = arith.constant dense<0.000000e+00> : vector<32x128xf32>
    %2 = tpu.matmul %0, %1, %cst {dimension_numbers = #tpu.dot_dimension_numbers<[1], [0], [0], [1], [0, 0, 1, 1], [], []>} : vector<32x8xbf16>, vector<8x128xbf16>, vector<32x128xf32> -> vector<32x128xf32>
    %c0_3 = arith.constant 0 : index
    %c0_4 = arith.constant 0 : index
    %3 = vector.load %arg3[%c0_3, %c0_4] : memref<32x1xf32, #tpu.memory_space<vmem>>, vector<32x1xf32>
    %4 = vector.broadcast %3 : vector<32x1xf32> to vector<32x128xf32>
    %5 = arith.addf %2, %4 : vector<32x128xf32>
    %cst_5 = arith.constant 0.000000e+00 : f32
    %6 = vector.broadcast %cst_5 : f32 to vector<32x128xf32>
    %7 = arith.cmpf oge, %5, %6 : vector<32x128xf32>
    %cst_6 = arith.constant 0.00999999977 : f32
    %8 = vector.broadcast %cst_6 : f32 to vector<32x128xf32>
    %9 = arith.mulf %8, %5 : vector<32x128xf32>
    %10 = arith.select %7, %5, %9 : vector<32x128xi1>, vector<32x128xf32>
    %c0_7 = arith.constant 0 : index
    %c0_8 = arith.constant 0 : index
    %11 = vector.load %arg4[%c0_7, %c0_8] : memref<32x128xf32, #tpu.memory_space<vmem>>, vector<32x128xf32>
    tpu.vector_store %arg4[%c0_7, %c0_8], %10 {strides = array<i32>} : memref<32x128xf32, #tpu.memory_space<vmem>>, vector<32x128xf32>,
    return
  }
  func.func @transform_0(%arg0: i32) -> (i32, i32) {
    %c0_i32 = arith.constant 0 : i32
    %c0_i32_0 = arith.constant 0 : i32
    %c0_i32_1 = arith.constant 0 : i32
    return %c0_i32, %c0_i32_0 : i32, i32
  }
  func.func @transform_1(%arg0: i32) -> (i32, i32) {
    %c0_i32 = arith.constant 0 : i32
    %c0_i32_0 = arith.constant 0 : i32
    return %c0_i32, %arg0 : i32, i32
  }
  func.func @transform_2(%arg0: i32) -> (i32, i32) {
    %c0_i32 = arith.constant 0 : i32
    %c0_i32_0 = arith.constant 0 : i32
    %c0_i32_1 = arith.constant 0 : i32
    return %c0_i32, %c0_i32_0 : i32, i32
  }
  func.func @transform_3(%arg0: i32) -> (i32, i32) {
    %c0_i32 = arith.constant 0 : i32
    %c0_i32_0 = arith.constant 0 : i32
    return %c0_i32, %arg0 : i32, i32
  }
}

module attributes {stable_mosaic.version = 11 : i64} {
  func.func @_conv_bn_res_act_kernel(%arg0: i32, %arg1: memref<144x512xbf16, #tpu.memory_space<vmem>>, %arg2: memref<8x144xbf16, #tpu.memory_space<vmem>>, %arg3: memref<8x1xf32, #tpu.memory_space<vmem>>, %arg4: memref<8x1xf32, #tpu.memory_space<vmem>>, %arg5: memref<8x512xf32, #tpu.memory_space<vmem>>) attributes {dimension_semantics = [#tpu.dimension_semantics<arbitrary>], iteration_bounds = array<i64: 1>, scalar_prefetch = 0 : i64, scratch_operands = 0 : i64, tpu.core_type = #tpu.core_type<tc>, window_params = [{pipeline_mode = #tpu.pipeline_mode<synchronous>, transform_indices = @transform_0, window_bounds = array<i64: 144, 512>}, {pipeline_mode = #tpu.pipeline_mode<synchronous>, transform_indices = @transform_1, window_bounds = array<i64: 8, 144>}, {pipeline_mode = #tpu.pipeline_mode<synchronous>, transform_indices = @transform_2, window_bounds = array<i64: 8, 1>}, {pipeline_mode = #tpu.pipeline_mode<synchronous>, transform_indices = @transform_3, window_bounds = array<i64: 8, 1>}, {pipeline_mode = #tpu.pipeline_mode<synchronous>, transform_indices = @transform_4, window_bounds = array<i64: 8, 512>}]} {
    %c0 = arith.constant 0 : index
    %c0_0 = arith.constant 0 : index
    %0 = vector.load %arg2[%c0, %c0_0] : memref<8x144xbf16, #tpu.memory_space<vmem>>, vector<8x144xbf16>
    %c0_1 = arith.constant 0 : index
    %c0_2 = arith.constant 0 : index
    %1 = vector.load %arg1[%c0_1, %c0_2] : memref<144x512xbf16, #tpu.memory_space<vmem>>, vector<144x512xbf16>
    %cst = arith.constant dense<0.000000e+00> : vector<8x512xf32>
    %2 = tpu.matmul %0, %1, %cst {dimension_numbers = #tpu.dot_dimension_numbers<[1], [0], [0], [1], [0, 0, 1, 1], [], []>} : vector<8x144xbf16>, vector<144x512xbf16>, vector<8x512xf32> -> vector<8x512xf32>
    %cst_3 = arith.constant dense<0.000000e+00> : vector<8xf32>
    %3 = vector.multi_reduction <add>, %2, %cst_3 [1] : vector<8x512xf32> to vector<8xf32>
    %4 = vector.shape_cast %3 : vector<8xf32> to vector<8x1xf32>
    %cst_4 = arith.constant 0.001953125 : f32
    %5 = vector.broadcast %cst_4 : f32 to vector<8x1xf32>
    %6 = arith.mulf %4, %5 : vector<8x1xf32>
    %7 = arith.mulf %2, %2 : vector<8x512xf32>
    %cst_5 = arith.constant dense<0.000000e+00> : vector<8xf32>
    %8 = vector.multi_reduction <add>, %7, %cst_5 [1] : vector<8x512xf32> to vector<8xf32>
    %9 = vector.shape_cast %8 : vector<8xf32> to vector<8x1xf32>
    %cst_6 = arith.constant 0.001953125 : f32
    %10 = vector.broadcast %cst_6 : f32 to vector<8x1xf32>
    %11 = arith.mulf %9, %10 : vector<8x1xf32>
    %12 = arith.mulf %6, %6 : vector<8x1xf32>
    %13 = arith.subf %11, %12 : vector<8x1xf32>
    %cst_7 = arith.constant 0.000000e+00 : f32
    %14 = vector.broadcast %cst_7 : f32 to vector<8x1xf32>
    %15 = arith.maximumf %13, %14 : vector<8x1xf32>
    %c0_8 = arith.constant 0 : index
    %c0_9 = arith.constant 0 : index
    %16 = vector.load %arg3[%c0_8, %c0_9] : memref<8x1xf32, #tpu.memory_space<vmem>>, vector<8x1xf32>
    %cst_10 = arith.constant 9.99999974E-6 : f32
    %17 = vector.broadcast %cst_10 : f32 to vector<8x1xf32>
    %18 = arith.addf %15, %17 : vector<8x1xf32>
    %19 = math.rsqrt %18 : vector<8x1xf32>
    %20 = arith.mulf %16, %19 : vector<8x1xf32>
    %c0_11 = arith.constant 0 : index
    %c0_12 = arith.constant 0 : index
    %21 = vector.load %arg4[%c0_11, %c0_12] : memref<8x1xf32, #tpu.memory_space<vmem>>, vector<8x1xf32>
    %22 = arith.mulf %6, %20 : vector<8x1xf32>
    %23 = arith.subf %21, %22 : vector<8x1xf32>
    %24 = vector.broadcast %20 : vector<8x1xf32> to vector<8x512xf32>
    %25 = arith.mulf %2, %24 : vector<8x512xf32>
    %26 = vector.broadcast %23 : vector<8x1xf32> to vector<8x512xf32>
    %27 = arith.addf %25, %26 : vector<8x512xf32>
    %cst_13 = arith.constant 0.000000e+00 : f32
    %28 = vector.broadcast %cst_13 : f32 to vector<8x512xf32>
    %29 = arith.cmpf oge, %27, %28 : vector<8x512xf32>
    %cst_14 = arith.constant 0.00999999977 : f32
    %30 = vector.broadcast %cst_14 : f32 to vector<8x512xf32>
    %31 = arith.mulf %30, %27 : vector<8x512xf32>
    %32 = arith.select %29, %27, %31 : vector<8x512xi1>, vector<8x512xf32>
    %c0_15 = arith.constant 0 : index
    %c0_16 = arith.constant 0 : index
    %33 = vector.load %arg5[%c0_15, %c0_16] : memref<8x512xf32, #tpu.memory_space<vmem>>, vector<8x512xf32>
    tpu.vector_store %arg5[%c0_15, %c0_16], %32 {strides = array<i32>} : memref<8x512xf32, #tpu.memory_space<vmem>>, vector<8x512xf32>,
    return
  }
  func.func @transform_0(%arg0: i32) -> (i32, i32) {
    %c0_i32 = arith.constant 0 : i32
    %c0_i32_0 = arith.constant 0 : i32
    %c0_i32_1 = arith.constant 0 : i32
    return %c0_i32, %c0_i32_0 : i32, i32
  }
  func.func @transform_1(%arg0: i32) -> (i32, i32) {
    %c0_i32 = arith.constant 0 : i32
    %c0_i32_0 = arith.constant 0 : i32
    %c0_i32_1 = arith.constant 0 : i32
    return %c0_i32, %c0_i32_0 : i32, i32
  }
  func.func @transform_2(%arg0: i32) -> (i32, i32) {
    %c0_i32 = arith.constant 0 : i32
    %c0_i32_0 = arith.constant 0 : i32
    %c0_i32_1 = arith.constant 0 : i32
    return %c0_i32, %c0_i32_0 : i32, i32
  }
  func.func @transform_3(%arg0: i32) -> (i32, i32) {
    %c0_i32 = arith.constant 0 : i32
    %c0_i32_0 = arith.constant 0 : i32
    %c0_i32_1 = arith.constant 0 : i32
    return %c0_i32, %c0_i32_0 : i32, i32
  }
  func.func @transform_4(%arg0: i32) -> (i32, i32) {
    %c0_i32 = arith.constant 0 : i32
    %c0_i32_0 = arith.constant 0 : i32
    %c0_i32_1 = arith.constant 0 : i32
    return %c0_i32, %c0_i32_0 : i32, i32
  }
}

module attributes {stable_mosaic.version = 11 : i64} {
  func.func @_gemm_bias_act_kernel(%arg0: i32, %arg1: memref<4x72xbf16, #tpu.memory_space<vmem>>, %arg2: memref<72x256xbf16, #tpu.memory_space<vmem>>, %arg3: memref<4x1xf32, #tpu.memory_space<vmem>>, %arg4: memref<4x256xf32, #tpu.memory_space<vmem>>) attributes {dimension_semantics = [#tpu.dimension_semantics<parallel>], iteration_bounds = array<i64: 2>, scalar_prefetch = 0 : i64, scratch_operands = 0 : i64, tpu.core_type = #tpu.core_type<tc>, window_params = [{pipeline_mode = #tpu.pipeline_mode<synchronous>, transform_indices = @transform_0, window_bounds = array<i64: 4, 72>}, {transform_indices = @transform_1, window_bounds = array<i64: 72, 256>}, {pipeline_mode = #tpu.pipeline_mode<synchronous>, transform_indices = @transform_2, window_bounds = array<i64: 4, 1>}, {transform_indices = @transform_3, window_bounds = array<i64: 4, 256>}]} {
    %c0 = arith.constant 0 : index
    %c0_0 = arith.constant 0 : index
    %0 = vector.load %arg1[%c0, %c0_0] : memref<4x72xbf16, #tpu.memory_space<vmem>>, vector<4x72xbf16>
    %c0_1 = arith.constant 0 : index
    %c0_2 = arith.constant 0 : index
    %1 = vector.load %arg2[%c0_1, %c0_2] : memref<72x256xbf16, #tpu.memory_space<vmem>>, vector<72x256xbf16>
    %cst = arith.constant dense<0.000000e+00> : vector<4x256xf32>
    %2 = tpu.matmul %0, %1, %cst {dimension_numbers = #tpu.dot_dimension_numbers<[1], [0], [0], [1], [0, 0, 1, 1], [], []>} : vector<4x72xbf16>, vector<72x256xbf16>, vector<4x256xf32> -> vector<4x256xf32>
    %c0_3 = arith.constant 0 : index
    %c0_4 = arith.constant 0 : index
    %3 = vector.load %arg3[%c0_3, %c0_4] : memref<4x1xf32, #tpu.memory_space<vmem>>, vector<4x1xf32>
    %4 = vector.broadcast %3 : vector<4x1xf32> to vector<4x256xf32>
    %5 = arith.addf %2, %4 : vector<4x256xf32>
    %6 = math.tanh %5 : vector<4x256xf32>
    %c0_5 = arith.constant 0 : index
    %c0_6 = arith.constant 0 : index
    %7 = vector.load %arg4[%c0_5, %c0_6] : memref<4x256xf32, #tpu.memory_space<vmem>>, vector<4x256xf32>
    tpu.vector_store %arg4[%c0_5, %c0_6], %6 {strides = array<i32>} : memref<4x256xf32, #tpu.memory_space<vmem>>, vector<4x256xf32>,
    return
  }
  func.func @transform_0(%arg0: i32) -> (i32, i32) {
    %c0_i32 = arith.constant 0 : i32
    %c0_i32_0 = arith.constant 0 : i32
    %c0_i32_1 = arith.constant 0 : i32
    return %c0_i32, %c0_i32_0 : i32, i32
  }
  func.func @transform_1(%arg0: i32) -> (i32, i32) {
    %c0_i32 = arith.constant 0 : i32
    %c0_i32_0 = arith.constant 0 : i32
    return %c0_i32, %arg0 : i32, i32
  }
  func.func @transform_2(%arg0: i32) -> (i32, i32) {
    %c0_i32 = arith.constant 0 : i32
    %c0_i32_0 = arith.constant 0 : i32
    %c0_i32_1 = arith.constant 0 : i32
    return %c0_i32, %c0_i32_0 : i32, i32
  }
  func.func @transform_3(%arg0: i32) -> (i32, i32) {
    %c0_i32 = arith.constant 0 : i32
    %c0_i32_0 = arith.constant 0 : i32
    return %c0_i32, %arg0 : i32, i32
  }
}

</mosaic_0001>

<llo_original>
// kernel: unet_forward.17
$region0: #{unet_forward.17}
  #allocation0 [shape = 'u32[]', space=smem, size = 0x4, offset = 0x4, fixed_abs, tag = 'smem constant byte address 0x4 - core index']
  #allocation1 [shape = 'u32[72,128]{1,0:T(1,128)}', space=vmem, size = 0x9000, scoped, tag = 'internal scratch']
  %s0 = inlined_call_operand.vmem [shape: bf16[36,512], index: 0, kind: input, shape index: {}]
  %s1 = inlined_call_operand.vmem [shape: bf16[8,36], index: 1, kind: input, shape index: {}]
  %s2 = inlined_call_operand.vmem [shape: f32[8,1], index: 2, kind: input, shape index: {}]
  %s3 = inlined_call_operand.vmem [shape: f32[8,1], index: 3, kind: input, shape index: {}]
  %s4 = inlined_call_operand.vmem [shape: f32[8,512], index: 4, kind: output, shape index: {}]
  %s5 = sld [smem:[#allocation0]]
  $region26: #{unet_forward.17} parent=0
    _
  %s7 = ssub.s32 1, %s5
  %s8 = scalar_select 0, %s7, %s5
  // Predicated region
  $region2: #{unet_forward.17} parent=0 // pred_check
    _
  $region3: #{unet_forward.17} parent=0 // pred_check_branch
    %10 = sbr.rel (0) target = $region5
  $region4: #{unet_forward.17} parent=0 // pred_region
    _
  $region5: #{unet_forward.17} parent=0 // pred_fallthru
    _
  // Predicated region
  $region6: #{unet_forward.17} parent=0 // pred_check
    _
  $region7: #{unet_forward.17} parent=0 // pred_check_branch
    %12 = sbr.rel (0) target = $region9
  $region8: #{unet_forward.17} parent=0 // pred_region
    _
  $region9: #{unet_forward.17} parent=0 // pred_fallthru
    _
  // Predicated region
  $region10: #{unet_forward.17} parent=0 // pred_check
    _
  $region11: #{unet_forward.17} parent=0 // pred_check_branch
    %14 = sbr.rel (0) target = $region13
  $region12: #{unet_forward.17} parent=0 // pred_region
    _
  $region13: #{unet_forward.17} parent=0 // pred_fallthru
    _
  // Predicated region
  $region14: #{unet_forward.17} parent=0 // pred_check
    _
  $region15: #{unet_forward.17} parent=0 // pred_check_branch
    %16 = sbr.rel (0) target = $region17
  $region16: #{unet_forward.17} parent=0 // pred_region
    _
  $region17: #{unet_forward.17} parent=0 // pred_fallthru
    _
  %v18 = vld [vmem:[%s1] sm:$0xf]
  %v19 = vld [vmem:[%s0] sm:$0xff]
  %v20 = vld [vmem:[%s0 + $0x8] sm:$0xff]
  %v21 = vld [vmem:[%s0 + $0x10] sm:$0xff]
  %v22 = vld [vmem:[%s0 + $0x18] sm:$0xff]
  %v23 = vld [vmem:[%s0 + $0x20] sm:$0xff]
  %v24 = vld [vmem:[%s0 + $0x28] sm:$0xff]
  %v25 = vld [vmem:[%s0 + $0x30] sm:$0xff]
  %v26 = vld [vmem:[%s0 + $0x38] sm:$0xff]
  %v27 = vld [vmem:[%s0 + $0x40] sm:$0x33]
  %v28 = vld [vmem:[%s0 + $0x48] sm:$0x33]
  %v39 = vunpack.c.l.b16 %v19
  %v40 = vunpack.c.h.b16 %v19
  %v41 = vunpack.c.l.b16 %v20
  %v42 = vunpack.c.h.b16 %v20
  %v43 = vunpack.c.l.b16 %v21
  %v44 = vunpack.c.h.b16 %v21
  %v45 = vunpack.c.l.b16 %v22
  %v46 = vunpack.c.h.b16 %v22
  %v47 = vunpack.c.l.b16 %v23
  %v48 = vunpack.c.h.b16 %v23
  %v49 = vunpack.c.l.b16 %v24
  %v50 = vunpack.c.h.b16 %v24
  %v51 = vunpack.c.l.b16 %v25
  %v52 = vunpack.c.h.b16 %v25
  %v53 = vunpack.c.l.b16 %v26
  %v54 = vunpack.c.h.b16 %v26
  %v55 = vunpack.c.l.b16 %v27
  %v56 = vunpack.c.h.b16 %v27
  %v57 = vunpack.c.l.b16 %v28
  %v58 = vunpack.c.h.b16 %v28
  %v59 = vpack.c.b16 %v43, %v39
  %v60 = vpack.c.b16 %v44, %v40
  %v61 = vpack.c.b16 %v45, %v41
  %v62 = vpack.c.b16 %v46, %v42
  %v63 = vpack.c.b16 %v51, %v47
  %v64 = vpack.c.b16 %v52, %v48
  %v65 = vpack.c.b16 %v53, %v49
  %v66 = vpack.c.b16 %v54, %v50
  %v67 = vpack.c.b16 %v55, %v55
  %v68 = vpack.c.b16 %v56, %v56
  %v69 = vpack.c.b16 %v57, %v57
  %v70 = vpack.c.b16 %v58, %v58
  %vm79 = vcmask 293888
  %v81 = vsel %vm79, %v18, 0
  %vm83 = vcmask 1041408
  %v85 = vsel %vm83, %v67, 0
  %v88 = vsel %vm83, %v68, 0
  %v91 = vsel %vm83, %v69, 0
  %v94 = vsel %vm83, %v70, 0
  %96 = vmatpush.bf16.msra.mxu0 0
  %97 = vmatpush.bf16.msra.mxu0 0
  %98 = vmatpush.bf16.msra.mxu0 0
  %99 = vmatpush.bf16.msra.mxu0 0
  %100 = vmatpush.bf16.msra.mxu0 0
  %101 = vmatpush.bf16.msra.mxu0 %v85
  %102 = vmatpush.bf16.msra.mxu0 %v63
  %103 = vmatpush.bf16.msra.mxu0 %v59
  %104 = vmatmul.bf16.gmra.mxu0 %v81
  %v105 = vpop.f32.mrf.mxu0
  %v106 = vadd.f32 0.0, %v105
  %v107 = vpop.f32.mrf.mxu0
  %108 = vdwg.mxu0
  %109 = vmatpush.bf16.msra.mxu0 0
  %110 = vmatpush.bf16.msra.mxu0 0
  %111 = vmatpush.bf16.msra.mxu0 0
  %112 = vmatpush.bf16.msra.mxu0 0
  %113 = vmatpush.bf16.msra.mxu0 0
  %114 = vmatpush.bf16.msra.mxu0 %v88
  %115 = vmatpush.bf16.msra.mxu0 %v64
  %116 = vmatpush.bf16.msra.mxu0 %v60
  %117 = vmatmul.bf16.gmra.mxu0 %v81
  %v118 = vpop.f32.mrf.mxu0
  %v119 = vadd.f32 0.0, %v118
  %v120 = vpop.f32.mrf.mxu0
  %121 = vdwg.mxu0
  %122 = vmatpush.bf16.msra.mxu0 0
  %123 = vmatpush.bf16.msra.mxu0 0
  %124 = vmatpush.bf16.msra.mxu0 0
  %125 = vmatpush.bf16.msra.mxu0 0
  %126 = vmatpush.bf16.msra.mxu0 0
  %127 = vmatpush.bf16.msra.mxu0 %v91
  %128 = vmatpush.bf16.msra.mxu0 %v65
  %129 = vmatpush.bf16.msra.mxu0 %v61
  %130 = vmatmul.bf16.gmra.mxu0 %v81
  %v131 = vpop.f32.mrf.mxu0
  %v132 = vadd.f32 0.0, %v131
  %v133 = vpop.f32.mrf.mxu0
  %134 = vdwg.mxu0
  %135 = vmatpush.bf16.msra.mxu0 0
  %136 = vmatpush.bf16.msra.mxu0 0
  %137 = vmatpush.bf16.msra.mxu0 0
  %138 = vmatpush.bf16.msra.mxu0 0
  %139 = vmatpush.bf16.msra.mxu0 0
  %140 = vmatpush.bf16.msra.mxu0 %v94
  %141 = vmatpush.bf16.msra.mxu0 %v66
  %142 = vmatpush.bf16.msra.mxu0 %v62
  %143 = vmatmul.bf16.gmra.mxu0 %v81
  %v144 = vpop.f32.mrf.mxu0
  %v145 = vadd.f32 0.0, %v144
  %v146 = vpop.f32.mrf.mxu0
  %147 = vdwg.mxu0
  %v148 = vadd.f32 %v106, %v119
  %v149 = vadd.f32 %v148, %v132
  %v150 = vadd.f32 %v149, %v145
  %151 = vadd.xlane.f32.xlu0 %v150
  %v152 = vpop.xlane.xlu0 %151
  %v153 = vmul.f32 %v152, 0.001953125
  %v154 = vmul.f32 %v106, %v106
  %v155 = vmul.f32 %v119, %v119
  %v156 = vmul.f32 %v132, %v132
  %v157 = vmul.f32 %v145, %v145
  %v158 = vadd.f32 %v154, %v155
  %v159 = vadd.f32 %v158, %v156
  %v160 = vadd.f32 %v159, %v157
  %161 = vadd.xlane.f32.xlu0 %v160
  %v162 = vpop.xlane.xlu0 %161
  %v163 = vmul.f32 %v162, 0.001953125
  %v164 = vmul.f32 %v153, %v153
  %v165 = vsub.f32 %v163, %v164
  %v166 = vmax.f32 %v165, 0.0
  %v167 = vld [vmem:[%s2] sm:$0xff]
  %v168 = vadd.f32 %v166, 1e-05
  %v169 = vrsqrt.pop %v168
  %v170 = vmul.f32 %v169, %v168
  %v171 = vmul.f32 %v170, %v169
  %v172 = vmul.f32 0.5, %v171
  %v173 = vsub.f32 1.5, %v172
  %v174 = vmul.f32 %v169, %v173
  %vm175 = vweird.f32 %v168
  %vm176 = vweird.f32 %v169
  %vm177 = vmor %vm175, %vm176
  %v178 = vsel %vm177, %v169, %v174
  %v179 = vmul.f32 %v167, %v178
  %v180 = vld [vmem:[%s3] sm:$0xff]
  %v181 = vmul.f32 %v153, %v179
  %v182 = vsub.f32 %v180, %v181
  %184 = vset.pattern.permute.xlu0 0
  %185 = vperm.xlu0 %184, %v179
  %v186 = vpop.permute.xlu0 %185
  %v188 = vmul.f32 %v106, %v186
  %v189 = vmul.f32 %v119, %v186
  %v190 = vmul.f32 %v132, %v186
  %v191 = vmul.f32 %v145, %v186
  %193 = vset.pattern.permute.xlu0 0
  %194 = vperm.xlu0 %193, %v182
  %v195 = vpop.permute.xlu0 %194
  %v197 = vadd.f32 %v188, %v195
  %v198 = vadd.f32 %v189, %v195
  %v199 = vadd.f32 %v190, %v195
  %v200 = vadd.f32 %v191, %v195
  %vm201 = vcmp.ge.f32.partialorder %v197, 0.0
  %vm202 = vcmp.ge.f32.partialorder %v198, 0.0
  %vm203 = vcmp.ge.f32.partialorder %v199, 0.0
  %vm204 = vcmp.ge.f32.partialorder %v200, 0.0
  %v205 = vmul.f32 %v197, 0.01
  %v206 = vmul.f32 %v198, 0.01
  %v207 = vmul.f32 %v199, 0.01
  %v208 = vmul.f32 %v200, 0.01
  %v209 = vsel %vm201, %v197, %v205
  %v210 = vsel %vm202, %v198, %v206
  %v211 = vsel %vm203, %v199, %v207
  %v212 = vsel %vm204, %v200, %v208
  %213 = vst [vmem:[%s4] sm:$0xff] %v209
  %214 = vst [vmem:[%s4 + $0x8] sm:$0xff] %v210
  %215 = vst [vmem:[%s4 + $0x10] sm:$0xff] %v211
  %216 = vst [vmem:[%s4 + $0x18] sm:$0xff] %v212
  // Predicated region
  $region18: #{unet_forward.17} parent=0 // pred_check
    _
  $region19: #{unet_forward.17} parent=0 // pred_check_branch
    %218 = sbr.rel (0) target = $region21
  $region20: #{unet_forward.17} parent=0 // pred_region
    _
  $region21: #{unet_forward.17} parent=0 // pred_fallthru
    _
  // Predicated region
  $region22: #{unet_forward.17} parent=0 // pred_check
    _
  $region23: #{unet_forward.17} parent=0 // pred_check_branch
    %220 = sbr.rel (0) target = $region25
  $region24: #{unet_forward.17} parent=0 // pred_region
    _
  $region25: #{unet_forward.17} parent=0 // pred_fallthru
    _

// kernel: unet_forward.18
$region0: #{unet_forward.18}
  #allocation0 [shape = 'u32[]', space=smem, size = 0x4, offset = 0x4, fixed_abs, tag = 'smem constant byte address 0x4 - core index']
  #allocation1 [shape = 'u32[72,128]{1,0:T(1,128)}', space=vmem, size = 0x9000, scoped, tag = 'internal scratch']
  %s0 = inlined_call_operand.vmem [shape: bf16[72,512], index: 0, kind: input, shape index: {}]
  %s1 = inlined_call_operand.vmem [shape: bf16[8,72], index: 1, kind: input, shape index: {}]
  %s2 = inlined_call_operand.vmem [shape: f32[8,1], index: 2, kind: input, shape index: {}]
  %s3 = inlined_call_operand.vmem [shape: f32[8,1], index: 3, kind: input, shape index: {}]
  %s4 = inlined_call_operand.vmem [shape: f32[4,512], index: 4, kind: input, shape index: {}]
  %s5 = inlined_call_operand.vmem [shape: f32[8,4], index: 5, kind: input, shape index: {}]
  %s6 = inlined_call_operand.vmem [shape: f32[8,1], index: 6, kind: input, shape index: {}]
  %s7 = inlined_call_operand.vmem [shape: f32[8,512], index: 7, kind: output, shape index: {}]
  %s8 = sld [smem:[#allocation0]]
  $region38: #{unet_forward.18} parent=0
    _
  %s10 = ssub.s32 1, %s8
  %s11 = scalar_select 0, %s10, %s8
  // Predicated region
  $region2: #{unet_forward.18} parent=0 // pred_check
    _
  $region3: #{unet_forward.18} parent=0 // pred_check_branch
    %13 = sbr.rel (0) target = $region5
  $region4: #{unet_forward.18} parent=0 // pred_region
    _
  $region5: #{unet_forward.18} parent=0 // pred_fallthru
    _
  // Predicated region
  $region6: #{unet_forward.18} parent=0 // pred_check
    _
  $region7: #{unet_forward.18} parent=0 // pred_check_branch
    %15 = sbr.rel (0) target = $region9
  $region8: #{unet_forward.18} parent=0 // pred_region
    _
  $region9: #{unet_forward.18} parent=0 // pred_fallthru
    _
  // Predicated region
  $region10: #{unet_forward.18} parent=0 // pred_check
    _
  $region11: #{unet_forward.18} parent=0 // pred_check_branch
    %17 = sbr.rel (0) target = $region13
  $region12: #{unet_forward.18} parent=0 // pred_region
    _
  $region13: #{unet_forward.18} parent=0 // pred_fallthru
    _
  // Predicated region
  $region14: #{unet_forward.18} parent=0 // pred_check
    _
  $region15: #{unet_forward.18} parent=0 // pred_check_branch
    %19 = sbr.rel (0) target = $region17
  $region16: #{unet_forward.18} parent=0 // pred_region
    _
  $region17: #{unet_forward.18} parent=0 // pred_fallthru
    _
  // Predicated region
  $region18: #{unet_forward.18} parent=0 // pred_check
    _
  $region19: #{unet_forward.18} parent=0 // pred_check_branch
    %21 = sbr.rel (0) target = $region21
  $region20: #{unet_forward.18} parent=0 // pred_region
    _
  $region21: #{unet_forward.18} parent=0 // pred_fallthru
    _
  // Predicated region
  $region22: #{unet_forward.18} parent=0 // pred_check
    _
  $region23: #{unet_forward.18} parent=0 // pred_check_branch
    %23 = sbr.rel (0) target = $region25
  $region24: #{unet_forward.18} parent=0 // pred_region
    _
  $region25: #{unet_forward.18} parent=0 // pred_fallthru
    _
  // Predicated region
  $region26: #{unet_forward.18} parent=0 // pred_check
    _
  $region27: #{unet_forward.18} parent=0 // pred_check_branch
    %25 = sbr.rel (0) target = $region29
  $region28: #{unet_forward.18} parent=0 // pred_region
    _
  $region29: #{unet_forward.18} parent=0 // pred_fallthru
    _
  %v27 = vld [vmem:[%s1] sm:$0xf]
  %v28 = vld [vmem:[%s0] sm:$0xff]
  %v29 = vld [vmem:[%s0 + $0x8] sm:$0xff]
  %v30 = vld [vmem:[%s0 + $0x10] sm:$0xff]
  %v31 = vld [vmem:[%s0 + $0x18] sm:$0xff]
  %v32 = vld [vmem:[%s0 + $0x20] sm:$0xff]
  %v33 = vld [vmem:[%s0 + $0x28] sm:$0xff]
  %v34 = vld [vmem:[%s0 + $0x30] sm:$0xff]
  %v35 = vld [vmem:[%s0 + $0x38] sm:$0xff]
  %v36 = vld [vmem:[%s0 + $0x40] sm:$0xff]
  %v37 = vld [vmem:[%s0 + $0x48] sm:$0xff]
  %v38 = vld [vmem:[%s0 + $0x50] sm:$0xff]
  %v39 = vld [vmem:[%s0 + $0x58] sm:$0xff]
  %v40 = vld [vmem:[%s0 + $0x60] sm:$0xff]
  %v41 = vld [vmem:[%s0 + $0x68] sm:$0xff]
  %v42 = vld [vmem:[%s0 + $0x70] sm:$0xff]
  %v43 = vld [vmem:[%s0 + $0x78] sm:$0xff]
  %v44 = vld [vmem:[%s0 + $0x80] sm:$0xff]
  %v45 = vld [vmem:[%s0 + $0x88] sm:$0xff]
  %v64 = vunpack.c.l.b16 %v28
  %v65 = vunpack.c.h.b16 %v28
  %v66 = vunpack.c.l.b16 %v29
  %v67 = vunpack.c.h.b16 %v29
  %v68 = vunpack.c.l.b16 %v30
  %v69 = vunpack.c.h.b16 %v30
  %v70 = vunpack.c.l.b16 %v31
  %v71 = vunpack.c.h.b16 %v31
  %v72 = vunpack.c.l.b16 %v32
  %v73 = vunpack.c.h.b16 %v32
  %v74 = vunpack.c.l.b16 %v33
  %v75 = vunpack.c.h.b16 %v33
  %v76 = vunpack.c.l.b16 %v34
  %v77 = vunpack.c.h.b16 %v34
  %v78 = vunpack.c.l.b16 %v35
  %v79 = vunpack.c.h.b16 %v35
  %v80 = vunpack.c.l.b16 %v36
  %v81 = vunpack.c.h.b16 %v36
  %v82 = vunpack.c.l.b16 %v37
  %v83 = vunpack.c.h.b16 %v37
  %v84 = vunpack.c.l.b16 %v38
  %v85 = vunpack.c.h.b16 %v38
  %v86 = vunpack.c.l.b16 %v39
  %v87 = vunpack.c.h.b16 %v39
  %v88 = vunpack.c.l.b16 %v40
  %v89 = vunpack.c.h.b16 %v40
  %v90 = vunpack.c.l.b16 %v41
  %v91 = vunpack.c.h.b16 %v41
  %v92 = vunpack.c.l.b16 %v42
  %v93 = vunpack.c.h.b16 %v42
  %v94 = vunpack.c.l.b16 %v43
  %v95 = vunpack.c.h.b16 %v43
  %v96 = vunpack.c.l.b16 %v44
  %v97 = vunpack.c.h.b16 %v44
  %v98 = vunpack.c.l.b16 %v45
  %v99 = vunpack.c.h.b16 %v45
  %v100 = vpack.c.b16 %v68, %v64
  %v101 = vpack.c.b16 %v69, %v65
  %v102 = vpack.c.b16 %v70, %v66
  %v103 = vpack.c.b16 %v71, %v67
  %v104 = vpack.c.b16 %v76, %v72
  %v105 = vpack.c.b16 %v77, %v73
  %v106 = vpack.c.b16 %v78, %v74
  %v107 = vpack.c.b16 %v79, %v75
  %v108 = vpack.c.b16 %v84, %v80
  %v109 = vpack.c.b16 %v85, %v81
  %v110 = vpack.c.b16 %v86, %v82
  %v111 = vpack.c.b16 %v87, %v83
  %v112 = vpack.c.b16 %v92, %v88
  %v113 = vpack.c.b16 %v93, %v89
  %v114 = vpack.c.b16 %v94, %v90
  %v115 = vpack.c.b16 %v95, %v91
  %v116 = vpack.c.b16 %v96, %v96
  %v117 = vpack.c.b16 %v97, %v97
  %v118 = vpack.c.b16 %v98, %v98
  %v119 = vpack.c.b16 %v99, %v99
  %vm136 = vcmask 588800
  %v138 = vsel %vm136, %v27, 0
  %vm140 = vcmask 1043456
  %v142 = vsel %vm140, %v116, 0
  %v145 = vsel %vm140, %v117, 0
  %v148 = vsel %vm140, %v118, 0
  %v151 = vsel %vm140, %v119, 0
  %153 = vmatpush.bf16.msra.mxu0 0
  %154 = vmatpush.bf16.msra.mxu0 0
  %155 = vmatpush.bf16.msra.mxu0 0
  %156 = vmatpush.bf16.msra.mxu0 %v142
  %157 = vmatpush.bf16.msra.mxu0 %v112
  %158 = vmatpush.bf16.msra.mxu0 %v108
  %159 = vmatpush.bf16.msra.mxu0 %v104
  %160 = vmatpush.bf16.msra.mxu0 %v100
  %161 = vmatmul.bf16.gmra.mxu0 %v138
  %v162 = vpop.f32.mrf.mxu0
  %v163 = vadd.f32 0.0, %v162
  %v164 = vpop.f32.mrf.mxu0
  %165 = vdwg.mxu0
  %166 = vmatpush.bf16.msra.mxu0 0
  %167 = vmatpush.bf16.msra.mxu0 0
  %168 = vmatpush.bf16.msra.mxu0 0
  %169 = vmatpush.bf16.msra.mxu0 %v145
  %170 = vmatpush.bf16.msra.mxu0 %v113
  %171 = vmatpush.bf16.msra.mxu0 %v109
  %172 = vmatpush.bf16.msra.mxu0 %v105
  %173 = vmatpush.bf16.msra.mxu0 %v101
  %174 = vmatmul.bf16.gmra.mxu0 %v138
  %v175 = vpop.f32.mrf.mxu0
  %v176 = vadd.f32 0.0, %v175
  %v177 = vpop.f32.mrf.mxu0
  %178 = vdwg.mxu0
  %179 = vmatpush.bf16.msra.mxu0 0
  %180 = vmatpush.bf16.msra.mxu0 0
  %181 = vmatpush.bf16.msra.mxu0 0
  %182 = vmatpush.bf16.msra.mxu0 %v148
  %183 = vmatpush.bf16.msra.mxu0 %v114
  %184 = vmatpush.bf16.msra.mxu0 %v110
  %185 = vmatpush.bf16.msra.mxu0 %v106
  %186 = vmatpush.bf16.msra.mxu0 %v102
  %187 = vmatmul.bf16.gmra.mxu0 %v138
  %v188 = vpop.f32.mrf.mxu0
  %v189 = vadd.f32 0.0, %v188
  %v190 = vpop.f32.mrf.mxu0
  %191 = vdwg.mxu0
  %192 = vmatpush.bf16.msra.mxu0 0
  %193 = vmatpush.bf16.msra.mxu0 0
  %194 = vmatpush.bf16.msra.mxu0 0
  %195 = vmatpush.bf16.msra.mxu0 %v151
  %196 = vmatpush.bf16.msra.mxu0 %v115
  %197 = vmatpush.bf16.msra.mxu0 %v111
  %198 = vmatpush.bf16.msra.mxu0 %v107
  %199 = vmatpush.bf16.msra.mxu0 %v103
  %200 = vmatmul.bf16.gmra.mxu0 %v138
  %v201 = vpop.f32.mrf.mxu0
  %v202 = vadd.f32 0.0, %v201
  %v203 = vpop.f32.mrf.mxu0
  %204 = vdwg.mxu0
  %v205 = vadd.f32 %v163, %v176
  %v206 = vadd.f32 %v205, %v189
  %v207 = vadd.f32 %v206, %v202
  %208 = vadd.xlane.f32.xlu0 %v207
  %v209 = vpop.xlane.xlu0 %208
  %v210 = vmul.f32 %v209, 0.001953125
  %v211 = vmul.f32 %v163, %v163
  %v212 = vmul.f32 %v176, %v176
  %v213 = vmul.f32 %v189, %v189
  %v214 = vmul.f32 %v202, %v202
  %v215 = vadd.f32 %v211, %v212
  %v216 = vadd.f32 %v215, %v213
  %v217 = vadd.f32 %v216, %v214
  %218 = vadd.xlane.f32.xlu0 %v217
  %v219 = vpop.xlane.xlu0 %218
  %v220 = vmul.f32 %v219, 0.001953125
  %v221 = vmul.f32 %v210, %v210
  %v222 = vsub.f32 %v220, %v221
  %v223 = vmax.f32 %v222, 0.0
  %v224 = vld [vmem:[%s2] sm:$0xff]
  %v225 = vadd.f32 %v223, 1e-05
  %v226 = vrsqrt.pop %v225
  %v227 = vmul.f32 %v226, %v225
  %v228 = vmul.f32 %v227, %v226
  %v229 = vmul.f32 0.5, %v228
  %v230 = vsub.f32 1.5, %v229
  %v231 = vmul.f32 %v226, %v230
  %vm232 = vweird.f32 %v225
  %vm233 = vweird.f32 %v226
  %vm234 = vmor %vm232, %vm233
  %v235 = vsel %vm234, %v226, %v231
  %v236 = vmul.f32 %v224, %v235
  %v237 = vld [vmem:[%s3] sm:$0xff]
  %v238 = vmul.f32 %v210, %v236
  %v239 = vsub.f32 %v237, %v238
  %241 = vset.pattern.permute.xlu0 0
  %242 = vperm.xlu0 %241, %v236
  %v243 = vpop.permute.xlu0 %242
  %v245 = vmul.f32 %v163, %v243
  %v246 = vmul.f32 %v176, %v243
  %v247 = vmul.f32 %v189, %v243
  %v248 = vmul.f32 %v202, %v243
  %250 = vset.pattern.permute.xlu0 0
  %251 = vperm.xlu0 %250, %v239
  %v252 = vpop.permute.xlu0 %251
  %v254 = vadd.f32 %v245, %v252
  %v255 = vadd.f32 %v246, %v252
  %v256 = vadd.f32 %v247, %v252
  %v257 = vadd.f32 %v248, %v252
  %v258 = vld [vmem:[%s5] sm:$0xff]
  %v259 = vld [vmem:[%s4] sm:$0xff]
  %v260 = vld [vmem:[%s4 + $0x8] sm:$0xff]
  %v261 = vld [vmem:[%s6] sm:$0xff]
  %263 = vset.pattern.permute.xlu0 0
  %264 = vperm.xlu0 %263, %v261
  %v265 = vpop.permute.xlu0 %264
  %269 = vst [vmem:[#allocation1] ss:$2 sm:$0xff] %v259
  %s270 = scalar_lea.vmem [#allocation1], 16
  %271 = vst [vmem:[%s270] ss:$2 sm:$0xff] %v260
  %v272 = vld.sshfl [vmem:[#allocation1] sm:$0xff pattern:$0x75316420]
  %v273 = vld.sshfl [vmem:[#allocation1 + $0x8] sm:$0xff pattern:$0x75316420]
  %v274 = vld.sshfl [vmem:[#allocation1 + $0x10] sm:$0xff pattern:$0x75316420]
  %v275 = vld.sshfl [vmem:[#allocation1 + $0x18] sm:$0xff pattern:$0x75316420]
  %vm276 = vcmask 31744
  %v278 = vsel %vm276, %v258, 0
  %v280 = vsel %vm140, %v272, 0
  %v282 = vsel %vm140, %v273, 0
  %v284 = vsel %vm140, %v274, 0
  %v286 = vsel %vm140, %v275, 0
  %288 = vmatpush.msra.mxu0 0.0
  %289 = vmatpush.msra.mxu0 0.0
  %290 = vmatpush.msra.mxu0 0.0
  %291 = vmatpush.msra.mxu0 0.0
  %292 = vmatpush.msra.mxu0 0.0
  %293 = vmatpush.msra.mxu0 0.0
  %294 = vmatpush.msra.mxu0 0.0
  %295 = vmatpush.msra.mxu0 0.0
  %296 = vmatpush.msra.mxu0 0.0
  %297 = vmatpush.msra.mxu0 0.0
  %298 = vmatpush.msra.mxu0 0.0
  %299 = vmatpush.msra.mxu0 0.0
  %300 = vmatpush.msra.mxu0 0.0
  %301 = vmatpush.msra.mxu0 0.0
  %302 = vmatpush.msra.mxu0 0.0
  %303 = vmatpush.msra.mxu0 %v280
  %304 = vmatmul.f32.gmra.mxu0 %v278
  %v305 = vpop.f32.mrf.mxu0
  %v306 = vadd.f32 %v265, %v305
  %307 = vdwg.mxu0
  %308 = vmatpush.msra.mxu0 0.0
  %309 = vmatpush.msra.mxu0 0.0
  %310 = vmatpush.msra.mxu0 0.0
  %311 = vmatpush.msra.mxu0 0.0
  %312 = vmatpush.msra.mxu0 0.0
  %313 = vmatpush.msra.mxu0 0.0
  %314 = vmatpush.msra.mxu0 0.0
  %315 = vmatpush.msra.mxu0 0.0
  %316 = vmatpush.msra.mxu0 0.0
  %317 = vmatpush.msra.mxu0 0.0
  %318 = vmatpush.msra.mxu0 0.0
  %319 = vmatpush.msra.mxu0 0.0
  %320 = vmatpush.msra.mxu0 0.0
  %321 = vmatpush.msra.mxu0 0.0
  %322 = vmatpush.msra.mxu0 0.0
  %323 = vmatpush.msra.mxu0 %v282
  %324 = vmatmul.f32.gmra.mxu0 %v278
  %v325 = vpop.f32.mrf.mxu0
  %v326 = vadd.f32 %v265, %v325
  %327 = vdwg.mxu0
  %328 = vmatpush.msra.mxu0 0.0
  %329 = vmatpush.msra.mxu0 0.0
  %330 = vmatpush.msra.mxu0 0.0
  %331 = vmatpush.msra.mxu0 0.0
  %332 = vmatpush.msra.mxu0 0.0
  %333 = vmatpush.msra.mxu0 0.0
  %334 = vmatpush.msra.mxu0 0.0
  %335 = vmatpush.msra.mxu0 0.0
  %336 = vmatpush.msra.mxu0 0.0
  %337 = vmatpush.msra.mxu0 0.0
  %338 = vmatpush.msra.mxu0 0.0
  %339 = vmatpush.msra.mxu0 0.0
  %340 = vmatpush.msra.mxu0 0.0
  %341 = vmatpush.msra.mxu0 0.0
  %342 = vmatpush.msra.mxu0 0.0
  %343 = vmatpush.msra.mxu0 %v284
  %344 = vmatmul.f32.gmra.mxu0 %v278
  %v345 = vpop.f32.mrf.mxu0
  %v346 = vadd.f32 %v265, %v345
  %347 = vdwg.mxu0
  %348 = vmatpush.msra.mxu0 0.0
  %349 = vmatpush.msra.mxu0 0.0
  %350 = vmatpush.msra.mxu0 0.0
  %351 = vmatpush.msra.mxu0 0.0
  %352 = vmatpush.msra.mxu0 0.0
  %353 = vmatpush.msra.mxu0 0.0
  %354 = vmatpush.msra.mxu0 0.0
  %355 = vmatpush.msra.mxu0 0.0
  %356 = vmatpush.msra.mxu0 0.0
  %357 = vmatpush.msra.mxu0 0.0
  %358 = vmatpush.msra.mxu0 0.0
  %359 = vmatpush.msra.mxu0 0.0
  %360 = vmatpush.msra.mxu0 0.0
  %361 = vmatpush.msra.mxu0 0.0
  %362 = vmatpush.msra.mxu0 0.0
  %363 = vmatpush.msra.mxu0 %v286
  %364 = vmatmul.f32.gmra.mxu0 %v278
  %v365 = vpop.f32.mrf.mxu0
  %v366 = vadd.f32 %v265, %v365
  %367 = vdwg.mxu0
  %v368 = vadd.f32 %v254, %v306
  %v369 = vadd.f32 %v255, %v326
  %v370 = vadd.f32 %v256, %v346
  %v371 = vadd.f32 %v257, %v366
  %vm372 = vcmp.ge.f32.partialorder %v368, 0.0
  %vm373 = vcmp.ge.f32.partialorder %v369, 0.0
  %vm374 = vcmp.ge.f32.partialorder %v370, 0.0
  %vm375 = vcmp.ge.f32.partialorder %v371, 0.0
  %v376 = vmul.f32 %v368, 0.01
  %v377 = vmul.f32 %v369, 0.01
  %v378 = vmul.f32 %v370, 0.01
  %v379 = vmul.f32 %v371, 0.01
  %v380 = vsel %vm372, %v368, %v376
  %v381 = vsel %vm373, %v369, %v377
  %v382 = vsel %vm374, %v370, %v378
  %v383 = vsel %vm375, %v371, %v379
  %384 = vst [vmem:[%s7] sm:$0xff] %v380
  %385 = vst [vmem:[%s7 + $0x8] sm:$0xff] %v381
  %386 = vst [vmem:[%s7 + $0x10] sm:$0xff] %v382
  %387 = vst [vmem:[%s7 + $0x18] sm:$0xff] %v383
  // Predicated region
  $region30: #{unet_forward.18} parent=0 // pred_check
    _
  $region31: #{unet_forward.18} parent=0 // pred_check_branch
    %389 = sbr.rel (0) target = $region33
  $region32: #{unet_forward.18} parent=0 // pred_region
    _
  $region33: #{unet_forward.18} parent=0 // pred_fallthru
    _
  // Predicated region
  $region34: #{unet_forward.18} parent=0 // pred_check
    _
  $region35: #{unet_forward.18} parent=0 // pred_check_branch
    %391 = sbr.rel (0) target = $region37
  $region36: #{unet_forward.18} parent=0 // pred_region
    _
  $region37: #{unet_forward.18} parent=0 // pred_fallthru
    _

// kernel: unet_forward.19
$region0: #{unet_forward.19}
  #allocation0 [shape = 'u32[]', space=smem, size = 0x4, offset = 0x4, fixed_abs, tag = 'smem constant byte address 0x4 - core index']
  #allocation1 [shape = 'u32[72,128]{1,0:T(1,128)}', space=vmem, size = 0x9000, scoped, tag = 'internal scratch']
  %s0 = inlined_call_operand.vmem [shape: bf16[72,512], index: 0, kind: input, shape index: {}]
  %s1 = inlined_call_operand.vmem [shape: bf16[8,72], index: 1, kind: input, shape index: {}]
  %s2 = inlined_call_operand.vmem [shape: f32[8,1], index: 2, kind: input, shape index: {}]
  %s3 = inlined_call_operand.vmem [shape: f32[8,1], index: 3, kind: input, shape index: {}]
  %s4 = inlined_call_operand.vmem [shape: f32[8,512], index: 4, kind: output, shape index: {}]
  %s5 = sld [smem:[#allocation0]]
  $region26: #{unet_forward.19} parent=0
    _
  %s7 = ssub.s32 1, %s5
  %s8 = scalar_select 0, %s7, %s5
  // Predicated region
  $region2: #{unet_forward.19} parent=0 // pred_check
    _
  $region3: #{unet_forward.19} parent=0 // pred_check_branch
    %10 = sbr.rel (0) target = $region5
  $region4: #{unet_forward.19} parent=0 // pred_region
    _
  $region5: #{unet_forward.19} parent=0 // pred_fallthru
    _
  // Predicated region
  $region6: #{unet_forward.19} parent=0 // pred_check
    _
  $region7: #{unet_forward.19} parent=0 // pred_check_branch
    %12 = sbr.rel (0) target = $region9
  $region8: #{unet_forward.19} parent=0 // pred_region
    _
  $region9: #{unet_forward.19} parent=0 // pred_fallthru
    _
  // Predicated region
  $region10: #{unet_forward.19} parent=0 // pred_check
    _
  $region11: #{unet_forward.19} parent=0 // pred_check_branch
    %14 = sbr.rel (0) target = $region13
  $region12: #{unet_forward.19} parent=0 // pred_region
    _
  $region13: #{unet_forward.19} parent=0 // pred_fallthru
    _
  // Predicated region
  $region14: #{unet_forward.19} parent=0 // pred_check
    _
  $region15: #{unet_forward.19} parent=0 // pred_check_branch
    %16 = sbr.rel (0) target = $region17
  $region16: #{unet_forward.19} parent=0 // pred_region
    _
  $region17: #{unet_forward.19} parent=0 // pred_fallthru
    _
  %v18 = vld [vmem:[%s1] sm:$0xf]
  %v19 = vld [vmem:[%s0] sm:$0xff]
  %v20 = vld [vmem:[%s0 + $0x8] sm:$0xff]
  %v21 = vld [vmem:[%s0 + $0x10] sm:$0xff]
  %v22 = vld [vmem:[%s0 + $0x18] sm:$0xff]
  %v23 = vld [vmem:[%s0 + $0x20] sm:$0xff]
  %v24 = vld [vmem:[%s0 + $0x28] sm:$0xff]
  %v25 = vld [vmem:[%s0 + $0x30] sm:$0xff]
  %v26 = vld [vmem:[%s0 + $0x38] sm:$0xff]
  %v27 = vld [vmem:[%s0 + $0x40] sm:$0xff]
  %v28 = vld [vmem:[%s0 + $0x48] sm:$0xff]
  %v29 = vld [vmem:[%s0 + $0x50] sm:$0xff]
  %v30 = vld [vmem:[%s0 + $0x58] sm:$0xff]
  %v31 = vld [vmem:[%s0 + $0x60] sm:$0xff]
  %v32 = vld [vmem:[%s0 + $0x68] sm:$0xff]
  %v33 = vld [vmem:[%s0 + $0x70] sm:$0xff]
  %v34 = vld [vmem:[%s0 + $0x78] sm:$0xff]
  %v35 = vld [vmem:[%s0 + $0x80] sm:$0xff]
  %v36 = vld [vmem:[%s0 + $0x88] sm:$0xff]
  %v55 = vunpack.c.l.b16 %v19
  %v56 = vunpack.c.h.b16 %v19
  %v57 = vunpack.c.l.b16 %v20
  %v58 = vunpack.c.h.b16 %v20
  %v59 = vunpack.c.l.b16 %v21
  %v60 = vunpack.c.h.b16 %v21
  %v61 = vunpack.c.l.b16 %v22
  %v62 = vunpack.c.h.b16 %v22
  %v63 = vunpack.c.l.b16 %v23
  %v64 = vunpack.c.h.b16 %v23
  %v65 = vunpack.c.l.b16 %v24
  %v66 = vunpack.c.h.b16 %v24
  %v67 = vunpack.c.l.b16 %v25
  %v68 = vunpack.c.h.b16 %v25
  %v69 = vunpack.c.l.b16 %v26
  %v70 = vunpack.c.h.b16 %v26
  %v71 = vunpack.c.l.b16 %v27
  %v72 = vunpack.c.h.b16 %v27
  %v73 = vunpack.c.l.b16 %v28
  %v74 = vunpack.c.h.b16 %v28
  %v75 = vunpack.c.l.b16 %v29
  %v76 = vunpack.c.h.b16 %v29
  %v77 = vunpack.c.l.b16 %v30
  %v78 = vunpack.c.h.b16 %v30
  %v79 = vunpack.c.l.b16 %v31
  %v80 = vunpack.c.h.b16 %v31
  %v81 = vunpack.c.l.b16 %v32
  %v82 = vunpack.c.h.b16 %v32
  %v83 = vunpack.c.l.b16 %v33
  %v84 = vunpack.c.h.b16 %v33
  %v85 = vunpack.c.l.b16 %v34
  %v86 = vunpack.c.h.b16 %v34
  %v87 = vunpack.c.l.b16 %v35
  %v88 = vunpack.c.h.b16 %v35
  %v89 = vunpack.c.l.b16 %v36
  %v90 = vunpack.c.h.b16 %v36
  %v91 = vpack.c.b16 %v59, %v55
  %v92 = vpack.c.b16 %v60, %v56
  %v93 = vpack.c.b16 %v61, %v57
  %v94 = vpack.c.b16 %v62, %v58
  %v95 = vpack.c.b16 %v67, %v63
  %v96 = vpack.c.b16 %v68, %v64
  %v97 = vpack.c.b16 %v69, %v65
  %v98 = vpack.c.b16 %v70, %v66
  %v99 = vpack.c.b16 %v75, %v71
  %v100 = vpack.c.b16 %v76, %v72
  %v101 = vpack.c.b16 %v77, %v73
  %v102 = vpack.c.b16 %v78, %v74
  %v103 = vpack.c.b16 %v83, %v79
  %v104 = vpack.c.b16 %v84, %v80
  %v105 = vpack.c.b16 %v85, %v81
  %v106 = vpack.c.b16 %v86, %v82
  %v107 = vpack.c.b16 %v87, %v87
  %v108 = vpack.c.b16 %v88, %v88
  %v109 = vpack.c.b16 %v89, %v89
  %v110 = vpack.c.b16 %v90, %v90
  %vm127 = vcmask 588800
  %v129 = vsel %vm127, %v18, 0
  %vm131 = vcmask 1043456
  %v133 = vsel %vm131, %v107, 0
  %v136 = vsel %vm131, %v108, 0
  %v139 = vsel %vm131, %v109, 0
  %v142 = vsel %vm131, %v110, 0
  %144 = vmatpush.bf16.msra.mxu0 0
  %145 = vmatpush.bf16.msra.mxu0 0
  %146 = vmatpush.bf16.msra.mxu0 0
  %147 = vmatpush.bf16.msra.mxu0 %v133
  %148 = vmatpush.bf16.msra.mxu0 %v103
  %149 = vmatpush.bf16.msra.mxu0 %v99
  %150 = vmatpush.bf16.msra.mxu0 %v95
  %151 = vmatpush.bf16.msra.mxu0 %v91
  %152 = vmatmul.bf16.gmra.mxu0 %v129
  %v153 = vpop.f32.mrf.mxu0
  %v154 = vadd.f32 0.0, %v153
  %v155 = vpop.f32.mrf.mxu0
  %156 = vdwg.mxu0
  %157 = vmatpush.bf16.msra.mxu0 0
  %158 = vmatpush.bf16.msra.mxu0 0
  %159 = vmatpush.bf16.msra.mxu0 0
  %160 = vmatpush.bf16.msra.mxu0 %v136
  %161 = vmatpush.bf16.msra.mxu0 %v104
  %162 = vmatpush.bf16.msra.mxu0 %v100
  %163 = vmatpush.bf16.msra.mxu0 %v96
  %164 = vmatpush.bf16.msra.mxu0 %v92
  %165 = vmatmul.bf16.gmra.mxu0 %v129
  %v166 = vpop.f32.mrf.mxu0
  %v167 = vadd.f32 0.0, %v166
  %v168 = vpop.f32.mrf.mxu0
  %169 = vdwg.mxu0
  %170 = vmatpush.bf16.msra.mxu0 0
  %171 = vmatpush.bf16.msra.mxu0 0
  %172 = vmatpush.bf16.msra.mxu0 0
  %173 = vmatpush.bf16.msra.mxu0 %v139
  %174 = vmatpush.bf16.msra.mxu0 %v105
  %175 = vmatpush.bf16.msra.mxu0 %v101
  %176 = vmatpush.bf16.msra.mxu0 %v97
  %177 = vmatpush.bf16.msra.mxu0 %v93
  %178 = vmatmul.bf16.gmra.mxu0 %v129
  %v179 = vpop.f32.mrf.mxu0
  %v180 = vadd.f32 0.0, %v179
  %v181 = vpop.f32.mrf.mxu0
  %182 = vdwg.mxu0
  %183 = vmatpush.bf16.msra.mxu0 0
  %184 = vmatpush.bf16.msra.mxu0 0
  %185 = vmatpush.bf16.msra.mxu0 0
  %186 = vmatpush.bf16.msra.mxu0 %v142
  %187 = vmatpush.bf16.msra.mxu0 %v106
  %188 = vmatpush.bf16.msra.mxu0 %v102
  %189 = vmatpush.bf16.msra.mxu0 %v98
  %190 = vmatpush.bf16.msra.mxu0 %v94
  %191 = vmatmul.bf16.gmra.mxu0 %v129
  %v192 = vpop.f32.mrf.mxu0
  %v193 = vadd.f32 0.0, %v192
  %v194 = vpop.f32.mrf.mxu0
  %195 = vdwg.mxu0
  %v196 = vadd.f32 %v154, %v167
  %v197 = vadd.f32 %v196, %v180
  %v198 = vadd.f32 %v197, %v193
  %199 = vadd.xlane.f32.xlu0 %v198
  %v200 = vpop.xlane.xlu0 %199
  %v201 = vmul.f32 %v200, 0.001953125
  %v202 = vmul.f32 %v154, %v154
  %v203 = vmul.f32 %v167, %v167
  %v204 = vmul.f32 %v180, %v180
  %v205 = vmul.f32 %v193, %v193
  %v206 = vadd.f32 %v202, %v203
  %v207 = vadd.f32 %v206, %v204
  %v208 = vadd.f32 %v207, %v205
  %209 = vadd.xlane.f32.xlu0 %v208
  %v210 = vpop.xlane.xlu0 %209
  %v211 = vmul.f32 %v210, 0.001953125
  %v212 = vmul.f32 %v201, %v201
  %v213 = vsub.f32 %v211, %v212
  %v214 = vmax.f32 %v213, 0.0
  %v215 = vld [vmem:[%s2] sm:$0xff]
  %v216 = vadd.f32 %v214, 1e-05
  %v217 = vrsqrt.pop %v216
  %v218 = vmul.f32 %v217, %v216
  %v219 = vmul.f32 %v218, %v217
  %v220 = vmul.f32 0.5, %v219
  %v221 = vsub.f32 1.5, %v220
  %v222 = vmul.f32 %v217, %v221
  %vm223 = vweird.f32 %v216
  %vm224 = vweird.f32 %v217
  %vm225 = vmor %vm223, %vm224
  %v226 = vsel %vm225, %v217, %v222
  %v227 = vmul.f32 %v215, %v226
  %v228 = vld [vmem:[%s3] sm:$0xff]
  %v229 = vmul.f32 %v201, %v227
  %v230 = vsub.f32 %v228, %v229
  %232 = vset.pattern.permute.xlu0 0
  %233 = vperm.xlu0 %232, %v227
  %v234 = vpop.permute.xlu0 %233
  %v236 = vmul.f32 %v154, %v234
  %v237 = vmul.f32 %v167, %v234
  %v238 = vmul.f32 %v180, %v234
  %v239 = vmul.f32 %v193, %v234
  %241 = vset.pattern.permute.xlu0 0
  %242 = vperm.xlu0 %241, %v230
  %v243 = vpop.permute.xlu0 %242
  %v245 = vadd.f32 %v236, %v243
  %v246 = vadd.f32 %v237, %v243
  %v247 = vadd.f32 %v238, %v243
  %v248 = vadd.f32 %v239, %v243
  %vm249 = vcmp.ge.f32.partialorder %v245, 0.0
  %vm250 = vcmp.ge.f32.partialorder %v246, 0.0
  %vm251 = vcmp.ge.f32.partialorder %v247, 0.0
  %vm252 = vcmp.ge.f32.partialorder %v248, 0.0
  %v253 = vmul.f32 %v245, 0.01
  %v254 = vmul.f32 %v246, 0.01
  %v255 = vmul.f32 %v247, 0.01
  %v256 = vmul.f32 %v248, 0.01
  %v257 = vsel %vm249, %v245, %v253
  %v258 = vsel %vm250, %v246, %v254
  %v259 = vsel %vm251, %v247, %v255
  %v260 = vsel %vm252, %v248, %v256
  %261 = vst [vmem:[%s4] sm:$0xff] %v257
  %262 = vst [vmem:[%s4 + $0x8] sm:$0xff] %v258
  %263 = vst [vmem:[%s4 + $0x10] sm:$0xff] %v259
  %264 = vst [vmem:[%s4 + $0x18] sm:$0xff] %v260
  // Predicated region
  $region18: #{unet_forward.19} parent=0 // pred_check
    _
  $region19: #{unet_forward.19} parent=0 // pred_check_branch
    %266 = sbr.rel (0) target = $region21
  $region20: #{unet_forward.19} parent=0 // pred_region
    _
  $region21: #{unet_forward.19} parent=0 // pred_fallthru
    _
  // Predicated region
  $region22: #{unet_forward.19} parent=0 // pred_check
    _
  $region23: #{unet_forward.19} parent=0 // pred_check_branch
    %268 = sbr.rel (0) target = $region25
  $region24: #{unet_forward.19} parent=0 // pred_region
    _
  $region25: #{unet_forward.19} parent=0 // pred_fallthru
    _

// kernel: unet_forward.20
$region0: #{unet_forward.20}
  #allocation0 [shape = 'u32[]', space=smem, size = 0x4, offset = 0x4, fixed_abs, tag = 'smem constant byte address 0x4 - core index']
  #allocation1 [shape = 'u32[72,128]{1,0:T(1,128)}', space=vmem, size = 0x9000, scoped, tag = 'internal scratch']
  %s0 = inlined_call_operand.vmem [shape: bf16[72,512], index: 0, kind: input, shape index: {}]
  %s1 = inlined_call_operand.vmem [shape: bf16[8,72], index: 1, kind: input, shape index: {}]
  %s2 = inlined_call_operand.vmem [shape: f32[8,1], index: 2, kind: input, shape index: {}]
  %s3 = inlined_call_operand.vmem [shape: f32[8,1], index: 3, kind: input, shape index: {}]
  %s4 = inlined_call_operand.vmem [shape: f32[8,512], index: 4, kind: input, shape index: {}]
  %s5 = inlined_call_operand.vmem [shape: f32[8,512], index: 5, kind: output, shape index: {}]
  %s6 = sld [smem:[#allocation0]]
  $region30: #{unet_forward.20} parent=0
    _
  %s8 = ssub.s32 1, %s6
  %s9 = scalar_select 0, %s8, %s6
  // Predicated region
  $region2: #{unet_forward.20} parent=0 // pred_check
    _
  $region3: #{unet_forward.20} parent=0 // pred_check_branch
    %11 = sbr.rel (0) target = $region5
  $region4: #{unet_forward.20} parent=0 // pred_region
    _
  $region5: #{unet_forward.20} parent=0 // pred_fallthru
    _
  // Predicated region
  $region6: #{unet_forward.20} parent=0 // pred_check
    _
  $region7: #{unet_forward.20} parent=0 // pred_check_branch
    %13 = sbr.rel (0) target = $region9
  $region8: #{unet_forward.20} parent=0 // pred_region
    _
  $region9: #{unet_forward.20} parent=0 // pred_fallthru
    _
  // Predicated region
  $region10: #{unet_forward.20} parent=0 // pred_check
    _
  $region11: #{unet_forward.20} parent=0 // pred_check_branch
    %15 = sbr.rel (0) target = $region13
  $region12: #{unet_forward.20} parent=0 // pred_region
    _
  $region13: #{unet_forward.20} parent=0 // pred_fallthru
    _
  // Predicated region
  $region14: #{unet_forward.20} parent=0 // pred_check
    _
  $region15: #{unet_forward.20} parent=0 // pred_check_branch
    %17 = sbr.rel (0) target = $region17
  $region16: #{unet_forward.20} parent=0 // pred_region
    _
  $region17: #{unet_forward.20} parent=0 // pred_fallthru
    _
  // Predicated region
  $region18: #{unet_forward.20} parent=0 // pred_check
    _
  $region19: #{unet_forward.20} parent=0 // pred_check_branch
    %19 = sbr.rel (0) target = $region21
  $region20: #{unet_forward.20} parent=0 // pred_region
    _
  $region21: #{unet_forward.20} parent=0 // pred_fallthru
    _
  %v21 = vld [vmem:[%s1] sm:$0xf]
  %v22 = vld [vmem:[%s0] sm:$0xff]
  %v23 = vld [vmem:[%s0 + $0x8] sm:$0xff]
  %v24 = vld [vmem:[%s0 + $0x10] sm:$0xff]
  %v25 = vld [vmem:[%s0 + $0x18] sm:$0xff]
  %v26 = vld [vmem:[%s0 + $0x20] sm:$0xff]
  %v27 = vld [vmem:[%s0 + $0x28] sm:$0xff]
  %v28 = vld [vmem:[%s0 + $0x30] sm:$0xff]
  %v29 = vld [vmem:[%s0 + $0x38] sm:$0xff]
  %v30 = vld [vmem:[%s0 + $0x40] sm:$0xff]
  %v31 = vld [vmem:[%s0 + $0x48] sm:$0xff]
  %v32 = vld [vmem:[%s0 + $0x50] sm:$0xff]
  %v33 = vld [vmem:[%s0 + $0x58] sm:$0xff]
  %v34 = vld [vmem:[%s0 + $0x60] sm:$0xff]
  %v35 = vld [vmem:[%s0 + $0x68] sm:$0xff]
  %v36 = vld [vmem:[%s0 + $0x70] sm:$0xff]
  %v37 = vld [vmem:[%s0 + $0x78] sm:$0xff]
  %v38 = vld [vmem:[%s0 + $0x80] sm:$0xff]
  %v39 = vld [vmem:[%s0 + $0x88] sm:$0xff]
  %v58 = vunpack.c.l.b16 %v22
  %v59 = vunpack.c.h.b16 %v22
  %v60 = vunpack.c.l.b16 %v23
  %v61 = vunpack.c.h.b16 %v23
  %v62 = vunpack.c.l.b16 %v24
  %v63 = vunpack.c.h.b16 %v24
  %v64 = vunpack.c.l.b16 %v25
  %v65 = vunpack.c.h.b16 %v25
  %v66 = vunpack.c.l.b16 %v26
  %v67 = vunpack.c.h.b16 %v26
  %v68 = vunpack.c.l.b16 %v27
  %v69 = vunpack.c.h.b16 %v27
  %v70 = vunpack.c.l.b16 %v28
  %v71 = vunpack.c.h.b16 %v28
  %v72 = vunpack.c.l.b16 %v29
  %v73 = vunpack.c.h.b16 %v29
  %v74 = vunpack.c.l.b16 %v30
  %v75 = vunpack.c.h.b16 %v30
  %v76 = vunpack.c.l.b16 %v31
  %v77 = vunpack.c.h.b16 %v31
  %v78 = vunpack.c.l.b16 %v32
  %v79 = vunpack.c.h.b16 %v32
  %v80 = vunpack.c.l.b16 %v33
  %v81 = vunpack.c.h.b16 %v33
  %v82 = vunpack.c.l.b16 %v34
  %v83 = vunpack.c.h.b16 %v34
  %v84 = vunpack.c.l.b16 %v35
  %v85 = vunpack.c.h.b16 %v35
  %v86 = vunpack.c.l.b16 %v36
  %v87 = vunpack.c.h.b16 %v36
  %v88 = vunpack.c.l.b16 %v37
  %v89 = vunpack.c.h.b16 %v37
  %v90 = vunpack.c.l.b16 %v38
  %v91 = vunpack.c.h.b16 %v38
  %v92 = vunpack.c.l.b16 %v39
  %v93 = vunpack.c.h.b16 %v39
  %v94 = vpack.c.b16 %v62, %v58
  %v95 = vpack.c.b16 %v63, %v59
  %v96 = vpack.c.b16 %v64, %v60
  %v97 = vpack.c.b16 %v65, %v61
  %v98 = vpack.c.b16 %v70, %v66
  %v99 = vpack.c.b16 %v71, %v67
  %v100 = vpack.c.b16 %v72, %v68
  %v101 = vpack.c.b16 %v73, %v69
  %v102 = vpack.c.b16 %v78, %v74
  %v103 = vpack.c.b16 %v79, %v75
  %v104 = vpack.c.b16 %v80, %v76
  %v105 = vpack.c.b16 %v81, %v77
  %v106 = vpack.c.b16 %v86, %v82
  %v107 = vpack.c.b16 %v87, %v83
  %v108 = vpack.c.b16 %v88, %v84
  %v109 = vpack.c.b16 %v89, %v85
  %v110 = vpack.c.b16 %v90, %v90
  %v111 = vpack.c.b16 %v91, %v91
  %v112 = vpack.c.b16 %v92, %v92
  %v113 = vpack.c.b16 %v93, %v93
  %vm130 = vcmask 588800
  %v132 = vsel %vm130, %v21, 0
  %vm134 = vcmask 1043456
  %v136 = vsel %vm134, %v110, 0
  %v139 = vsel %vm134, %v111, 0
  %v142 = vsel %vm134, %v112, 0
  %v145 = vsel %vm134, %v113, 0
  %147 = vmatpush.bf16.msra.mxu0 0
  %148 = vmatpush.bf16.msra.mxu0 0
  %149 = vmatpush.bf16.msra.mxu0 0
  %150 = vmatpush.bf16.msra.mxu0 %v136
  %151 = vmatpush.bf16.msra.mxu0 %v106
  %152 = vmatpush.bf16.msra.mxu0 %v102
  %153 = vmatpush.bf16.msra.mxu0 %v98
  %154 = vmatpush.bf16.msra.mxu0 %v94
  %155 = vmatmul.bf16.gmra.mxu0 %v132
  %v156 = vpop.f32.mrf.mxu0
  %v157 = vadd.f32 0.0, %v156
  %v158 = vpop.f32.mrf.mxu0
  %159 = vdwg.mxu0
  %160 = vmatpush.bf16.msra.mxu0 0
  %161 = vmatpush.bf16.msra.mxu0 0
  %162 = vmatpush.bf16.msra.mxu0 0
  %163 = vmatpush.bf16.msra.mxu0 %v139
  %164 = vmatpush.bf16.msra.mxu0 %v107
  %165 = vmatpush.bf16.msra.mxu0 %v103
  %166 = vmatpush.bf16.msra.mxu0 %v99
  %167 = vmatpush.bf16.msra.mxu0 %v95
  %168 = vmatmul.bf16.gmra.mxu0 %v132
  %v169 = vpop.f32.mrf.mxu0
  %v170 = vadd.f32 0.0, %v169
  %v171 = vpop.f32.mrf.mxu0
  %172 = vdwg.mxu0
  %173 = vmatpush.bf16.msra.mxu0 0
  %174 = vmatpush.bf16.msra.mxu0 0
  %175 = vmatpush.bf16.msra.mxu0 0
  %176 = vmatpush.bf16.msra.mxu0 %v142
  %177 = vmatpush.bf16.msra.mxu0 %v108
  %178 = vmatpush.bf16.msra.mxu0 %v104
  %179 = vmatpush.bf16.msra.mxu0 %v100
  %180 = vmatpush.bf16.msra.mxu0 %v96
  %181 = vmatmul.bf16.gmra.mxu0 %v132
  %v182 = vpop.f32.mrf.mxu0
  %v183 = vadd.f32 0.0, %v182
  %v184 = vpop.f32.mrf.mxu0
  %185 = vdwg.mxu0
  %186 = vmatpush.bf16.msra.mxu0 0
  %187 = vmatpush.bf16.msra.mxu0 0
  %188 = vmatpush.bf16.msra.mxu0 0
  %189 = vmatpush.bf16.msra.mxu0 %v145
  %190 = vmatpush.bf16.msra.mxu0 %v109
  %191 = vmatpush.bf16.msra.mxu0 %v105
  %192 = vmatpush.bf16.msra.mxu0 %v101
  %193 = vmatpush.bf16.msra.mxu0 %v97
  %194 = vmatmul.bf16.gmra.mxu0 %v132
  %v195 = vpop.f32.mrf.mxu0
  %v196 = vadd.f32 0.0, %v195
  %v197 = vpop.f32.mrf.mxu0
  %198 = vdwg.mxu0
  %v199 = vadd.f32 %v157, %v170
  %v200 = vadd.f32 %v199, %v183
  %v201 = vadd.f32 %v200, %v196
  %202 = vadd.xlane.f32.xlu0 %v201
  %v203 = vpop.xlane.xlu0 %202
  %v204 = vmul.f32 %v203, 0.001953125
  %v205 = vmul.f32 %v157, %v157
  %v206 = vmul.f32 %v170, %v170
  %v207 = vmul.f32 %v183, %v183
  %v208 = vmul.f32 %v196, %v196
  %v209 = vadd.f32 %v205, %v206
  %v210 = vadd.f32 %v209, %v207
  %v211 = vadd.f32 %v210, %v208
  %212 = vadd.xlane.f32.xlu0 %v211
  %v213 = vpop.xlane.xlu0 %212
  %v214 = vmul.f32 %v213, 0.001953125
  %v215 = vmul.f32 %v204, %v204
  %v216 = vsub.f32 %v214, %v215
  %v217 = vmax.f32 %v216, 0.0
  %v218 = vld [vmem:[%s2] sm:$0xff]
  %v219 = vadd.f32 %v217, 1e-05
  %v220 = vrsqrt.pop %v219
  %v221 = vmul.f32 %v220, %v219
  %v222 = vmul.f32 %v221, %v220
  %v223 = vmul.f32 0.5, %v222
  %v224 = vsub.f32 1.5, %v223
  %v225 = vmul.f32 %v220, %v224
  %vm226 = vweird.f32 %v219
  %vm227 = vweird.f32 %v220
  %vm228 = vmor %vm226, %vm227
  %v229 = vsel %vm228, %v220, %v225
  %v230 = vmul.f32 %v218, %v229
  %v231 = vld [vmem:[%s3] sm:$0xff]
  %v232 = vmul.f32 %v204, %v230
  %v233 = vsub.f32 %v231, %v232
  %235 = vset.pattern.permute.xlu0 0
  %236 = vperm.xlu0 %235, %v230
  %v237 = vpop.permute.xlu0 %236
  %v239 = vmul.f32 %v157, %v237
  %v240 = vmul.f32 %v170, %v237
  %v241 = vmul.f32 %v183, %v237
  %v242 = vmul.f32 %v196, %v237
  %244 = vset.pattern.permute.xlu0 0
  %245 = vperm.xlu0 %244, %v233
  %v246 = vpop.permute.xlu0 %245
  %v248 = vadd.f32 %v239, %v246
  %v249 = vadd.f32 %v240, %v246
  %v250 = vadd.f32 %v241, %v246
  %v251 = vadd.f32 %v242, %v246
  %v252 = vld [vmem:[%s4] sm:$0xff]
  %v253 = vld [vmem:[%s4 + $0x8] sm:$0xff]
  %v254 = vld [vmem:[%s4 + $0x10] sm:$0xff]
  %v255 = vld [vmem:[%s4 + $0x18] sm:$0xff]
  %v256 = vadd.f32 %v248, %v252
  %v257 = vadd.f32 %v249, %v253
  %v258 = vadd.f32 %v250, %v254
  %v259 = vadd.f32 %v251, %v255
  %vm260 = vcmp.ge.f32.partialorder %v256, 0.0
  %vm261 = vcmp.ge.f32.partialorder %v257, 0.0
  %vm262 = vcmp.ge.f32.partialorder %v258, 0.0
  %vm263 = vcmp.ge.f32.partialorder %v259, 0.0
  %v264 = vmul.f32 %v256, 0.01
  %v265 = vmul.f32 %v257, 0.01
  %v266 = vmul.f32 %v258, 0.01
  %v267 = vmul.f32 %v259, 0.01
  %v268 = vsel %vm260, %v256, %v264
  %v269 = vsel %vm261, %v257, %v265
  %v270 = vsel %vm262, %v258, %v266
  %v271 = vsel %vm263, %v259, %v267
  %272 = vst [vmem:[%s5] sm:$0xff] %v268
  %273 = vst [vmem:[%s5 + $0x8] sm:$0xff] %v269
  %274 = vst [vmem:[%s5 + $0x10] sm:$0xff] %v270
  %275 = vst [vmem:[%s5 + $0x18] sm:$0xff] %v271
  // Predicated region
  $region22: #{unet_forward.20} parent=0 // pred_check
    _
  $region23: #{unet_forward.20} parent=0 // pred_check_branch
    %277 = sbr.rel (0) target = $region25
  $region24: #{unet_forward.20} parent=0 // pred_region
    _
  $region25: #{unet_forward.20} parent=0 // pred_fallthru
    _
  // Predicated region
  $region26: #{unet_forward.20} parent=0 // pred_check
    _
  $region27: #{unet_forward.20} parent=0 // pred_check_branch
    %279 = sbr.rel (0) target = $region29
  $region28: #{unet_forward.20} parent=0 // pred_region
    _
  $region29: #{unet_forward.20} parent=0 // pred_fallthru
    _

// kernel: unet_forward.21
$region0: #{unet_forward.21}
  #allocation0 [shape = 'u32[]', space=smem, size = 0x4, offset = 0x4, fixed_abs, tag = 'smem constant byte address 0x4 - core index']
  #allocation1 [shape = 'u32[72,128]{1,0:T(1,128)}', space=vmem, size = 0x9000, scoped, tag = 'internal scratch']
  %s0 = inlined_call_operand.vmem [shape: bf16[8,8], index: 0, kind: input, shape index: {}]
  %s1 = inlined_call_operand.vmem [shape: bf16[8,128], index: 1, kind: input, shape index: {}]
  %s2 = inlined_call_operand.vmem [shape: f32[8,1], index: 2, kind: input, shape index: {}]
  %s3 = inlined_call_operand.vmem [shape: f32[8,128], index: 3, kind: output, shape index: {}]
  %s4 = sld [smem:[#allocation0]]
  $region22: #{unet_forward.21} parent=0
    _
  %s6 = ssub.s32 1, %s4
  %s7 = scalar_select 0, %s6, %s4
  // Predicated region
  $region2: #{unet_forward.21} parent=0 // pred_check
    _
  $region3: #{unet_forward.21} parent=0 // pred_check_branch
    %9 = sbr.rel (0) target = $region5
  $region4: #{unet_forward.21} parent=0 // pred_region
    _
  $region5: #{unet_forward.21} parent=0 // pred_fallthru
    _
  // Predicated region
  $region6: #{unet_forward.21} parent=0 // pred_check
    _
  $region7: #{unet_forward.21} parent=0 // pred_check_branch
    %11 = sbr.rel (0) target = $region9
  $region8: #{unet_forward.21} parent=0 // pred_region
    _
  $region9: #{unet_forward.21} parent=0 // pred_fallthru
    _
  // Predicated region
  $region10: #{unet_forward.21} parent=0 // pred_check
    _
  $region11: #{unet_forward.21} parent=0 // pred_check_branch
    %13 = sbr.rel (0) target = $region13
  $region12: #{unet_forward.21} parent=0 // pred_region
    _
  $region13: #{unet_forward.21} parent=0 // pred_fallthru
    _
  %v15 = vld [vmem:[%s0] sm:$0xf]
  %v16 = vld [vmem:[%s1] sm:$0xf]
  %v17 = vld [vmem:[%s2] sm:$0xff]
  %19 = vset.pattern.permute.xlu0 0
  %20 = vperm.xlu0 %19, %v17
  %v21 = vpop.permute.xlu0 %20
  %vm23 = vcmask 64512
  %v25 = vsel %vm23, %v15, 0
  %vm27 = vcmask 1043456
  %v29 = vsel %vm27, %v16, 0
  %31 = vmatpush.bf16.msra.mxu0 0
  %32 = vmatpush.bf16.msra.mxu0 0
  %33 = vmatpush.bf16.msra.mxu0 0
  %34 = vmatpush.bf16.msra.mxu0 0
  %35 = vmatpush.bf16.msra.mxu0 0
  %36 = vmatpush.bf16.msra.mxu0 0
  %37 = vmatpush.bf16.msra.mxu0 0
  %38 = vmatpush.bf16.msra.mxu0 %v29
  %39 = vmatmul.bf16.gmra.mxu0 %v25
  %v40 = vpop.f32.mrf.mxu0
  %v41 = vadd.f32 %v21, %v40
  %v42 = vpop.f32.mrf.mxu0
  %43 = vdwg.mxu0
  %vm44 = vcmp.ge.f32.partialorder %v41, 0.0
  %v45 = vmul.f32 %v41, 0.01
  %v46 = vsel %vm44, %v41, %v45
  %47 = vst [vmem:[%s3] sm:$0xff] %v46
  // Predicated region
  $region14: #{unet_forward.21} parent=0 // pred_check
    _
  $region15: #{unet_forward.21} parent=0 // pred_check_branch
    %49 = sbr.rel (0) target = $region17
  $region16: #{unet_forward.21} parent=0 // pred_region
    _
  $region17: #{unet_forward.21} parent=0 // pred_fallthru
    _
  // Predicated region
  $region18: #{unet_forward.21} parent=0 // pred_check
    _
  $region19: #{unet_forward.21} parent=0 // pred_check_branch
    %51 = sbr.rel (0) target = $region21
  $region20: #{unet_forward.21} parent=0 // pred_region
    _
  $region21: #{unet_forward.21} parent=0 // pred_fallthru
    _

// kernel: unet_forward.22
$region0: #{unet_forward.22}
  #allocation0 [shape = 'u32[]', space=smem, size = 0x4, offset = 0x4, fixed_abs, tag = 'smem constant byte address 0x4 - core index']
  #allocation1 [shape = 'u32[72,128]{1,0:T(1,128)}', space=vmem, size = 0x9000, scoped, tag = 'internal scratch']
  %s0 = inlined_call_operand.vmem [shape: bf16[72,128], index: 0, kind: input, shape index: {}]
  %s1 = inlined_call_operand.vmem [shape: bf16[16,72], index: 1, kind: input, shape index: {}]
  %s2 = inlined_call_operand.vmem [shape: f32[16,1], index: 2, kind: input, shape index: {}]
  %s3 = inlined_call_operand.vmem [shape: f32[16,1], index: 3, kind: input, shape index: {}]
  %s4 = inlined_call_operand.vmem [shape: f32[16,128], index: 4, kind: output, shape index: {}]
  %s5 = sld [smem:[#allocation0]]
  $region26: #{unet_forward.22} parent=0
    _
  %s7 = ssub.s32 1, %s5
  %s8 = scalar_select 0, %s7, %s5
  // Predicated region
  $region2: #{unet_forward.22} parent=0 // pred_check
    _
  $region3: #{unet_forward.22} parent=0 // pred_check_branch
    %10 = sbr.rel (0) target = $region5
  $region4: #{unet_forward.22} parent=0 // pred_region
    _
  $region5: #{unet_forward.22} parent=0 // pred_fallthru
    _
  // Predicated region
  $region6: #{unet_forward.22} parent=0 // pred_check
    _
  $region7: #{unet_forward.22} parent=0 // pred_check_branch
    %12 = sbr.rel (0) target = $region9
  $region8: #{unet_forward.22} parent=0 // pred_region
    _
  $region9: #{unet_forward.22} parent=0 // pred_fallthru
    _
  // Predicated region
  $region10: #{unet_forward.22} parent=0 // pred_check
    _
  $region11: #{unet_forward.22} parent=0 // pred_check_branch
    %14 = sbr.rel (0) target = $region13
  $region12: #{unet_forward.22} parent=0 // pred_region
    _
  $region13: #{unet_forward.22} parent=0 // pred_fallthru
    _
  // Predicated region
  $region14: #{unet_forward.22} parent=0 // pred_check
    _
  $region15: #{unet_forward.22} parent=0 // pred_check_branch
    %16 = sbr.rel (0) target = $region17
  $region16: #{unet_forward.22} parent=0 // pred_region
    _
  $region17: #{unet_forward.22} parent=0 // pred_fallthru
    _
  %v18 = vld [vmem:[%s1] sm:$0xf]
  %v19 = vld [vmem:[%s1 + $0x4] sm:$0xf]
  %v20 = vld [vmem:[%s0] sm:$0xf]
  %v21 = vld [vmem:[%s0 + $0x4] sm:$0xf]
  %v22 = vld [vmem:[%s0 + $0x8] sm:$0xf]
  %v23 = vld [vmem:[%s0 + $0xc] sm:$0xf]
  %v24 = vld [vmem:[%s0 + $0x10] sm:$0xf]
  %v25 = vld [vmem:[%s0 + $0x14] sm:$0xf]
  %v26 = vld [vmem:[%s0 + $0x18] sm:$0xf]
  %v27 = vld [vmem:[%s0 + $0x1c] sm:$0xf]
  %v28 = vld [vmem:[%s0 + $0x20] sm:$0xf]
  %v31 = vunpack.c.l.b16 %v18
  %v32 = vunpack.c.l.b16 %v19
  %v33 = vpack.c.b16 %v32, %v31
  %v43 = vunpack.c.l.b16 %v20
  %v44 = vunpack.c.l.b16 %v21
  %v45 = vunpack.c.l.b16 %v22
  %v46 = vunpack.c.l.b16 %v23
  %v47 = vunpack.c.l.b16 %v24
  %v48 = vunpack.c.l.b16 %v25
  %v49 = vunpack.c.l.b16 %v26
  %v50 = vunpack.c.l.b16 %v27
  %v51 = vunpack.c.l.b16 %v28
  %v52 = vpack.c.b16 %v44, %v43
  %v53 = vpack.c.b16 %v46, %v45
  %v54 = vpack.c.b16 %v48, %v47
  %v55 = vpack.c.b16 %v50, %v49
  %v56 = vpack.c.b16 %v51, %v51
  %vm61 = vcmask 588800
  %v63 = vsel %vm61, %v33, 0
  %vm65 = vcmask 1043456
  %v67 = vsel %vm65, %v56, 0
  %69 = vmatpush.bf16.msra.mxu0 0
  %70 = vmatpush.bf16.msra.mxu0 0
  %71 = vmatpush.bf16.msra.mxu0 0
  %72 = vmatpush.bf16.msra.mxu0 %v67
  %73 = vmatpush.bf16.msra.mxu0 %v55
  %74 = vmatpush.bf16.msra.mxu0 %v54
  %75 = vmatpush.bf16.msra.mxu0 %v53
  %76 = vmatpush.bf16.msra.mxu0 %v52
  %77 = vmatmul.bf16.gmra.mxu0 %v63
  %v78 = vpop.f32.mrf.mxu0
  %v79 = vadd.f32 0.0, %v78
  %v80 = vpop.f32.mrf.mxu0
  %v81 = vadd.f32 0.0, %v80
  %82 = vdwg.mxu0
  %83 = vadd.xlane.f32.xlu0 %v79
  %v84 = vpop.xlane.xlu0 %83
  %85 = vadd.xlane.f32.xlu0 %v81
  %v86 = vpop.xlane.xlu0 %85
  %v87 = vmul.f32 %v84, 0.0078125
  %v88 = vmul.f32 %v86, 0.0078125
  %v89 = vmul.f32 %v79, %v79
  %v90 = vmul.f32 %v81, %v81
  %91 = vadd.xlane.f32.xlu0 %v89
  %v92 = vpop.xlane.xlu0 %91
  %93 = vadd.xlane.f32.xlu0 %v90
  %v94 = vpop.xlane.xlu0 %93
  %v95 = vmul.f32 %v92, 0.0078125
  %v96 = vmul.f32 %v94, 0.0078125
  %v97 = vmul.f32 %v87, %v87
  %v98 = vmul.f32 %v88, %v88
  %v99 = vsub.f32 %v95, %v97
  %v100 = vsub.f32 %v96, %v98
  %v101 = vmax.f32 %v99, 0.0
  %v102 = vmax.f32 %v100, 0.0
  %v103 = vld [vmem:[%s2] sm:$0xff]
  %v104 = vld [vmem:[%s2 + $0x8] sm:$0xff]
  %v105 = vadd.f32 %v101, 1e-05
  %v106 = vadd.f32 %v102, 1e-05
  %v107 = vrsqrt.pop %v105
  %v108 = vmul.f32 %v107, %v105
  %v109 = vmul.f32 %v108, %v107
  %v110 = vmul.f32 0.5, %v109
  %v111 = vsub.f32 1.5, %v110
  %v112 = vmul.f32 %v107, %v111
  %vm113 = vweird.f32 %v105
  %vm114 = vweird.f32 %v107
  %vm115 = vmor %vm113, %vm114
  %v116 = vsel %vm115, %v107, %v112
  %v117 = vrsqrt.pop %v106
  %v118 = vmul.f32 %v117, %v106
  %v119 = vmul.f32 %v118, %v117
  %v120 = vmul.f32 0.5, %v119
  %v121 = vsub.f32 1.5, %v120
  %v122 = vmul.f32 %v117, %v121
  %vm123 = vweird.f32 %v106
  %vm124 = vweird.f32 %v117
  %vm125 = vmor %vm123, %vm124
  %v126 = vsel %vm125, %v117, %v122
  %v127 = vmul.f32 %v103, %v116
  %v128 = vmul.f32 %v104, %v126
  %v129 = vld [vmem:[%s3] sm:$0xff]
  %v130 = vld [vmem:[%s3 + $0x8] sm:$0xff]
  %v131 = vmul.f32 %v87, %v127
  %v132 = vmul.f32 %v88, %v128
  %v133 = vsub.f32 %v129, %v131
  %v134 = vsub.f32 %v130, %v132
  %136 = vset.pattern.permute.xlu0 0
  %137 = vperm.xlu0 %136, %v127
  %v138 = vpop.permute.xlu0 %137
  %141 = vset.pattern.permute.xlu0 0
  %142 = vperm.xlu0 %141, %v128
  %v143 = vpop.permute.xlu0 %142
  %v145 = vmul.f32 %v79, %v138
  %v146 = vmul.f32 %v81, %v143
  %148 = vset.pattern.permute.xlu0 0
  %149 = vperm.xlu0 %148, %v133
  %v150 = vpop.permute.xlu0 %149
  %153 = vset.pattern.permute.xlu0 0
  %154 = vperm.xlu0 %153, %v134
  %v155 = vpop.permute.xlu0 %154
  %v157 = vadd.f32 %v145, %v150
  %v158 = vadd.f32 %v146, %v155
  %vm159 = vcmp.ge.f32.partialorder %v157, 0.0
  %vm160 = vcmp.ge.f32.partialorder %v158, 0.0
  %v161 = vmul.f32 %v157, 0.01
  %v162 = vmul.f32 %v158, 0.01
  %v163 = vsel %vm159, %v157, %v161
  %v164 = vsel %vm160, %v158, %v162
  %165 = vst [vmem:[%s4] sm:$0xff] %v163
  %166 = vst [vmem:[%s4 + $0x8] sm:$0xff] %v164
  // Predicated region
  $region18: #{unet_forward.22} parent=0 // pred_check
    _
  $region19: #{unet_forward.22} parent=0 // pred_check_branch
    %168 = sbr.rel (0) target = $region21
  $region20: #{unet_forward.22} parent=0 // pred_region
    _
  $region21: #{unet_forward.22} parent=0 // pred_fallthru
    _
  // Predicated region
  $region22: #{unet_forward.22} parent=0 // pred_check
    _
  $region23: #{unet_forward.22} parent=0 // pred_check_branch
    %170 = sbr.rel (0) target = $region25
  $region24: #{unet_forward.22} parent=0 // pred_region
    _
  $region25: #{unet_forward.22} parent=0 // pred_fallthru
    _

// kernel: unet_forward.24
$region0: #{unet_forward.24}
  #allocation0 [shape = 'u32[]', space=smem, size = 0x4, offset = 0x4, fixed_abs, tag = 'smem constant byte address 0x4 - core index']
  #allocation1 [shape = 'u32[72,128]{1,0:T(1,128)}', space=vmem, size = 0x9000, scoped, tag = 'internal scratch']
  %s0 = inlined_call_operand.vmem [shape: bf16[144,128], index: 0, kind: input, shape index: {}]
  %s1 = inlined_call_operand.vmem [shape: bf16[16,144], index: 1, kind: input, shape index: {}]
  %s2 = inlined_call_operand.vmem [shape: f32[16,1], index: 2, kind: input, shape index: {}]
  %s3 = inlined_call_operand.vmem [shape: f32[16,1], index: 3, kind: input, shape index: {}]
  %s4 = inlined_call_operand.vmem [shape: f32[16,128], index: 4, kind: output, shape index: {}]
  %s5 = sld [smem:[#allocation0]]
  $region26: #{unet_forward.24} parent=0
    _
  %s7 = ssub.s32 1, %s5
  %s8 = scalar_select 0, %s7, %s5
  // Predicated region
  $region2: #{unet_forward.24} parent=0 // pred_check
    _
  $region3: #{unet_forward.24} parent=0 // pred_check_branch
    %10 = sbr.rel (0) target = $region5
  $region4: #{unet_forward.24} parent=0 // pred_region
    _
  $region5: #{unet_forward.24} parent=0 // pred_fallthru
    _
  // Predicated region
  $region6: #{unet_forward.24} parent=0 // pred_check
    _
  $region7: #{unet_forward.24} parent=0 // pred_check_branch
    %12 = sbr.rel (0) target = $region9
  $region8: #{unet_forward.24} parent=0 // pred_region
    _
  $region9: #{unet_forward.24} parent=0 // pred_fallthru
    _
  // Predicated region
  $region10: #{unet_forward.24} parent=0 // pred_check
    _
  $region11: #{unet_forward.24} parent=0 // pred_check_branch
    %14 = sbr.rel (0) target = $region13
  $region12: #{unet_forward.24} parent=0 // pred_region
    _
  $region13: #{unet_forward.24} parent=0 // pred_fallthru
    _
  // Predicated region
  $region14: #{unet_forward.24} parent=0 // pred_check
    _
  $region15: #{unet_forward.24} parent=0 // pred_check_branch
    %16 = sbr.rel (0) target = $region17
  $region16: #{unet_forward.24} parent=0 // pred_region
    _
  $region17: #{unet_forward.24} parent=0 // pred_fallthru
    _
  %v18 = vld [vmem:[%s1] sm:$0xff]
  %v19 = vld [vmem:[%s1 + $0x8] sm:$0xff]
  %v20 = vld [vmem:[%s0] sm:$0xf]
  %v21 = vld [vmem:[%s0 + $0x4] sm:$0xf]
  %v22 = vld [vmem:[%s0 + $0x8] sm:$0xf]
  %v23 = vld [vmem:[%s0 + $0xc] sm:$0xf]
  %v24 = vld [vmem:[%s0 + $0x10] sm:$0xf]
  %v25 = vld [vmem:[%s0 + $0x14] sm:$0xf]
  %v26 = vld [vmem:[%s0 + $0x18] sm:$0xf]
  %v27 = vld [vmem:[%s0 + $0x1c] sm:$0xf]
  %v28 = vld [vmem:[%s0 + $0x20] sm:$0xf]
  %v29 = vld [vmem:[%s0 + $0x24] sm:$0xf]
  %v30 = vld [vmem:[%s0 + $0x28] sm:$0xf]
  %v31 = vld [vmem:[%s0 + $0x2c] sm:$0xf]
  %v32 = vld [vmem:[%s0 + $0x30] sm:$0xf]
  %v33 = vld [vmem:[%s0 + $0x34] sm:$0xf]
  %v34 = vld [vmem:[%s0 + $0x38] sm:$0xf]
  %v35 = vld [vmem:[%s0 + $0x3c] sm:$0xf]
  %v36 = vld [vmem:[%s0 + $0x40] sm:$0xf]
  %v37 = vld [vmem:[%s0 + $0x44] sm:$0xf]
  %v40 = vunpack.c.l.b16 %v18
  %v41 = vunpack.c.h.b16 %v18
  %v42 = vunpack.c.l.b16 %v19
  %v43 = vunpack.c.h.b16 %v19
  %v44 = vpack.c.b16 %v42, %v40
  %v45 = vpack.c.b16 %v43, %v41
  %v65 = vunpack.c.l.b16 %v20
  %v66 = vunpack.c.l.b16 %v21
  %v67 = vunpack.c.l.b16 %v22
  %v68 = vunpack.c.l.b16 %v23
  %v69 = vunpack.c.l.b16 %v24
  %v70 = vunpack.c.l.b16 %v25
  %v71 = vunpack.c.l.b16 %v26
  %v72 = vunpack.c.l.b16 %v27
  %v73 = vunpack.c.l.b16 %v28
  %v74 = vunpack.c.l.b16 %v29
  %v75 = vunpack.c.l.b16 %v30
  %v76 = vunpack.c.l.b16 %v31
  %v77 = vunpack.c.l.b16 %v32
  %v78 = vunpack.c.l.b16 %v33
  %v79 = vunpack.c.l.b16 %v34
  %v80 = vunpack.c.l.b16 %v35
  %v81 = vunpack.c.l.b16 %v36
  %v82 = vunpack.c.l.b16 %v37
  %v83 = vpack.c.b16 %v66, %v65
  %v84 = vpack.c.b16 %v68, %v67
  %v85 = vpack.c.b16 %v70, %v69
  %v86 = vpack.c.b16 %v72, %v71
  %v87 = vpack.c.b16 %v74, %v73
  %v88 = vpack.c.b16 %v76, %v75
  %v89 = vpack.c.b16 %v78, %v77
  %v90 = vpack.c.b16 %v80, %v79
  %v91 = vpack.c.b16 %v82, %v81
  %vm101 = vcmask 130048
  %v103 = vsel %vm101, %v45, 0
  %105 = vmatpush.bf16.msra.mxu0 %v90
  %106 = vmatpush.bf16.msra.mxu0 %v89
  %107 = vmatpush.bf16.msra.mxu0 %v88
  %108 = vmatpush.bf16.msra.mxu0 %v87
  %109 = vmatpush.bf16.msra.mxu0 %v86
  %110 = vmatpush.bf16.msra.mxu0 %v85
  %111 = vmatpush.bf16.msra.mxu0 %v84
  %112 = vmatpush.bf16.msra.mxu0 %v83
  %113 = vmatmul.bf16.gmra.mxu0 %v44
  %v114 = vpop.f32.mrf.mxu0
  %v115 = vadd.f32 0.0, %v114
  %v116 = vpop.f32.mrf.mxu0
  %v117 = vadd.f32 0.0, %v116
  %118 = vdwg.mxu0
  %119 = vmatpush.bf16.msra.mxu0 0
  %120 = vmatpush.bf16.msra.mxu0 0
  %121 = vmatpush.bf16.msra.mxu0 0
  %122 = vmatpush.bf16.msra.mxu0 0
  %123 = vmatpush.bf16.msra.mxu0 0
  %124 = vmatpush.bf16.msra.mxu0 0
  %125 = vmatpush.bf16.msra.mxu0 0
  %126 = vmatpush.bf16.msra.mxu0 %v91
  %127 = vmatmul.bf16.gmra.mxu0 %v103
  %v128 = vpop.f32.mrf.mxu0
  %v129 = vadd.f32 %v115, %v128
  %v130 = vpop.f32.mrf.mxu0
  %v131 = vadd.f32 %v117, %v130
  %132 = vdwg.mxu0
  %133 = vadd.xlane.f32.xlu0 %v129
  %v134 = vpop.xlane.xlu0 %133
  %135 = vadd.xlane.f32.xlu0 %v131
  %v136 = vpop.xlane.xlu0 %135
  %v137 = vmul.f32 %v134, 0.0078125
  %v138 = vmul.f32 %v136, 0.0078125
  %v139 = vmul.f32 %v129, %v129
  %v140 = vmul.f32 %v131, %v131
  %141 = vadd.xlane.f32.xlu0 %v139
  %v142 = vpop.xlane.xlu0 %141
  %143 = vadd.xlane.f32.xlu0 %v140
  %v144 = vpop.xlane.xlu0 %143
  %v145 = vmul.f32 %v142, 0.0078125
  %v146 = vmul.f32 %v144, 0.0078125
  %v147 = vmul.f32 %v137, %v137
  %v148 = vmul.f32 %v138, %v138
  %v149 = vsub.f32 %v145, %v147
  %v150 = vsub.f32 %v146, %v148
  %v151 = vmax.f32 %v149, 0.0
  %v152 = vmax.f32 %v150, 0.0
  %v153 = vld [vmem:[%s2] sm:$0xff]
  %v154 = vld [vmem:[%s2 + $0x8] sm:$0xff]
  %v155 = vadd.f32 %v151, 1e-05
  %v156 = vadd.f32 %v152, 1e-05
  %v157 = vrsqrt.pop %v155
  %v158 = vmul.f32 %v157, %v155
  %v159 = vmul.f32 %v158, %v157
  %v160 = vmul.f32 0.5, %v159
  %v161 = vsub.f32 1.5, %v160
  %v162 = vmul.f32 %v157, %v161
  %vm163 = vweird.f32 %v155
  %vm164 = vweird.f32 %v157
  %vm165 = vmor %vm163, %vm164
  %v166 = vsel %vm165, %v157, %v162
  %v167 = vrsqrt.pop %v156
  %v168 = vmul.f32 %v167, %v156
  %v169 = vmul.f32 %v168, %v167
  %v170 = vmul.f32 0.5, %v169
  %v171 = vsub.f32 1.5, %v170
  %v172 = vmul.f32 %v167, %v171
  %vm173 = vweird.f32 %v156
  %vm174 = vweird.f32 %v167
  %vm175 = vmor %vm173, %vm174
  %v176 = vsel %vm175, %v167, %v172
  %v177 = vmul.f32 %v153, %v166
  %v178 = vmul.f32 %v154, %v176
  %v179 = vld [vmem:[%s3] sm:$0xff]
  %v180 = vld [vmem:[%s3 + $0x8] sm:$0xff]
  %v181 = vmul.f32 %v137, %v177
  %v182 = vmul.f32 %v138, %v178
  %v183 = vsub.f32 %v179, %v181
  %v184 = vsub.f32 %v180, %v182
  %186 = vset.pattern.permute.xlu0 0
  %187 = vperm.xlu0 %186, %v177
  %v188 = vpop.permute.xlu0 %187
  %191 = vset.pattern.permute.xlu0 0
  %192 = vperm.xlu0 %191, %v178
  %v193 = vpop.permute.xlu0 %192
  %v195 = vmul.f32 %v129, %v188
  %v196 = vmul.f32 %v131, %v193
  %198 = vset.pattern.permute.xlu0 0
  %199 = vperm.xlu0 %198, %v183
  %v200 = vpop.permute.xlu0 %199
  %203 = vset.pattern.permute.xlu0 0
  %204 = vperm.xlu0 %203, %v184
  %v205 = vpop.permute.xlu0 %204
  %v207 = vadd.f32 %v195, %v200
  %v208 = vadd.f32 %v196, %v205
  %vm209 = vcmp.ge.f32.partialorder %v207, 0.0
  %vm210 = vcmp.ge.f32.partialorder %v208, 0.0
  %v211 = vmul.f32 %v207, 0.01
  %v212 = vmul.f32 %v208, 0.01
  %v213 = vsel %vm209, %v207, %v211
  %v214 = vsel %vm210, %v208, %v212
  %215 = vst [vmem:[%s4] sm:$0xff] %v213
  %216 = vst [vmem:[%s4 + $0x8] sm:$0xff] %v214
  // Predicated region
  $region18: #{unet_forward.24} parent=0 // pred_check
    _
  $region19: #{unet_forward.24} parent=0 // pred_check_branch
    %218 = sbr.rel (0) target = $region21
  $region20: #{unet_forward.24} parent=0 // pred_region
    _
  $region21: #{unet_forward.24} parent=0 // pred_fallthru
    _
  // Predicated region
  $region22: #{unet_forward.24} parent=0 // pred_check
    _
  $region23: #{unet_forward.24} parent=0 // pred_check_branch
    %220 = sbr.rel (0) target = $region25
  $region24: #{unet_forward.24} parent=0 // pred_region
    _
  $region25: #{unet_forward.24} parent=0 // pred_fallthru
    _

// kernel: unet_forward.25
$region0: #{unet_forward.25}
  #allocation0 [shape = 'u32[]', space=smem, size = 0x4, offset = 0x4, fixed_abs, tag = 'smem constant byte address 0x4 - core index']
  #allocation1 [shape = 'u32[72,128]{1,0:T(1,128)}', space=vmem, size = 0x9000, scoped, tag = 'internal scratch']
  %s0 = inlined_call_operand.vmem [shape: bf16[144,128], index: 0, kind: input, shape index: {}]
  %s1 = inlined_call_operand.vmem [shape: bf16[16,144], index: 1, kind: input, shape index: {}]
  %s2 = inlined_call_operand.vmem [shape: f32[16,1], index: 2, kind: input, shape index: {}]
  %s3 = inlined_call_operand.vmem [shape: f32[16,1], index: 3, kind: input, shape index: {}]
  %s4 = inlined_call_operand.vmem [shape: f32[16,128], index: 4, kind: input, shape index: {}]
  %s5 = inlined_call_operand.vmem [shape: f32[16,128], index: 5, kind: output, shape index: {}]
  %s6 = sld [smem:[#allocation0]]
  $region30: #{unet_forward.25} parent=0
    _
  %s8 = ssub.s32 1, %s6
  %s9 = scalar_select 0, %s8, %s6
  // Predicated region
  $region2: #{unet_forward.25} parent=0 // pred_check
    _
  $region3: #{unet_forward.25} parent=0 // pred_check_branch
    %11 = sbr.rel (0) target = $region5
  $region4: #{unet_forward.25} parent=0 // pred_region
    _
  $region5: #{unet_forward.25} parent=0 // pred_fallthru
    _
  // Predicated region
  $region6: #{unet_forward.25} parent=0 // pred_check
    _
  $region7: #{unet_forward.25} parent=0 // pred_check_branch
    %13 = sbr.rel (0) target = $region9
  $region8: #{unet_forward.25} parent=0 // pred_region
    _
  $region9: #{unet_forward.25} parent=0 // pred_fallthru
    _
  // Predicated region
  $region10: #{unet_forward.25} parent=0 // pred_check
    _
  $region11: #{unet_forward.25} parent=0 // pred_check_branch
    %15 = sbr.rel (0) target = $region13
  $region12: #{unet_forward.25} parent=0 // pred_region
    _
  $region13: #{unet_forward.25} parent=0 // pred_fallthru
    _
  // Predicated region
  $region14: #{unet_forward.25} parent=0 // pred_check
    _
  $region15: #{unet_forward.25} parent=0 // pred_check_branch
    %17 = sbr.rel (0) target = $region17
  $region16: #{unet_forward.25} parent=0 // pred_region
    _
  $region17: #{unet_forward.25} parent=0 // pred_fallthru
    _
  // Predicated region
  $region18: #{unet_forward.25} parent=0 // pred_check
    _
  $region19: #{unet_forward.25} parent=0 // pred_check_branch
    %19 = sbr.rel (0) target = $region21
  $region20: #{unet_forward.25} parent=0 // pred_region
    _
  $region21: #{unet_forward.25} parent=0 // pred_fallthru
    _
  %v21 = vld [vmem:[%s1] sm:$0xff]
  %v22 = vld [vmem:[%s1 + $0x8] sm:$0xff]
  %v23 = vld [vmem:[%s0] sm:$0xf]
  %v24 = vld [vmem:[%s0 + $0x4] sm:$0xf]
  %v25 = vld [vmem:[%s0 + $0x8] sm:$0xf]
  %v26 = vld [vmem:[%s0 + $0xc] sm:$0xf]
  %v27 = vld [vmem:[%s0 + $0x10] sm:$0xf]
  %v28 = vld [vmem:[%s0 + $0x14] sm:$0xf]
  %v29 = vld [vmem:[%s0 + $0x18] sm:$0xf]
  %v30 = vld [vmem:[%s0 + $0x1c] sm:$0xf]
  %v31 = vld [vmem:[%s0 + $0x20] sm:$0xf]
  %v32 = vld [vmem:[%s0 + $0x24] sm:$0xf]
  %v33 = vld [vmem:[%s0 + $0x28] sm:$0xf]
  %v34 = vld [vmem:[%s0 + $0x2c] sm:$0xf]
  %v35 = vld [vmem:[%s0 + $0x30] sm:$0xf]
  %v36 = vld [vmem:[%s0 + $0x34] sm:$0xf]
  %v37 = vld [vmem:[%s0 + $0x38] sm:$0xf]
  %v38 = vld [vmem:[%s0 + $0x3c] sm:$0xf]
  %v39 = vld [vmem:[%s0 + $0x40] sm:$0xf]
  %v40 = vld [vmem:[%s0 + $0x44] sm:$0xf]
  %v43 = vunpack.c.l.b16 %v21
  %v44 = vunpack.c.h.b16 %v21
  %v45 = vunpack.c.l.b16 %v22
  %v46 = vunpack.c.h.b16 %v22
  %v47 = vpack.c.b16 %v45, %v43
  %v48 = vpack.c.b16 %v46, %v44
  %v68 = vunpack.c.l.b16 %v23
  %v69 = vunpack.c.l.b16 %v24
  %v70 = vunpack.c.l.b16 %v25
  %v71 = vunpack.c.l.b16 %v26
  %v72 = vunpack.c.l.b16 %v27
  %v73 = vunpack.c.l.b16 %v28
  %v74 = vunpack.c.l.b16 %v29
  %v75 = vunpack.c.l.b16 %v30
  %v76 = vunpack.c.l.b16 %v31
  %v77 = vunpack.c.l.b16 %v32
  %v78 = vunpack.c.l.b16 %v33
  %v79 = vunpack.c.l.b16 %v34
  %v80 = vunpack.c.l.b16 %v35
  %v81 = vunpack.c.l.b16 %v36
  %v82 = vunpack.c.l.b16 %v37
  %v83 = vunpack.c.l.b16 %v38
  %v84 = vunpack.c.l.b16 %v39
  %v85 = vunpack.c.l.b16 %v40
  %v86 = vpack.c.b16 %v69, %v68
  %v87 = vpack.c.b16 %v71, %v70
  %v88 = vpack.c.b16 %v73, %v72
  %v89 = vpack.c.b16 %v75, %v74
  %v90 = vpack.c.b16 %v77, %v76
  %v91 = vpack.c.b16 %v79, %v78
  %v92 = vpack.c.b16 %v81, %v80
  %v93 = vpack.c.b16 %v83, %v82
  %v94 = vpack.c.b16 %v85, %v84
  %vm104 = vcmask 130048
  %v106 = vsel %vm104, %v48, 0
  %108 = vmatpush.bf16.msra.mxu0 %v93
  %109 = vmatpush.bf16.msra.mxu0 %v92
  %110 = vmatpush.bf16.msra.mxu0 %v91
  %111 = vmatpush.bf16.msra.mxu0 %v90
  %112 = vmatpush.bf16.msra.mxu0 %v89
  %113 = vmatpush.bf16.msra.mxu0 %v88
  %114 = vmatpush.bf16.msra.mxu0 %v87
  %115 = vmatpush.bf16.msra.mxu0 %v86
  %116 = vmatmul.bf16.gmra.mxu0 %v47
  %v117 = vpop.f32.mrf.mxu0
  %v118 = vadd.f32 0.0, %v117
  %v119 = vpop.f32.mrf.mxu0
  %v120 = vadd.f32 0.0, %v119
  %121 = vdwg.mxu0
  %122 = vmatpush.bf16.msra.mxu0 0
  %123 = vmatpush.bf16.msra.mxu0 0
  %124 = vmatpush.bf16.msra.mxu0 0
  %125 = vmatpush.bf16.msra.mxu0 0
  %126 = vmatpush.bf16.msra.mxu0 0
  %127 = vmatpush.bf16.msra.mxu0 0
  %128 = vmatpush.bf16.msra.mxu0 0
  %129 = vmatpush.bf16.msra.mxu0 %v94
  %130 = vmatmul.bf16.gmra.mxu0 %v106
  %v131 = vpop.f32.mrf.mxu0
  %v132 = vadd.f32 %v118, %v131
  %v133 = vpop.f32.mrf.mxu0
  %v134 = vadd.f32 %v120, %v133
  %135 = vdwg.mxu0
  %136 = vadd.xlane.f32.xlu0 %v132
  %v137 = vpop.xlane.xlu0 %136
  %138 = vadd.xlane.f32.xlu0 %v134
  %v139 = vpop.xlane.xlu0 %138
  %v140 = vmul.f32 %v137, 0.0078125
  %v141 = vmul.f32 %v139, 0.0078125
  %v142 = vmul.f32 %v132, %v132
  %v143 = vmul.f32 %v134, %v134
  %144 = vadd.xlane.f32.xlu0 %v142
  %v145 = vpop.xlane.xlu0 %144
  %146 = vadd.xlane.f32.xlu0 %v143
  %v147 = vpop.xlane.xlu0 %146
  %v148 = vmul.f32 %v145, 0.0078125
  %v149 = vmul.f32 %v147, 0.0078125
  %v150 = vmul.f32 %v140, %v140
  %v151 = vmul.f32 %v141, %v141
  %v152 = vsub.f32 %v148, %v150
  %v153 = vsub.f32 %v149, %v151
  %v154 = vmax.f32 %v152, 0.0
  %v155 = vmax.f32 %v153, 0.0
  %v156 = vld [vmem:[%s2] sm:$0xff]
  %v157 = vld [vmem:[%s2 + $0x8] sm:$0xff]
  %v158 = vadd.f32 %v154, 1e-05
  %v159 = vadd.f32 %v155, 1e-05
  %v160 = vrsqrt.pop %v158
  %v161 = vmul.f32 %v160, %v158
  %v162 = vmul.f32 %v161, %v160
  %v163 = vmul.f32 0.5, %v162
  %v164 = vsub.f32 1.5, %v163
  %v165 = vmul.f32 %v160, %v164
  %vm166 = vweird.f32 %v158
  %vm167 = vweird.f32 %v160
  %vm168 = vmor %vm166, %vm167
  %v169 = vsel %vm168, %v160, %v165
  %v170 = vrsqrt.pop %v159
  %v171 = vmul.f32 %v170, %v159
  %v172 = vmul.f32 %v171, %v170
  %v173 = vmul.f32 0.5, %v172
  %v174 = vsub.f32 1.5, %v173
  %v175 = vmul.f32 %v170, %v174
  %vm176 = vweird.f32 %v159
  %vm177 = vweird.f32 %v170
  %vm178 = vmor %vm176, %vm177
  %v179 = vsel %vm178, %v170, %v175
  %v180 = vmul.f32 %v156, %v169
  %v181 = vmul.f32 %v157, %v179
  %v182 = vld [vmem:[%s3] sm:$0xff]
  %v183 = vld [vmem:[%s3 + $0x8] sm:$0xff]
  %v184 = vmul.f32 %v140, %v180
  %v185 = vmul.f32 %v141, %v181
  %v186 = vsub.f32 %v182, %v184
  %v187 = vsub.f32 %v183, %v185
  %189 = vset.pattern.permute.xlu0 0
  %190 = vperm.xlu0 %189, %v180
  %v191 = vpop.permute.xlu0 %190
  %194 = vset.pattern.permute.xlu0 0
  %195 = vperm.xlu0 %194, %v181
  %v196 = vpop.permute.xlu0 %195
  %v198 = vmul.f32 %v132, %v191
  %v199 = vmul.f32 %v134, %v196
  %201 = vset.pattern.permute.xlu0 0
  %202 = vperm.xlu0 %201, %v186
  %v203 = vpop.permute.xlu0 %202
  %206 = vset.pattern.permute.xlu0 0
  %207 = vperm.xlu0 %206, %v187
  %v208 = vpop.permute.xlu0 %207
  %v210 = vadd.f32 %v198, %v203
  %v211 = vadd.f32 %v199, %v208
  %v212 = vld [vmem:[%s4] sm:$0xff]
  %v213 = vld [vmem:[%s4 + $0x8] sm:$0xff]
  %v214 = vadd.f32 %v210, %v212
  %v215 = vadd.f32 %v211, %v213
  %vm216 = vcmp.ge.f32.partialorder %v214, 0.0
  %vm217 = vcmp.ge.f32.partialorder %v215, 0.0
  %v218 = vmul.f32 %v214, 0.01
  %v219 = vmul.f32 %v215, 0.01
  %v220 = vsel %vm216, %v214, %v218
  %v221 = vsel %vm217, %v215, %v219
  %222 = vst [vmem:[%s5] sm:$0xff] %v220
  %223 = vst [vmem:[%s5 + $0x8] sm:$0xff] %v221
  // Predicated region
  $region22: #{unet_forward.25} parent=0 // pred_check
    _
  $region23: #{unet_forward.25} parent=0 // pred_check_branch
    %225 = sbr.rel (0) target = $region25
  $region24: #{unet_forward.25} parent=0 // pred_region
    _
  $region25: #{unet_forward.25} parent=0 // pred_fallthru
    _
  // Predicated region
  $region26: #{unet_forward.25} parent=0 // pred_check
    _
  $region27: #{unet_forward.25} parent=0 // pred_check_branch
    %227 = sbr.rel (0) target = $region29
  $region28: #{unet_forward.25} parent=0 // pred_region
    _
  $region29: #{unet_forward.25} parent=0 // pred_fallthru
    _

// kernel: unet_forward.23
$region0: #{unet_forward.23}
  #allocation0 [shape = 'u32[]', space=smem, size = 0x4, offset = 0x4, fixed_abs, tag = 'smem constant byte address 0x4 - core index']
  #allocation1 [shape = 'u32[72,128]{1,0:T(1,128)}', space=vmem, size = 0x9000, scoped, tag = 'internal scratch']
  %s0 = inlined_call_operand.vmem [shape: bf16[144,128], index: 0, kind: input, shape index: {}]
  %s1 = inlined_call_operand.vmem [shape: bf16[16,144], index: 1, kind: input, shape index: {}]
  %s2 = inlined_call_operand.vmem [shape: f32[16,1], index: 2, kind: input, shape index: {}]
  %s3 = inlined_call_operand.vmem [shape: f32[16,1], index: 3, kind: input, shape index: {}]
  %s4 = inlined_call_operand.vmem [shape: f32[8,128], index: 4, kind: input, shape index: {}]
  %s5 = inlined_call_operand.vmem [shape: f32[16,8], index: 5, kind: input, shape index: {}]
  %s6 = inlined_call_operand.vmem [shape: f32[16,1], index: 6, kind: input, shape index: {}]
  %s7 = inlined_call_operand.vmem [shape: f32[16,128], index: 7, kind: output, shape index: {}]
  %s8 = sld [smem:[#allocation0]]
  $region38: #{unet_forward.23} parent=0
    _
  %s10 = ssub.s32 1, %s8
  %s11 = scalar_select 0, %s10, %s8
  // Predicated region
  $region2: #{unet_forward.23} parent=0 // pred_check
    _
  $region3: #{unet_forward.23} parent=0 // pred_check_branch
    %13 = sbr.rel (0) target = $region5
  $region4: #{unet_forward.23} parent=0 // pred_region
    _
  $region5: #{unet_forward.23} parent=0 // pred_fallthru
    _
  // Predicated region
  $region6: #{unet_forward.23} parent=0 // pred_check
    _
  $region7: #{unet_forward.23} parent=0 // pred_check_branch
    %15 = sbr.rel (0) target = $region9
  $region8: #{unet_forward.23} parent=0 // pred_region
    _
  $region9: #{unet_forward.23} parent=0 // pred_fallthru
    _
  // Predicated region
  $region10: #{unet_forward.23} parent=0 // pred_check
    _
  $region11: #{unet_forward.23} parent=0 // pred_check_branch
    %17 = sbr.rel (0) target = $region13
  $region12: #{unet_forward.23} parent=0 // pred_region
    _
  $region13: #{unet_forward.23} parent=0 // pred_fallthru
    _
  // Predicated region
  $region14: #{unet_forward.23} parent=0 // pred_check
    _
  $region15: #{unet_forward.23} parent=0 // pred_check_branch
    %19 = sbr.rel (0) target = $region17
  $region16: #{unet_forward.23} parent=0 // pred_region
    _
  $region17: #{unet_forward.23} parent=0 // pred_fallthru
    _
  // Predicated region
  $region18: #{unet_forward.23} parent=0 // pred_check
    _
  $region19: #{unet_forward.23} parent=0 // pred_check_branch
    %21 = sbr.rel (0) target = $region21
  $region20: #{unet_forward.23} parent=0 // pred_region
    _
  $region21: #{unet_forward.23} parent=0 // pred_fallthru
    _
  // Predicated region
  $region22: #{unet_forward.23} parent=0 // pred_check
    _
  $region23: #{unet_forward.23} parent=0 // pred_check_branch
    %23 = sbr.rel (0) target = $region25
  $region24: #{unet_forward.23} parent=0 // pred_region
    _
  $region25: #{unet_forward.23} parent=0 // pred_fallthru
    _
  // Predicated region
  $region26: #{unet_forward.23} parent=0 // pred_check
    _
  $region27: #{unet_forward.23} parent=0 // pred_check_branch
    %25 = sbr.rel (0) target = $region29
  $region28: #{unet_forward.23} parent=0 // pred_region
    _
  $region29: #{unet_forward.23} parent=0 // pred_fallthru
    _
  %v27 = vld [vmem:[%s1] sm:$0xff]
  %v28 = vld [vmem:[%s1 + $0x8] sm:$0xff]
  %v29 = vld [vmem:[%s0] sm:$0xf]
  %v30 = vld [vmem:[%s0 + $0x4] sm:$0xf]
  %v31 = vld [vmem:[%s0 + $0x8] sm:$0xf]
  %v32 = vld [vmem:[%s0 + $0xc] sm:$0xf]
  %v33 = vld [vmem:[%s0 + $0x10] sm:$0xf]
  %v34 = vld [vmem:[%s0 + $0x14] sm:$0xf]
  %v35 = vld [vmem:[%s0 + $0x18] sm:$0xf]
  %v36 = vld [vmem:[%s0 + $0x1c] sm:$0xf]
  %v37 = vld [vmem:[%s0 + $0x20] sm:$0xf]
  %v38 = vld [vmem:[%s0 + $0x24] sm:$0xf]
  %v39 = vld [vmem:[%s0 + $0x28] sm:$0xf]
  %v40 = vld [vmem:[%s0 + $0x2c] sm:$0xf]
  %v41 = vld [vmem:[%s0 + $0x30] sm:$0xf]
  %v42 = vld [vmem:[%s0 + $0x34] sm:$0xf]
  %v43 = vld [vmem:[%s0 + $0x38] sm:$0xf]
  %v44 = vld [vmem:[%s0 + $0x3c] sm:$0xf]
  %v45 = vld [vmem:[%s0 + $0x40] sm:$0xf]
  %v46 = vld [vmem:[%s0 + $0x44] sm:$0xf]
  %v49 = vunpack.c.l.b16 %v27
  %v50 = vunpack.c.h.b16 %v27
  %v51 = vunpack.c.l.b16 %v28
  %v52 = vunpack.c.h.b16 %v28
  %v53 = vpack.c.b16 %v51, %v49
  %v54 = vpack.c.b16 %v52, %v50
  %v74 = vunpack.c.l.b16 %v29
  %v75 = vunpack.c.l.b16 %v30
  %v76 = vunpack.c.l.b16 %v31
  %v77 = vunpack.c.l.b16 %v32
  %v78 = vunpack.c.l.b16 %v33
  %v79 = vunpack.c.l.b16 %v34
  %v80 = vunpack.c.l.b16 %v35
  %v81 = vunpack.c.l.b16 %v36
  %v82 = vunpack.c.l.b16 %v37
  %v83 = vunpack.c.l.b16 %v38
  %v84 = vunpack.c.l.b16 %v39
  %v85 = vunpack.c.l.b16 %v40
  %v86 = vunpack.c.l.b16 %v41
  %v87 = vunpack.c.l.b16 %v42
  %v88 = vunpack.c.l.b16 %v43
  %v89 = vunpack.c.l.b16 %v44
  %v90 = vunpack.c.l.b16 %v45
  %v91 = vunpack.c.l.b16 %v46
  %v92 = vpack.c.b16 %v75, %v74
  %v93 = vpack.c.b16 %v77, %v76
  %v94 = vpack.c.b16 %v79, %v78
  %v95 = vpack.c.b16 %v81, %v80
  %v96 = vpack.c.b16 %v83, %v82
  %v97 = vpack.c.b16 %v85, %v84
  %v98 = vpack.c.b16 %v87, %v86
  %v99 = vpack.c.b16 %v89, %v88
  %v100 = vpack.c.b16 %v91, %v90
  %vm110 = vcmask 130048
  %v112 = vsel %vm110, %v54, 0
  %114 = vmatpush.bf16.msra.mxu0 %v99
  %115 = vmatpush.bf16.msra.mxu0 %v98
  %116 = vmatpush.bf16.msra.mxu0 %v97
  %117 = vmatpush.bf16.msra.mxu0 %v96
  %118 = vmatpush.bf16.msra.mxu0 %v95
  %119 = vmatpush.bf16.msra.mxu0 %v94
  %120 = vmatpush.bf16.msra.mxu0 %v93
  %121 = vmatpush.bf16.msra.mxu0 %v92
  %122 = vmatmul.bf16.gmra.mxu0 %v53
  %v123 = vpop.f32.mrf.mxu0
  %v124 = vadd.f32 0.0, %v123
  %v125 = vpop.f32.mrf.mxu0
  %v126 = vadd.f32 0.0, %v125
  %127 = vdwg.mxu0
  %128 = vmatpush.bf16.msra.mxu0 0
  %129 = vmatpush.bf16.msra.mxu0 0
  %130 = vmatpush.bf16.msra.mxu0 0
  %131 = vmatpush.bf16.msra.mxu0 0
  %132 = vmatpush.bf16.msra.mxu0 0
  %133 = vmatpush.bf16.msra.mxu0 0
  %134 = vmatpush.bf16.msra.mxu0 0
  %135 = vmatpush.bf16.msra.mxu0 %v100
  %136 = vmatmul.bf16.gmra.mxu0 %v112
  %v137 = vpop.f32.mrf.mxu0
  %v138 = vadd.f32 %v124, %v137
  %v139 = vpop.f32.mrf.mxu0
  %v140 = vadd.f32 %v126, %v139
  %141 = vdwg.mxu0
  %142 = vadd.xlane.f32.xlu0 %v138
  %v143 = vpop.xlane.xlu0 %142
  %144 = vadd.xlane.f32.xlu0 %v140
  %v145 = vpop.xlane.xlu0 %144
  %v146 = vmul.f32 %v143, 0.0078125
  %v147 = vmul.f32 %v145, 0.0078125
  %v148 = vmul.f32 %v138, %v138
  %v149 = vmul.f32 %v140, %v140
  %150 = vadd.xlane.f32.xlu0 %v148
  %v151 = vpop.xlane.xlu0 %150
  %152 = vadd.xlane.f32.xlu0 %v149
  %v153 = vpop.xlane.xlu0 %152
  %v154 = vmul.f32 %v151, 0.0078125
  %v155 = vmul.f32 %v153, 0.0078125
  %v156 = vmul.f32 %v146, %v146
  %v157 = vmul.f32 %v147, %v147
  %v158 = vsub.f32 %v154, %v156
  %v159 = vsub.f32 %v155, %v157
  %v160 = vmax.f32 %v158, 0.0
  %v161 = vmax.f32 %v159, 0.0
  %v162 = vld [vmem:[%s2] sm:$0xff]
  %v163 = vld [vmem:[%s2 + $0x8] sm:$0xff]
  %v164 = vadd.f32 %v160, 1e-05
  %v165 = vadd.f32 %v161, 1e-05
  %v166 = vrsqrt.pop %v164
  %v167 = vmul.f32 %v166, %v164
  %v168 = vmul.f32 %v167, %v166
  %v169 = vmul.f32 0.5, %v168
  %v170 = vsub.f32 1.5, %v169
  %v171 = vmul.f32 %v166, %v170
  %vm172 = vweird.f32 %v164
  %vm173 = vweird.f32 %v166
  %vm174 = vmor %vm172, %vm173
  %v175 = vsel %vm174, %v166, %v171
  %v176 = vrsqrt.pop %v165
  %v177 = vmul.f32 %v176, %v165
  %v178 = vmul.f32 %v177, %v176
  %v179 = vmul.f32 0.5, %v178
  %v180 = vsub.f32 1.5, %v179
  %v181 = vmul.f32 %v176, %v180
  %vm182 = vweird.f32 %v165
  %vm183 = vweird.f32 %v176
  %vm184 = vmor %vm182, %vm183
  %v185 = vsel %vm184, %v176, %v181
  %v186 = vmul.f32 %v162, %v175
  %v187 = vmul.f32 %v163, %v185
  %v188 = vld [vmem:[%s3] sm:$0xff]
  %v189 = vld [vmem:[%s3 + $0x8] sm:$0xff]
  %v190 = vmul.f32 %v146, %v186
  %v191 = vmul.f32 %v147, %v187
  %v192 = vsub.f32 %v188, %v190
  %v193 = vsub.f32 %v189, %v191
  %195 = vset.pattern.permute.xlu0 0
  %196 = vperm.xlu0 %195, %v186
  %v197 = vpop.permute.xlu0 %196
  %200 = vset.pattern.permute.xlu0 0
  %201 = vperm.xlu0 %200, %v187
  %v202 = vpop.permute.xlu0 %201
  %v204 = vmul.f32 %v138, %v197
  %v205 = vmul.f32 %v140, %v202
  %207 = vset.pattern.permute.xlu0 0
  %208 = vperm.xlu0 %207, %v192
  %v209 = vpop.permute.xlu0 %208
  %212 = vset.pattern.permute.xlu0 0
  %213 = vperm.xlu0 %212, %v193
  %v214 = vpop.permute.xlu0 %213
  %v216 = vadd.f32 %v204, %v209
  %v217 = vadd.f32 %v205, %v214
  %v218 = vld [vmem:[%s5] sm:$0xff]
  %v219 = vld [vmem:[%s5 + $0x8] sm:$0xff]
  %v220 = vld [vmem:[%s4] sm:$0xff]
  %v221 = vld [vmem:[%s6] sm:$0xff]
  %v222 = vld [vmem:[%s6 + $0x8] sm:$0xff]
  %224 = vset.pattern.permute.xlu0 0
  %225 = vperm.xlu0 %224, %v221
  %v226 = vpop.permute.xlu0 %225
  %229 = vset.pattern.permute.xlu0 0
  %230 = vperm.xlu0 %229, %v222
  %v231 = vpop.permute.xlu0 %230
  %vm233 = vcmask 64512
  %v235 = vsel %vm233, %v218, 0
  %v238 = vsel %vm233, %v219, 0
  %240 = vmatpush.msra.mxu0 0.0
  %241 = vmatpush.msra.mxu0 0.0
  %242 = vmatpush.msra.mxu0 0.0
  %243 = vmatpush.msra.mxu0 0.0
  %244 = vmatpush.msra.mxu0 0.0
  %245 = vmatpush.msra.mxu0 0.0
  %246 = vmatpush.msra.mxu0 0.0
  %247 = vmatpush.msra.mxu0 0.0
  %248 = vmatpush.msra.mxu0 0.0
  %249 = vmatpush.msra.mxu0 0.0
  %250 = vmatpush.msra.mxu0 0.0
  %251 = vmatpush.msra.mxu0 0.0
  %252 = vmatpush.msra.mxu0 0.0
  %253 = vmatpush.msra.mxu0 0.0
  %254 = vmatpush.msra.mxu0 0.0
  %255 = vmatpush.msra.mxu0 %v220
  %256 = vmatmul.f32.gmra.mxu0 %v235
  %v257 = vpop.f32.mrf.mxu0
  %v258 = vadd.f32 %v226, %v257
  %259 = vmatmul.f32.gmra.mxu0 %v238
  %v260 = vpop.f32.mrf.mxu0
  %v261 = vadd.f32 %v231, %v260
  %262 = vdwg.mxu0
  %v263 = vadd.f32 %v216, %v258
  %v264 = vadd.f32 %v217, %v261
  %vm265 = vcmp.ge.f32.partialorder %v263, 0.0
  %vm266 = vcmp.ge.f32.partialorder %v264, 0.0
  %v267 = vmul.f32 %v263, 0.01
  %v268 = vmul.f32 %v264, 0.01
  %v269 = vsel %vm265, %v263, %v267
  %v270 = vsel %vm266, %v264, %v268
  %271 = vst [vmem:[%s7] sm:$0xff] %v269
  %272 = vst [vmem:[%s7 + $0x8] sm:$0xff] %v270
  // Predicated region
  $region30: #{unet_forward.23} parent=0 // pred_check
    _
  $region31: #{unet_forward.23} parent=0 // pred_check_branch
    %274 = sbr.rel (0) target = $region33
  $region32: #{unet_forward.23} parent=0 // pred_region
    _
  $region33: #{unet_forward.23} parent=0 // pred_fallthru
    _
  // Predicated region
  $region34: #{unet_forward.23} parent=0 // pred_check
    _
  $region35: #{unet_forward.23} parent=0 // pred_check_branch
    %276 = sbr.rel (0) target = $region37
  $region36: #{unet_forward.23} parent=0 // pred_region
    _
  $region37: #{unet_forward.23} parent=0 // pred_fallthru
    _

// kernel: unet_forward.26
$region0: #{unet_forward.26}
  #allocation0 [shape = 'u32[]', space=smem, size = 0x4, offset = 0x4, fixed_abs, tag = 'smem constant byte address 0x4 - core index']
  #allocation1 [shape = 'u32[72,128]{1,0:T(1,128)}', space=vmem, size = 0x9000, scoped, tag = 'internal scratch']
  %s0 = inlined_call_operand.vmem [shape: bf16[16,16], index: 0, kind: input, shape index: {}]
  %s1 = inlined_call_operand.vmem [shape: bf16[16,128], index: 1, kind: input, shape index: {}]
  %s2 = inlined_call_operand.vmem [shape: f32[16,1], index: 2, kind: input, shape index: {}]
  %s3 = inlined_call_operand.vmem [shape: f32[16,128], index: 3, kind: output, shape index: {}]
  %s4 = sld [smem:[#allocation0]]
  $region22: #{unet_forward.26} parent=0
    _
  %s6 = ssub.s32 1, %s4
  %s7 = scalar_select 0, %s6, %s4
  // Predicated region
  $region2: #{unet_forward.26} parent=0 // pred_check
    _
  $region3: #{unet_forward.26} parent=0 // pred_check_branch
    %9 = sbr.rel (0) target = $region5
  $region4: #{unet_forward.26} parent=0 // pred_region
    _
  $region5: #{unet_forward.26} parent=0 // pred_fallthru
    _
  // Predicated region
  $region6: #{unet_forward.26} parent=0 // pred_check
    _
  $region7: #{unet_forward.26} parent=0 // pred_check_branch
    %11 = sbr.rel (0) target = $region9
  $region8: #{unet_forward.26} parent=0 // pred_region
    _
  $region9: #{unet_forward.26} parent=0 // pred_fallthru
    _
  // Predicated region
  $region10: #{unet_forward.26} parent=0 // pred_check
    _
  $region11: #{unet_forward.26} parent=0 // pred_check_branch
    %13 = sbr.rel (0) target = $region13
  $region12: #{unet_forward.26} parent=0 // pred_region
    _
  $region13: #{unet_forward.26} parent=0 // pred_fallthru
    _
  %v15 = vld [vmem:[%s0] sm:$0xf]
  %v16 = vld [vmem:[%s0 + $0x4] sm:$0xf]
  %v17 = vld [vmem:[%s1] sm:$0xf]
  %v18 = vld [vmem:[%s1 + $0x4] sm:$0xf]
  %v19 = vld [vmem:[%s2] sm:$0xff]
  %v20 = vld [vmem:[%s2 + $0x8] sm:$0xff]
  %22 = vset.pattern.permute.xlu0 0
  %23 = vperm.xlu0 %22, %v19
  %v24 = vpop.permute.xlu0 %23
  %27 = vset.pattern.permute.xlu0 0
  %28 = vperm.xlu0 %27, %v20
  %v29 = vpop.permute.xlu0 %28
  %v33 = vunpack.c.l.b16 %v15
  %v34 = vunpack.c.l.b16 %v16
  %v35 = vpack.c.b16 %v34, %v33
  %v38 = vunpack.c.l.b16 %v17
  %v39 = vunpack.c.l.b16 %v18
  %v40 = vpack.c.b16 %v39, %v38
  %vm42 = vcmask 130048
  %v44 = vsel %vm42, %v35, 0
  %46 = vmatpush.bf16.msra.mxu0 0
  %47 = vmatpush.bf16.msra.mxu0 0
  %48 = vmatpush.bf16.msra.mxu0 0
  %49 = vmatpush.bf16.msra.mxu0 0
  %50 = vmatpush.bf16.msra.mxu0 0
  %51 = vmatpush.bf16.msra.mxu0 0
  %52 = vmatpush.bf16.msra.mxu0 0
  %53 = vmatpush.bf16.msra.mxu0 %v40
  %54 = vmatmul.bf16.gmra.mxu0 %v44
  %v55 = vpop.f32.mrf.mxu0
  %v56 = vadd.f32 %v24, %v55
  %v57 = vpop.f32.mrf.mxu0
  %v58 = vadd.f32 %v29, %v57
  %59 = vdwg.mxu0
  %vm60 = vcmp.ge.f32.partialorder %v56, 0.0
  %vm61 = vcmp.ge.f32.partialorder %v58, 0.0
  %v62 = vmul.f32 %v56, 0.01
  %v63 = vmul.f32 %v58, 0.01
  %v64 = vsel %vm60, %v56, %v62
  %v65 = vsel %vm61, %v58, %v63
  %66 = vst [vmem:[%s3] sm:$0xff] %v64
  %67 = vst [vmem:[%s3 + $0x8] sm:$0xff] %v65
  // Predicated region
  $region14: #{unet_forward.26} parent=0 // pred_check
    _
  $region15: #{unet_forward.26} parent=0 // pred_check_branch
    %69 = sbr.rel (0) target = $region17
  $region16: #{unet_forward.26} parent=0 // pred_region
    _
  $region17: #{unet_forward.26} parent=0 // pred_fallthru
    _
  // Predicated region
  $region18: #{unet_forward.26} parent=0 // pred_check
    _
  $region19: #{unet_forward.26} parent=0 // pred_check_branch
    %71 = sbr.rel (0) target = $region21
  $region20: #{unet_forward.26} parent=0 // pred_region
    _
  $region21: #{unet_forward.26} parent=0 // pred_fallthru
    _

// kernel: unet_forward.27
$region0: #{unet_forward.27}
  #allocation0 [shape = 'u32[]', space=smem, size = 0x4, offset = 0x4, fixed_abs, tag = 'smem constant byte address 0x4 - core index']
  #allocation1 [shape = 'u32[72,128]{1,0:T(1,128)}', space=vmem, size = 0x9000, scoped, tag = 'internal scratch']
  %s0 = inlined_call_operand.vmem [shape: bf16[288,128], index: 0, kind: input, shape index: {}]
  %s1 = inlined_call_operand.vmem [shape: bf16[8,288], index: 1, kind: input, shape index: {}]
  %s2 = inlined_call_operand.vmem [shape: f32[8,1], index: 2, kind: input, shape index: {}]
  %s3 = inlined_call_operand.vmem [shape: f32[8,1], index: 3, kind: input, shape index: {}]
  %s4 = inlined_call_operand.vmem [shape: f32[8,128], index: 4, kind: output, shape index: {}]
  %s5 = sld [smem:[#allocation0]]
  $region26: #{unet_forward.27} parent=0
    _
  %s7 = ssub.s32 1, %s5
  %s8 = scalar_select 0, %s7, %s5
  // Predicated region
  $region2: #{unet_forward.27} parent=0 // pred_check
    _
  $region3: #{unet_forward.27} parent=0 // pred_check_branch
    %10 = sbr.rel (0) target = $region5
  $region4: #{unet_forward.27} parent=0 // pred_region
    _
  $region5: #{unet_forward.27} parent=0 // pred_fallthru
    _
  // Predicated region
  $region6: #{unet_forward.27} parent=0 // pred_check
    _
  $region7: #{unet_forward.27} parent=0 // pred_check_branch
    %12 = sbr.rel (0) target = $region9
  $region8: #{unet_forward.27} parent=0 // pred_region
    _
  $region9: #{unet_forward.27} parent=0 // pred_fallthru
    _
  // Predicated region
  $region10: #{unet_forward.27} parent=0 // pred_check
    _
  $region11: #{unet_forward.27} parent=0 // pred_check_branch
    %14 = sbr.rel (0) target = $region13
  $region12: #{unet_forward.27} parent=0 // pred_region
    _
  $region13: #{unet_forward.27} parent=0 // pred_fallthru
    _
  // Predicated region
  $region14: #{unet_forward.27} parent=0 // pred_check
    _
  $region15: #{unet_forward.27} parent=0 // pred_check_branch
    %16 = sbr.rel (0) target = $region17
  $region16: #{unet_forward.27} parent=0 // pred_region
    _
  $region17: #{unet_forward.27} parent=0 // pred_fallthru
    _
  %v18 = vld [vmem:[%s1] sm:$0xff]
  %v19 = vld [vmem:[%s1 + $0x8] sm:$0xf]
  %v20 = vld [vmem:[%s0] sm:$0xf]
  %v21 = vld [vmem:[%s0 + $0x4] sm:$0xf]
  %v22 = vld [vmem:[%s0 + $0x8] sm:$0xf]
  %v23 = vld [vmem:[%s0 + $0xc] sm:$0xf]
  %v24 = vld [vmem:[%s0 + $0x10] sm:$0xf]
  %v25 = vld [vmem:[%s0 + $0x14] sm:$0xf]
  %v26 = vld [vmem:[%s0 + $0x18] sm:$0xf]
  %v27 = vld [vmem:[%s0 + $0x1c] sm:$0xf]
  %v28 = vld [vmem:[%s0 + $0x20] sm:$0xf]
  %v29 = vld [vmem:[%s0 + $0x24] sm:$0xf]
  %v30 = vld [vmem:[%s0 + $0x28] sm:$0xf]
  %v31 = vld [vmem:[%s0 + $0x2c] sm:$0xf]
  %v32 = vld [vmem:[%s0 + $0x30] sm:$0xf]
  %v33 = vld [vmem:[%s0 + $0x34] sm:$0xf]
  %v34 = vld [vmem:[%s0 + $0x38] sm:$0xf]
  %v35 = vld [vmem:[%s0 + $0x3c] sm:$0xf]
  %v36 = vld [vmem:[%s0 + $0x40] sm:$0xf]
  %v37 = vld [vmem:[%s0 + $0x44] sm:$0xf]
  %v38 = vld [vmem:[%s0 + $0x48] sm:$0xf]
  %v39 = vld [vmem:[%s0 + $0x4c] sm:$0xf]
  %v40 = vld [vmem:[%s0 + $0x50] sm:$0xf]
  %v41 = vld [vmem:[%s0 + $0x54] sm:$0xf]
  %v42 = vld [vmem:[%s0 + $0x58] sm:$0xf]
  %v43 = vld [vmem:[%s0 + $0x5c] sm:$0xf]
  %v44 = vld [vmem:[%s0 + $0x60] sm:$0xf]
  %v45 = vld [vmem:[%s0 + $0x64] sm:$0xf]
  %v46 = vld [vmem:[%s0 + $0x68] sm:$0xf]
  %v47 = vld [vmem:[%s0 + $0x6c] sm:$0xf]
  %v48 = vld [vmem:[%s0 + $0x70] sm:$0xf]
  %v49 = vld [vmem:[%s0 + $0x74] sm:$0xf]
  %v50 = vld [vmem:[%s0 + $0x78] sm:$0xf]
  %v51 = vld [vmem:[%s0 + $0x7c] sm:$0xf]
  %v52 = vld [vmem:[%s0 + $0x80] sm:$0xf]
  %v53 = vld [vmem:[%s0 + $0x84] sm:$0xf]
  %v54 = vld [vmem:[%s0 + $0x88] sm:$0xf]
  %v55 = vld [vmem:[%s0 + $0x8c] sm:$0xf]
  %v58 = vunpack.c.l.b16 %v18
  %v59 = vunpack.c.h.b16 %v18
  %v60 = vunpack.c.l.b16 %v19
  %v61 = vpack.c.b16 %v58, %v58
  %v62 = vpack.c.b16 %v59, %v59
  %v63 = vpack.c.b16 %v60, %v60
  %v102 = vunpack.c.l.b16 %v20
  %v103 = vunpack.c.l.b16 %v21
  %v104 = vunpack.c.l.b16 %v22
  %v105 = vunpack.c.l.b16 %v23
  %v106 = vunpack.c.l.b16 %v24
  %v107 = vunpack.c.l.b16 %v25
  %v108 = vunpack.c.l.b16 %v26
  %v109 = vunpack.c.l.b16 %v27
  %v110 = vunpack.c.l.b16 %v28
  %v111 = vunpack.c.l.b16 %v29
  %v112 = vunpack.c.l.b16 %v30
  %v113 = vunpack.c.l.b16 %v31
  %v114 = vunpack.c.l.b16 %v32
  %v115 = vunpack.c.l.b16 %v33
  %v116 = vunpack.c.l.b16 %v34
  %v117 = vunpack.c.l.b16 %v35
  %v118 = vunpack.c.l.b16 %v36
  %v119 = vunpack.c.l.b16 %v37
  %v120 = vunpack.c.l.b16 %v38
  %v121 = vunpack.c.l.b16 %v39
  %v122 = vunpack.c.l.b16 %v40
  %v123 = vunpack.c.l.b16 %v41
  %v124 = vunpack.c.l.b16 %v42
  %v125 = vunpack.c.l.b16 %v43
  %v126 = vunpack.c.l.b16 %v44
  %v127 = vunpack.c.l.b16 %v45
  %v128 = vunpack.c.l.b16 %v46
  %v129 = vunpack.c.l.b16 %v47
  %v130 = vunpack.c.l.b16 %v48
  %v131 = vunpack.c.l.b16 %v49
  %v132 = vunpack.c.l.b16 %v50
  %v133 = vunpack.c.l.b16 %v51
  %v134 = vunpack.c.l.b16 %v52
  %v135 = vunpack.c.l.b16 %v53
  %v136 = vunpack.c.l.b16 %v54
  %v137 = vunpack.c.l.b16 %v55
  %v138 = vpack.c.b16 %v103, %v102
  %v139 = vpack.c.b16 %v105, %v104
  %v140 = vpack.c.b16 %v107, %v106
  %v141 = vpack.c.b16 %v109, %v108
  %v142 = vpack.c.b16 %v111, %v110
  %v143 = vpack.c.b16 %v113, %v112
  %v144 = vpack.c.b16 %v115, %v114
  %v145 = vpack.c.b16 %v117, %v116
  %v146 = vpack.c.b16 %v119, %v118
  %v147 = vpack.c.b16 %v121, %v120
  %v148 = vpack.c.b16 %v123, %v122
  %v149 = vpack.c.b16 %v125, %v124
  %v150 = vpack.c.b16 %v127, %v126
  %v151 = vpack.c.b16 %v129, %v128
  %v152 = vpack.c.b16 %v131, %v130
  %v153 = vpack.c.b16 %v133, %v132
  %v154 = vpack.c.b16 %v135, %v134
  %v155 = vpack.c.b16 %v137, %v136
  %vm174 = vcmask 261120
  %v176 = vsel %vm174, %v63, 0
  %178 = vmatpush.bf16.msra.mxu0 %v145
  %179 = vmatpush.bf16.msra.mxu0 %v144
  %180 = vmatpush.bf16.msra.mxu0 %v143
  %181 = vmatpush.bf16.msra.mxu0 %v142
  %182 = vmatpush.bf16.msra.mxu0 %v141
  %183 = vmatpush.bf16.msra.mxu0 %v140
  %184 = vmatpush.bf16.msra.mxu0 %v139
  %185 = vmatpush.bf16.msra.mxu0 %v138
  %186 = vmatmul.bf16.gmra.mxu0 %v61
  %v187 = vpop.f32.mrf.mxu0
  %v188 = vadd.f32 0.0, %v187
  %v189 = vpop.f32.mrf.mxu0
  %190 = vdwg.mxu0
  %191 = vmatpush.bf16.msra.mxu0 %v153
  %192 = vmatpush.bf16.msra.mxu0 %v152
  %193 = vmatpush.bf16.msra.mxu0 %v151
  %194 = vmatpush.bf16.msra.mxu0 %v150
  %195 = vmatpush.bf16.msra.mxu0 %v149
  %196 = vmatpush.bf16.msra.mxu0 %v148
  %197 = vmatpush.bf16.msra.mxu0 %v147
  %198 = vmatpush.bf16.msra.mxu0 %v146
  %199 = vmatmul.bf16.gmra.mxu0 %v62
  %v200 = vpop.f32.mrf.mxu0
  %v201 = vadd.f32 %v188, %v200
  %v202 = vpop.f32.mrf.mxu0
  %203 = vdwg.mxu0
  %204 = vmatpush.bf16.msra.mxu0 0
  %205 = vmatpush.bf16.msra.mxu0 0
  %206 = vmatpush.bf16.msra.mxu0 0
  %207 = vmatpush.bf16.msra.mxu0 0
  %208 = vmatpush.bf16.msra.mxu0 0
  %209 = vmatpush.bf16.msra.mxu0 0
  %210 = vmatpush.bf16.msra.mxu0 %v155
  %211 = vmatpush.bf16.msra.mxu0 %v154
  %212 = vmatmul.bf16.gmra.mxu0 %v176
  %v213 = vpop.f32.mrf.mxu0
  %v214 = vadd.f32 %v201, %v213
  %v215 = vpop.f32.mrf.mxu0
  %216 = vdwg.mxu0
  %217 = vadd.xlane.f32.xlu0 %v214
  %v218 = vpop.xlane.xlu0 %217
  %v219 = vmul.f32 %v218, 0.03125
  %v220 = vmul.f32 %v214, %v214
  %221 = vadd.xlane.f32.xlu0 %v220
  %v222 = vpop.xlane.xlu0 %221
  %v223 = vmul.f32 %v222, 0.03125
  %v224 = vmul.f32 %v219, %v219
  %v225 = vsub.f32 %v223, %v224
  %v226 = vmax.f32 %v225, 0.0
  %v227 = vld [vmem:[%s2] sm:$0xff]
  %v228 = vadd.f32 %v226, 1e-05
  %v229 = vrsqrt.pop %v228
  %v230 = vmul.f32 %v229, %v228
  %v231 = vmul.f32 %v230, %v229
  %v232 = vmul.f32 0.5, %v231
  %v233 = vsub.f32 1.5, %v232
  %v234 = vmul.f32 %v229, %v233
  %vm235 = vweird.f32 %v228
  %vm236 = vweird.f32 %v229
  %vm237 = vmor %vm235, %vm236
  %v238 = vsel %vm237, %v229, %v234
  %v239 = vmul.f32 %v227, %v238
  %v240 = vld [vmem:[%s3] sm:$0xff]
  %v241 = vmul.f32 %v219, %v239
  %v242 = vsub.f32 %v240, %v241
  %244 = vset.pattern.permute.xlu0 0
  %245 = vperm.xlu0 %244, %v239
  %v246 = vpop.permute.xlu0 %245
  %v248 = vmul.f32 %v214, %v246
  %250 = vset.pattern.permute.xlu0 0
  %251 = vperm.xlu0 %250, %v242
  %v252 = vpop.permute.xlu0 %251
  %v254 = vadd.f32 %v248, %v252
  %vm255 = vcmp.ge.f32.partialorder %v254, 0.0
  %v256 = vmul.f32 %v254, 0.01
  %v257 = vsel %vm255, %v254, %v256
  %258 = vst [vmem:[%s4] sm:$0xff] %v257
  // Predicated region
  $region18: #{unet_forward.27} parent=0 // pred_check
    _
  $region19: #{unet_forward.27} parent=0 // pred_check_branch
    %260 = sbr.rel (0) target = $region21
  $region20: #{unet_forward.27} parent=0 // pred_region
    _
  $region21: #{unet_forward.27} parent=0 // pred_fallthru
    _
  // Predicated region
  $region22: #{unet_forward.27} parent=0 // pred_check
    _
  $region23: #{unet_forward.27} parent=0 // pred_check_branch
    %262 = sbr.rel (0) target = $region25
  $region24: #{unet_forward.27} parent=0 // pred_region
    _
  $region25: #{unet_forward.27} parent=0 // pred_fallthru
    _

// kernel: tile.8
$region0: #{tile.8}
  #allocation0 [shape = 's32[1]{0}', space=sflag, size = 0x4, scoped, tag = 'scoped memory for tile.8']
  %s0 = inlined_call_operand.vmem [shape: f32[8], index: 0, kind: input, shape index: {}]
  %s1 = inlined_call_operand.vmem [shape: f32[4,8], index: 1, kind: output, shape index: {}]
  // Predicated region
  $region2: #{tile.8} parent=0 // pred_check
    _
  $region3: #{tile.8} parent=0 // pred_check_branch
    %3 = sbr.rel (0) target = $region5
  $region4: #{tile.8} parent=0 // pred_region
    _
  $region5: #{tile.8} parent=0 // pred_fallthru
    _
  %v4 = vld [vmem:[%s0] ss:$0 sm:$0xff]
  %5 = vst [vmem:[%s1] sm:$0xf] %v4

// kernel: tile.0
$region0: #{tile.0}
  %s0 = inlined_call_operand.vmem [shape: f32[4,8], index: 0, kind: input, shape index: {}]
  %s1 = inlined_call_operand.vmem [shape: f32[32,1], index: 1, kind: output, shape index: {}]
  $region1: #{tile.0} parent=0
    #allocation0 [shape = 'u8[4096]{0}', space=vmem, size = 0x1000, scoped, tag = 'scoped mem for input reshape']
    %s3 = ssub.s32 16, 1
    %v4 = vld [vmem:[%s0] sm:%s3]
    %5 = vst [vmem:[#allocation0] sm:%s3] %v4
    %v6 = vld [vmem:[#allocation0] sm:$0xf]
    %vm7 = vcmask 7168
    %8 = vst.msk [vmem:[%s1] ss:$8 sm:$0xf] %vm7, %v6
    %v9 = vld [vmem:[#allocation0] sm:$0xf]
    %10 = vrot.lane.b32.xlu0 %v9, 127
    %v11 = vpop.permute.xlu0 %10
    %vm12 = vcmask 7168
    %s13 = scalar_lea.vmem %s1, 1
    %14 = vst.msk [vmem:[%s13] ss:$8 sm:$0xf] %vm12, %v11
    %v15 = vld [vmem:[#allocation0] sm:$0xf]
    %16 = vrot.lane.b32.xlu0 %v15, 126
    %v17 = vpop.permute.xlu0 %16
    %vm18 = vcmask 7168
    %s19 = scalar_lea.vmem %s1, 2
    %20 = vst.msk [vmem:[%s19] ss:$8 sm:$0xf] %vm18, %v17
    %v21 = vld [vmem:[#allocation0] sm:$0xf]
    %22 = vrot.lane.b32.xlu0 %v21, 125
    %v23 = vpop.permute.xlu0 %22
    %vm24 = vcmask 7168
    %s25 = scalar_lea.vmem %s1, 3
    %26 = vst.msk [vmem:[%s25] ss:$8 sm:$0xf] %vm24, %v23
    %v27 = vld [vmem:[#allocation0] sm:$0xf]
    %28 = vrot.lane.b32.xlu0 %v27, 124
    %v29 = vpop.permute.xlu0 %28
    %vm30 = vcmask 7168
    %s31 = scalar_lea.vmem %s1, 4
    %32 = vst.msk [vmem:[%s31] ss:$8 sm:$0xf] %vm30, %v29
    %v33 = vld [vmem:[#allocation0] sm:$0xf]
    %34 = vrot.lane.b32.xlu0 %v33, 123
    %v35 = vpop.permute.xlu0 %34
    %vm36 = vcmask 7168
    %s37 = scalar_lea.vmem %s1, 5
    %38 = vst.msk [vmem:[%s37] ss:$8 sm:$0xf] %vm36, %v35
    %v39 = vld [vmem:[#allocation0] sm:$0xf]
    %40 = vrot.lane.b32.xlu0 %v39, 122
    %v41 = vpop.permute.xlu0 %40
    %vm42 = vcmask 7168
    %s43 = scalar_lea.vmem %s1, 6
    %44 = vst.msk [vmem:[%s43] ss:$8 sm:$0xf] %vm42, %v41
    %v45 = vld [vmem:[#allocation0] sm:$0xf]
    %46 = vrot.lane.b32.xlu0 %v45, 121
    %v47 = vpop.permute.xlu0 %46
    %vm48 = vcmask 7168
    %s49 = scalar_lea.vmem %s1, 7
    %50 = vst.msk [vmem:[%s49] ss:$8 sm:$0xf] %vm48, %v47

// kernel: unet_forward.29
$region0: #{unet_forward.29}
  #allocation0 [shape = 'u32[]', space=smem, size = 0x4, offset = 0x4, fixed_abs, tag = 'smem constant byte address 0x4 - core index']
  #allocation1 [shape = 'u32[72,128]{1,0:T(1,128)}', space=vmem, size = 0x9000, scoped, tag = 'internal scratch']
  %s0 = inlined_call_operand.vmem [shape: bf16[72,128], index: 0, kind: input, shape index: {}]
  %s1 = inlined_call_operand.vmem [shape: bf16[8,72], index: 1, kind: input, shape index: {}]
  %s2 = inlined_call_operand.vmem [shape: f32[8,1], index: 2, kind: input, shape index: {}]
  %s3 = inlined_call_operand.vmem [shape: f32[8,1], index: 3, kind: input, shape index: {}]
  %s4 = inlined_call_operand.vmem [shape: f32[8,128], index: 4, kind: output, shape index: {}]
  %s5 = sld [smem:[#allocation0]]
  $region26: #{unet_forward.29} parent=0
    _
  %s7 = ssub.s32 1, %s5
  %s8 = scalar_select 0, %s7, %s5
  // Predicated region
  $region2: #{unet_forward.29} parent=0 // pred_check
    _
  $region3: #{unet_forward.29} parent=0 // pred_check_branch
    %10 = sbr.rel (0) target = $region5
  $region4: #{unet_forward.29} parent=0 // pred_region
    _
  $region5: #{unet_forward.29} parent=0 // pred_fallthru
    _
  // Predicated region
  $region6: #{unet_forward.29} parent=0 // pred_check
    _
  $region7: #{unet_forward.29} parent=0 // pred_check_branch
    %12 = sbr.rel (0) target = $region9
  $region8: #{unet_forward.29} parent=0 // pred_region
    _
  $region9: #{unet_forward.29} parent=0 // pred_fallthru
    _
  // Predicated region
  $region10: #{unet_forward.29} parent=0 // pred_check
    _
  $region11: #{unet_forward.29} parent=0 // pred_check_branch
    %14 = sbr.rel (0) target = $region13
  $region12: #{unet_forward.29} parent=0 // pred_region
    _
  $region13: #{unet_forward.29} parent=0 // pred_fallthru
    _
  // Predicated region
  $region14: #{unet_forward.29} parent=0 // pred_check
    _
  $region15: #{unet_forward.29} parent=0 // pred_check_branch
    %16 = sbr.rel (0) target = $region17
  $region16: #{unet_forward.29} parent=0 // pred_region
    _
  $region17: #{unet_forward.29} parent=0 // pred_fallthru
    _
  %v18 = vld [vmem:[%s1] sm:$0xf]
  %v19 = vld [vmem:[%s0] sm:$0xf]
  %v20 = vld [vmem:[%s0 + $0x4] sm:$0xf]
  %v21 = vld [vmem:[%s0 + $0x8] sm:$0xf]
  %v22 = vld [vmem:[%s0 + $0xc] sm:$0xf]
  %v23 = vld [vmem:[%s0 + $0x10] sm:$0xf]
  %v24 = vld [vmem:[%s0 + $0x14] sm:$0xf]
  %v25 = vld [vmem:[%s0 + $0x18] sm:$0xf]
  %v26 = vld [vmem:[%s0 + $0x1c] sm:$0xf]
  %v27 = vld [vmem:[%s0 + $0x20] sm:$0xf]
  %v37 = vunpack.c.l.b16 %v19
  %v38 = vunpack.c.l.b16 %v20
  %v39 = vunpack.c.l.b16 %v21
  %v40 = vunpack.c.l.b16 %v22
  %v41 = vunpack.c.l.b16 %v23
  %v42 = vunpack.c.l.b16 %v24
  %v43 = vunpack.c.l.b16 %v25
  %v44 = vunpack.c.l.b16 %v26
  %v45 = vunpack.c.l.b16 %v27
  %v46 = vpack.c.b16 %v38, %v37
  %v47 = vpack.c.b16 %v40, %v39
  %v48 = vpack.c.b16 %v42, %v41
  %v49 = vpack.c.b16 %v44, %v43
  %v50 = vpack.c.b16 %v45, %v45
  %vm55 = vcmask 588800
  %v57 = vsel %vm55, %v18, 0
  %vm59 = vcmask 1043456
  %v61 = vsel %vm59, %v50, 0
  %63 = vmatpush.bf16.msra.mxu0 0
  %64 = vmatpush.bf16.msra.mxu0 0
  %65 = vmatpush.bf16.msra.mxu0 0
  %66 = vmatpush.bf16.msra.mxu0 %v61
  %67 = vmatpush.bf16.msra.mxu0 %v49
  %68 = vmatpush.bf16.msra.mxu0 %v48
  %69 = vmatpush.bf16.msra.mxu0 %v47
  %70 = vmatpush.bf16.msra.mxu0 %v46
  %71 = vmatmul.bf16.gmra.mxu0 %v57
  %v72 = vpop.f32.mrf.mxu0
  %v73 = vadd.f32 0.0, %v72
  %v74 = vpop.f32.mrf.mxu0
  %75 = vdwg.mxu0
  %76 = vadd.xlane.f32.xlu0 %v73
  %v77 = vpop.xlane.xlu0 %76
  %v78 = vmul.f32 %v77, 0.03125
  %v79 = vmul.f32 %v73, %v73
  %80 = vadd.xlane.f32.xlu0 %v79
  %v81 = vpop.xlane.xlu0 %80
  %v82 = vmul.f32 %v81, 0.03125
  %v83 = vmul.f32 %v78, %v78
  %v84 = vsub.f32 %v82, %v83
  %v85 = vmax.f32 %v84, 0.0
  %v86 = vld [vmem:[%s2] sm:$0xff]
  %v87 = vadd.f32 %v85, 1e-05
  %v88 = vrsqrt.pop %v87
  %v89 = vmul.f32 %v88, %v87
  %v90 = vmul.f32 %v89, %v88
  %v91 = vmul.f32 0.5, %v90
  %v92 = vsub.f32 1.5, %v91
  %v93 = vmul.f32 %v88, %v92
  %vm94 = vweird.f32 %v87
  %vm95 = vweird.f32 %v88
  %vm96 = vmor %vm94, %vm95
  %v97 = vsel %vm96, %v88, %v93
  %v98 = vmul.f32 %v86, %v97
  %v99 = vld [vmem:[%s3] sm:$0xff]
  %v100 = vmul.f32 %v78, %v98
  %v101 = vsub.f32 %v99, %v100
  %103 = vset.pattern.permute.xlu0 0
  %104 = vperm.xlu0 %103, %v98
  %v105 = vpop.permute.xlu0 %104
  %v107 = vmul.f32 %v73, %v105
  %109 = vset.pattern.permute.xlu0 0
  %110 = vperm.xlu0 %109, %v101
  %v111 = vpop.permute.xlu0 %110
  %v113 = vadd.f32 %v107, %v111
  %vm114 = vcmp.ge.f32.partialorder %v113, 0.0
  %v115 = vmul.f32 %v113, 0.01
  %v116 = vsel %vm114, %v113, %v115
  %117 = vst [vmem:[%s4] sm:$0xff] %v116
  // Predicated region
  $region18: #{unet_forward.29} parent=0 // pred_check
    _
  $region19: #{unet_forward.29} parent=0 // pred_check_branch
    %119 = sbr.rel (0) target = $region21
  $region20: #{unet_forward.29} parent=0 // pred_region
    _
  $region21: #{unet_forward.29} parent=0 // pred_fallthru
    _
  // Predicated region
  $region22: #{unet_forward.29} parent=0 // pred_check
    _
  $region23: #{unet_forward.29} parent=0 // pred_check_branch
    %121 = sbr.rel (0) target = $region25
  $region24: #{unet_forward.29} parent=0 // pred_region
    _
  $region25: #{unet_forward.29} parent=0 // pred_fallthru
    _

// kernel: unet_forward.30
$region0: #{unet_forward.30}
  #allocation0 [shape = 'u32[]', space=smem, size = 0x4, offset = 0x4, fixed_abs, tag = 'smem constant byte address 0x4 - core index']
  #allocation1 [shape = 'u32[72,128]{1,0:T(1,128)}', space=vmem, size = 0x9000, scoped, tag = 'internal scratch']
  %s0 = inlined_call_operand.vmem [shape: bf16[72,128], index: 0, kind: input, shape index: {}]
  %s1 = inlined_call_operand.vmem [shape: bf16[8,72], index: 1, kind: input, shape index: {}]
  %s2 = inlined_call_operand.vmem [shape: f32[8,1], index: 2, kind: input, shape index: {}]
  %s3 = inlined_call_operand.vmem [shape: f32[8,1], index: 3, kind: input, shape index: {}]
  %s4 = inlined_call_operand.vmem [shape: f32[8,128], index: 4, kind: input, shape index: {}]
  %s5 = inlined_call_operand.vmem [shape: f32[8,128], index: 5, kind: output, shape index: {}]
  %s6 = sld [smem:[#allocation0]]
  $region30: #{unet_forward.30} parent=0
    _
  %s8 = ssub.s32 1, %s6
  %s9 = scalar_select 0, %s8, %s6
  // Predicated region
  $region2: #{unet_forward.30} parent=0 // pred_check
    _
  $region3: #{unet_forward.30} parent=0 // pred_check_branch
    %11 = sbr.rel (0) target = $region5
  $region4: #{unet_forward.30} parent=0 // pred_region
    _
  $region5: #{unet_forward.30} parent=0 // pred_fallthru
    _
  // Predicated region
  $region6: #{unet_forward.30} parent=0 // pred_check
    _
  $region7: #{unet_forward.30} parent=0 // pred_check_branch
    %13 = sbr.rel (0) target = $region9
  $region8: #{unet_forward.30} parent=0 // pred_region
    _
  $region9: #{unet_forward.30} parent=0 // pred_fallthru
    _
  // Predicated region
  $region10: #{unet_forward.30} parent=0 // pred_check
    _
  $region11: #{unet_forward.30} parent=0 // pred_check_branch
    %15 = sbr.rel (0) target = $region13
  $region12: #{unet_forward.30} parent=0 // pred_region
    _
  $region13: #{unet_forward.30} parent=0 // pred_fallthru
    _
  // Predicated region
  $region14: #{unet_forward.30} parent=0 // pred_check
    _
  $region15: #{unet_forward.30} parent=0 // pred_check_branch
    %17 = sbr.rel (0) target = $region17
  $region16: #{unet_forward.30} parent=0 // pred_region
    _
  $region17: #{unet_forward.30} parent=0 // pred_fallthru
    _
  // Predicated region
  $region18: #{unet_forward.30} parent=0 // pred_check
    _
  $region19: #{unet_forward.30} parent=0 // pred_check_branch
    %19 = sbr.rel (0) target = $region21
  $region20: #{unet_forward.30} parent=0 // pred_region
    _
  $region21: #{unet_forward.30} parent=0 // pred_fallthru
    _
  %v21 = vld [vmem:[%s1] sm:$0xf]
  %v22 = vld [vmem:[%s0] sm:$0xf]
  %v23 = vld [vmem:[%s0 + $0x4] sm:$0xf]
  %v24 = vld [vmem:[%s0 + $0x8] sm:$0xf]
  %v25 = vld [vmem:[%s0 + $0xc] sm:$0xf]
  %v26 = vld [vmem:[%s0 + $0x10] sm:$0xf]
  %v27 = vld [vmem:[%s0 + $0x14] sm:$0xf]
  %v28 = vld [vmem:[%s0 + $0x18] sm:$0xf]
  %v29 = vld [vmem:[%s0 + $0x1c] sm:$0xf]
  %v30 = vld [vmem:[%s0 + $0x20] sm:$0xf]
  %v40 = vunpack.c.l.b16 %v22
  %v41 = vunpack.c.l.b16 %v23
  %v42 = vunpack.c.l.b16 %v24
  %v43 = vunpack.c.l.b16 %v25
  %v44 = vunpack.c.l.b16 %v26
  %v45 = vunpack.c.l.b16 %v27
  %v46 = vunpack.c.l.b16 %v28
  %v47 = vunpack.c.l.b16 %v29
  %v48 = vunpack.c.l.b16 %v30
  %v49 = vpack.c.b16 %v41, %v40
  %v50 = vpack.c.b16 %v43, %v42
  %v51 = vpack.c.b16 %v45, %v44
  %v52 = vpack.c.b16 %v47, %v46
  %v53 = vpack.c.b16 %v48, %v48
  %vm58 = vcmask 588800
  %v60 = vsel %vm58, %v21, 0
  %vm62 = vcmask 1043456
  %v64 = vsel %vm62, %v53, 0
  %66 = vmatpush.bf16.msra.mxu0 0
  %67 = vmatpush.bf16.msra.mxu0 0
  %68 = vmatpush.bf16.msra.mxu0 0
  %69 = vmatpush.bf16.msra.mxu0 %v64
  %70 = vmatpush.bf16.msra.mxu0 %v52
  %71 = vmatpush.bf16.msra.mxu0 %v51
  %72 = vmatpush.bf16.msra.mxu0 %v50
  %73 = vmatpush.bf16.msra.mxu0 %v49
  %74 = vmatmul.bf16.gmra.mxu0 %v60
  %v75 = vpop.f32.mrf.mxu0
  %v76 = vadd.f32 0.0, %v75
  %v77 = vpop.f32.mrf.mxu0
  %78 = vdwg.mxu0
  %79 = vadd.xlane.f32.xlu0 %v76
  %v80 = vpop.xlane.xlu0 %79
  %v81 = vmul.f32 %v80, 0.03125
  %v82 = vmul.f32 %v76, %v76
  %83 = vadd.xlane.f32.xlu0 %v82
  %v84 = vpop.xlane.xlu0 %83
  %v85 = vmul.f32 %v84, 0.03125
  %v86 = vmul.f32 %v81, %v81
  %v87 = vsub.f32 %v85, %v86
  %v88 = vmax.f32 %v87, 0.0
  %v89 = vld [vmem:[%s2] sm:$0xff]
  %v90 = vadd.f32 %v88, 1e-05
  %v91 = vrsqrt.pop %v90
  %v92 = vmul.f32 %v91, %v90
  %v93 = vmul.f32 %v92, %v91
  %v94 = vmul.f32 0.5, %v93
  %v95 = vsub.f32 1.5, %v94
  %v96 = vmul.f32 %v91, %v95
  %vm97 = vweird.f32 %v90
  %vm98 = vweird.f32 %v91
  %vm99 = vmor %vm97, %vm98
  %v100 = vsel %vm99, %v91, %v96
  %v101 = vmul.f32 %v89, %v100
  %v102 = vld [vmem:[%s3] sm:$0xff]
  %v103 = vmul.f32 %v81, %v101
  %v104 = vsub.f32 %v102, %v103
  %106 = vset.pattern.permute.xlu0 0
  %107 = vperm.xlu0 %106, %v101
  %v108 = vpop.permute.xlu0 %107
  %v110 = vmul.f32 %v76, %v108
  %112 = vset.pattern.permute.xlu0 0
  %113 = vperm.xlu0 %112, %v104
  %v114 = vpop.permute.xlu0 %113
  %v116 = vadd.f32 %v110, %v114
  %v117 = vld [vmem:[%s4] sm:$0xff]
  %v118 = vadd.f32 %v116, %v117
  %vm119 = vcmp.ge.f32.partialorder %v118, 0.0
  %v120 = vmul.f32 %v118, 0.01
  %v121 = vsel %vm119, %v118, %v120
  %122 = vst [vmem:[%s5] sm:$0xff] %v121
  // Predicated region
  $region22: #{unet_forward.30} parent=0 // pred_check
    _
  $region23: #{unet_forward.30} parent=0 // pred_check_branch
    %124 = sbr.rel (0) target = $region25
  $region24: #{unet_forward.30} parent=0 // pred_region
    _
  $region25: #{unet_forward.30} parent=0 // pred_fallthru
    _
  // Predicated region
  $region26: #{unet_forward.30} parent=0 // pred_check
    _
  $region27: #{unet_forward.30} parent=0 // pred_check_branch
    %126 = sbr.rel (0) target = $region29
  $region28: #{unet_forward.30} parent=0 // pred_region
    _
  $region29: #{unet_forward.30} parent=0 // pred_fallthru
    _

// kernel: unet_forward.28
$region0: #{unet_forward.28}
  #allocation0 [shape = 'u32[]', space=smem, size = 0x4, offset = 0x4, fixed_abs, tag = 'smem constant byte address 0x4 - core index']
  #allocation1 [shape = 'u32[72,128]{1,0:T(1,128)}', space=vmem, size = 0x9000, scoped, tag = 'internal scratch']
  %s0 = inlined_call_operand.vmem [shape: bf16[72,128], index: 0, kind: input, shape index: {}]
  %s1 = inlined_call_operand.vmem [shape: bf16[8,72], index: 1, kind: input, shape index: {}]
  %s2 = inlined_call_operand.vmem [shape: f32[8,1], index: 2, kind: input, shape index: {}]
  %s3 = inlined_call_operand.vmem [shape: f32[8,1], index: 3, kind: input, shape index: {}]
  %s4 = inlined_call_operand.vmem [shape: f32[32,128], index: 4, kind: input, shape index: {}]
  %s5 = inlined_call_operand.vmem [shape: f32[8,32], index: 5, kind: input, shape index: {}]
  %s6 = inlined_call_operand.vmem [shape: f32[8,1], index: 6, kind: input, shape index: {}]
  %s7 = inlined_call_operand.vmem [shape: f32[8,128], index: 7, kind: output, shape index: {}]
  %s8 = sld [smem:[#allocation0]]
  $region38: #{unet_forward.28} parent=0
    _
  %s10 = ssub.s32 1, %s8
  %s11 = scalar_select 0, %s10, %s8
  // Predicated region
  $region2: #{unet_forward.28} parent=0 // pred_check
    _
  $region3: #{unet_forward.28} parent=0 // pred_check_branch
    %13 = sbr.rel (0) target = $region5
  $region4: #{unet_forward.28} parent=0 // pred_region
    _
  $region5: #{unet_forward.28} parent=0 // pred_fallthru
    _
  // Predicated region
  $region6: #{unet_forward.28} parent=0 // pred_check
    _
  $region7: #{unet_forward.28} parent=0 // pred_check_branch
    %15 = sbr.rel (0) target = $region9
  $region8: #{unet_forward.28} parent=0 // pred_region
    _
  $region9: #{unet_forward.28} parent=0 // pred_fallthru
    _
  // Predicated region
  $region10: #{unet_forward.28} parent=0 // pred_check
    _
  $region11: #{unet_forward.28} parent=0 // pred_check_branch
    %17 = sbr.rel (0) target = $region13
  $region12: #{unet_forward.28} parent=0 // pred_region
    _
  $region13: #{unet_forward.28} parent=0 // pred_fallthru
    _
  // Predicated region
  $region14: #{unet_forward.28} parent=0 // pred_check
    _
  $region15: #{unet_forward.28} parent=0 // pred_check_branch
    %19 = sbr.rel (0) target = $region17
  $region16: #{unet_forward.28} parent=0 // pred_region
    _
  $region17: #{unet_forward.28} parent=0 // pred_fallthru
    _
  // Predicated region
  $region18: #{unet_forward.28} parent=0 // pred_check
    _
  $region19: #{unet_forward.28} parent=0 // pred_check_branch
    %21 = sbr.rel (0) target = $region21
  $region20: #{unet_forward.28} parent=0 // pred_region
    _
  $region21: #{unet_forward.28} parent=0 // pred_fallthru
    _
  // Predicated region
  $region22: #{unet_forward.28} parent=0 // pred_check
    _
  $region23: #{unet_forward.28} parent=0 // pred_check_branch
    %23 = sbr.rel (0) target = $region25
  $region24: #{unet_forward.28} parent=0 // pred_region
    _
  $region25: #{unet_forward.28} parent=0 // pred_fallthru
    _
  // Predicated region
  $region26: #{unet_forward.28} parent=0 // pred_check
    _
  $region27: #{unet_forward.28} parent=0 // pred_check_branch
    %25 = sbr.rel (0) target = $region29
  $region28: #{unet_forward.28} parent=0 // pred_region
    _
  $region29: #{unet_forward.28} parent=0 // pred_fallthru
    _
  %v27 = vld [vmem:[%s1] sm:$0xf]
  %v28 = vld [vmem:[%s0] sm:$0xf]
  %v29 = vld [vmem:[%s0 + $0x4] sm:$0xf]
  %v30 = vld [vmem:[%s0 + $0x8] sm:$0xf]
  %v31 = vld [vmem:[%s0 + $0xc] sm:$0xf]
  %v32 = vld [vmem:[%s0 + $0x10] sm:$0xf]
  %v33 = vld [vmem:[%s0 + $0x14] sm:$0xf]
  %v34 = vld [vmem:[%s0 + $0x18] sm:$0xf]
  %v35 = vld [vmem:[%s0 + $0x1c] sm:$0xf]
  %v36 = vld [vmem:[%s0 + $0x20] sm:$0xf]
  %v46 = vunpack.c.l.b16 %v28
  %v47 = vunpack.c.l.b16 %v29
  %v48 = vunpack.c.l.b16 %v30
  %v49 = vunpack.c.l.b16 %v31
  %v50 = vunpack.c.l.b16 %v32
  %v51 = vunpack.c.l.b16 %v33
  %v52 = vunpack.c.l.b16 %v34
  %v53 = vunpack.c.l.b16 %v35
  %v54 = vunpack.c.l.b16 %v36
  %v55 = vpack.c.b16 %v47, %v46
  %v56 = vpack.c.b16 %v49, %v48
  %v57 = vpack.c.b16 %v51, %v50
  %v58 = vpack.c.b16 %v53, %v52
  %v59 = vpack.c.b16 %v54, %v54
  %vm64 = vcmask 588800
  %v66 = vsel %vm64, %v27, 0
  %vm68 = vcmask 1043456
  %v70 = vsel %vm68, %v59, 0
  %72 = vmatpush.bf16.msra.mxu0 0
  %73 = vmatpush.bf16.msra.mxu0 0
  %74 = vmatpush.bf16.msra.mxu0 0
  %75 = vmatpush.bf16.msra.mxu0 %v70
  %76 = vmatpush.bf16.msra.mxu0 %v58
  %77 = vmatpush.bf16.msra.mxu0 %v57
  %78 = vmatpush.bf16.msra.mxu0 %v56
  %79 = vmatpush.bf16.msra.mxu0 %v55
  %80 = vmatmul.bf16.gmra.mxu0 %v66
  %v81 = vpop.f32.mrf.mxu0
  %v82 = vadd.f32 0.0, %v81
  %v83 = vpop.f32.mrf.mxu0
  %84 = vdwg.mxu0
  %85 = vadd.xlane.f32.xlu0 %v82
  %v86 = vpop.xlane.xlu0 %85
  %v87 = vmul.f32 %v86, 0.03125
  %v88 = vmul.f32 %v82, %v82
  %89 = vadd.xlane.f32.xlu0 %v88
  %v90 = vpop.xlane.xlu0 %89
  %v91 = vmul.f32 %v90, 0.03125
  %v92 = vmul.f32 %v87, %v87
  %v93 = vsub.f32 %v91, %v92
  %v94 = vmax.f32 %v93, 0.0
  %v95 = vld [vmem:[%s2] sm:$0xff]
  %v96 = vadd.f32 %v94, 1e-05
  %v97 = vrsqrt.pop %v96
  %v98 = vmul.f32 %v97, %v96
  %v99 = vmul.f32 %v98, %v97
  %v100 = vmul.f32 0.5, %v99
  %v101 = vsub.f32 1.5, %v100
  %v102 = vmul.f32 %v97, %v101
  %vm103 = vweird.f32 %v96
  %vm104 = vweird.f32 %v97
  %vm105 = vmor %vm103, %vm104
  %v106 = vsel %vm105, %v97, %v102
  %v107 = vmul.f32 %v95, %v106
  %v108 = vld [vmem:[%s3] sm:$0xff]
  %v109 = vmul.f32 %v87, %v107
  %v110 = vsub.f32 %v108, %v109
  %112 = vset.pattern.permute.xlu0 0
  %113 = vperm.xlu0 %112, %v107
  %v114 = vpop.permute.xlu0 %113
  %v116 = vmul.f32 %v82, %v114
  %118 = vset.pattern.permute.xlu0 0
  %119 = vperm.xlu0 %118, %v110
  %v120 = vpop.permute.xlu0 %119
  %v122 = vadd.f32 %v116, %v120
  %v123 = vld [vmem:[%s5] sm:$0xff]
  %v124 = vld [vmem:[%s4] sm:$0xff]
  %v125 = vld [vmem:[%s4 + $0x8] sm:$0xff]
  %v126 = vld [vmem:[%s4 + $0x10] sm:$0xff]
  %v127 = vld [vmem:[%s4 + $0x18] sm:$0xff]
  %v128 = vld [vmem:[%s6] sm:$0xff]
  %130 = vset.pattern.permute.xlu0 0
  %131 = vperm.xlu0 %130, %v128
  %v132 = vpop.permute.xlu0 %131
  %vm134 = vcmask 261120
  %v136 = vsel %vm134, %v123, 0
  %138 = vmatpush.msra.mxu0 0.0
  %139 = vmatpush.msra.mxu0 0.0
  %140 = vmatpush.msra.mxu0 0.0
  %141 = vmatpush.msra.mxu0 0.0
  %142 = vmatpush.msra.mxu0 0.0
  %143 = vmatpush.msra.mxu0 0.0
  %144 = vmatpush.msra.mxu0 0.0
  %145 = vmatpush.msra.mxu0 0.0
  %146 = vmatpush.msra.mxu0 0.0
  %147 = vmatpush.msra.mxu0 0.0
  %148 = vmatpush.msra.mxu0 0.0
  %149 = vmatpush.msra.mxu0 0.0
  %150 = vmatpush.msra.mxu0 %v127
  %151 = vmatpush.msra.mxu0 %v126
  %152 = vmatpush.msra.mxu0 %v125
  %153 = vmatpush.msra.mxu0 %v124
  %154 = vmatmul.f32.gmra.mxu0 %v136
  %v155 = vpop.f32.mrf.mxu0
  %v156 = vadd.f32 %v132, %v155
  %157 = vdwg.mxu0
  %v158 = vadd.f32 %v122, %v156
  %vm159 = vcmp.ge.f32.partialorder %v158, 0.0
  %v160 = vmul.f32 %v158, 0.01
  %v161 = vsel %vm159, %v158, %v160
  %162 = vst [vmem:[%s7] sm:$0xff] %v161
  // Predicated region
  $region30: #{unet_forward.28} parent=0 // pred_check
    _
  $region31: #{unet_forward.28} parent=0 // pred_check_branch
    %164 = sbr.rel (0) target = $region33
  $region32: #{unet_forward.28} parent=0 // pred_region
    _
  $region33: #{unet_forward.28} parent=0 // pred_fallthru
    _
  // Predicated region
  $region34: #{unet_forward.28} parent=0 // pred_check
    _
  $region35: #{unet_forward.28} parent=0 // pred_check_branch
    %166 = sbr.rel (0) target = $region37
  $region36: #{unet_forward.28} parent=0 // pred_region
    _
  $region37: #{unet_forward.28} parent=0 // pred_fallthru
    _

// kernel: unet_forward.31
$region0: #{unet_forward.31}
  #allocation0 [shape = 'u32[]', space=smem, size = 0x4, offset = 0x4, fixed_abs, tag = 'smem constant byte address 0x4 - core index']
  #allocation1 [shape = 'u32[72,128]{1,0:T(1,128)}', space=vmem, size = 0x9000, scoped, tag = 'internal scratch']
  %s0 = inlined_call_operand.vmem [shape: bf16[32,8], index: 0, kind: input, shape index: {}]
  %s1 = inlined_call_operand.vmem [shape: bf16[8,128], index: 1, kind: input, shape index: {}]
  %s2 = inlined_call_operand.vmem [shape: f32[32,1], index: 2, kind: input, shape index: {}]
  %s3 = inlined_call_operand.vmem [shape: f32[32,128], index: 3, kind: output, shape index: {}]
  %s4 = sld [smem:[#allocation0]]
  $region22: #{unet_forward.31} parent=0
    _
  %s6 = ssub.s32 1, %s4
  %s7 = scalar_select 0, %s6, %s4
  // Predicated region
  $region2: #{unet_forward.31} parent=0 // pred_check
    _
  $region3: #{unet_forward.31} parent=0 // pred_check_branch
    %9 = sbr.rel (0) target = $region5
  $region4: #{unet_forward.31} parent=0 // pred_region
    _
  $region5: #{unet_forward.31} parent=0 // pred_fallthru
    _
  // Predicated region
  $region6: #{unet_forward.31} parent=0 // pred_check
    _
  $region7: #{unet_forward.31} parent=0 // pred_check_branch
    %11 = sbr.rel (0) target = $region9
  $region8: #{unet_forward.31} parent=0 // pred_region
    _
  $region9: #{unet_forward.31} parent=0 // pred_fallthru
    _
  // Predicated region
  $region10: #{unet_forward.31} parent=0 // pred_check
    _
  $region11: #{unet_forward.31} parent=0 // pred_check_branch
    %13 = sbr.rel (0) target = $region13
  $region12: #{unet_forward.31} parent=0 // pred_region
    _
  $region13: #{unet_forward.31} parent=0 // pred_fallthru
    _
  %v15 = vld [vmem:[%s0] sm:$0xf]
  %v16 = vld [vmem:[%s0 + $0x4] sm:$0xf]
  %v17 = vld [vmem:[%s0 + $0x8] sm:$0xf]
  %v18 = vld [vmem:[%s0 + $0xc] sm:$0xf]
  %v19 = vld [vmem:[%s1] sm:$0xf]
  %v20 = vld [vmem:[%s2] sm:$0xff]
  %v21 = vld [vmem:[%s2 + $0x8] sm:$0xff]
  %v22 = vld [vmem:[%s2 + $0x10] sm:$0xff]
  %v23 = vld [vmem:[%s2 + $0x18] sm:$0xff]
  %25 = vset.pattern.permute.xlu0 0
  %26 = vperm.xlu0 %25, %v20
  %v27 = vpop.permute.xlu0 %26
  %30 = vset.pattern.permute.xlu0 0
  %31 = vperm.xlu0 %30, %v21
  %v32 = vpop.permute.xlu0 %31
  %35 = vset.pattern.permute.xlu0 0
  %36 = vperm.xlu0 %35, %v22
  %v37 = vpop.permute.xlu0 %36
  %40 = vset.pattern.permute.xlu0 0
  %41 = vperm.xlu0 %40, %v23
  %v42 = vpop.permute.xlu0 %41
  %v48 = vunpack.c.l.b16 %v15
  %v49 = vunpack.c.l.b16 %v16
  %v50 = vunpack.c.l.b16 %v17
  %v51 = vunpack.c.l.b16 %v18
  %v52 = vpack.c.b16 %v49, %v48
  %v53 = vpack.c.b16 %v51, %v50
  %vm54 = vcmask 64512
  %v56 = vsel %vm54, %v52, 0
  %v59 = vsel %vm54, %v53, 0
  %vm61 = vcmask 1043456
  %v63 = vsel %vm61, %v19, 0
  %65 = vmatpush.bf16.msra.mxu0 0
  %66 = vmatpush.bf16.msra.mxu0 0
  %67 = vmatpush.bf16.msra.mxu0 0
  %68 = vmatpush.bf16.msra.mxu0 0
  %69 = vmatpush.bf16.msra.mxu0 0
  %70 = vmatpush.bf16.msra.mxu0 0
  %71 = vmatpush.bf16.msra.mxu0 0
  %72 = vmatpush.bf16.msra.mxu0 %v63
  %73 = vmatmul.bf16.gmra.mxu0 %v56
  %v74 = vpop.f32.mrf.mxu0
  %v75 = vadd.f32 %v27, %v74
  %v76 = vpop.f32.mrf.mxu0
  %v77 = vadd.f32 %v32, %v76
  %78 = vmatmul.bf16.gmra.mxu0 %v59
  %v79 = vpop.f32.mrf.mxu0
  %v80 = vadd.f32 %v37, %v79
  %v81 = vpop.f32.mrf.mxu0
  %v82 = vadd.f32 %v42, %v81
  %83 = vdwg.mxu0
  %vm84 = vcmp.ge.f32.partialorder %v75, 0.0
  %vm85 = vcmp.ge.f32.partialorder %v77, 0.0
  %vm86 = vcmp.ge.f32.partialorder %v80, 0.0
  %vm87 = vcmp.ge.f32.partialorder %v82, 0.0
  %v88 = vmul.f32 %v75, 0.01
  %v89 = vmul.f32 %v77, 0.01
  %v90 = vmul.f32 %v80, 0.01
  %v91 = vmul.f32 %v82, 0.01
  %v92 = vsel %vm84, %v75, %v88
  %v93 = vsel %vm85, %v77, %v89
  %v94 = vsel %vm86, %v80, %v90
  %v95 = vsel %vm87, %v82, %v91
  %96 = vst [vmem:[%s3] sm:$0xff] %v92
  %97 = vst [vmem:[%s3 + $0x8] sm:$0xff] %v93
  %98 = vst [vmem:[%s3 + $0x10] sm:$0xff] %v94
  %99 = vst [vmem:[%s3 + $0x18] sm:$0xff] %v95
  // Predicated region
  $region14: #{unet_forward.31} parent=0 // pred_check
    _
  $region15: #{unet_forward.31} parent=0 // pred_check_branch
    %101 = sbr.rel (0) target = $region17
  $region16: #{unet_forward.31} parent=0 // pred_region
    _
  $region17: #{unet_forward.31} parent=0 // pred_fallthru
    _
  // Predicated region
  $region18: #{unet_forward.31} parent=0 // pred_check
    _
  $region19: #{unet_forward.31} parent=0 // pred_check_branch
    %103 = sbr.rel (0) target = $region21
  $region20: #{unet_forward.31} parent=0 // pred_region
    _
  $region21: #{unet_forward.31} parent=0 // pred_fallthru
    _

// kernel: unet_forward.33
$region0: #{unet_forward.33}
  #allocation0 [shape = 'u32[]', space=smem, size = 0x4, offset = 0x4, fixed_abs, tag = 'smem constant byte address 0x4 - core index']
  #allocation1 [shape = 'u32[72,128]{1,0:T(1,128)}', space=vmem, size = 0x9000, scoped, tag = 'internal scratch']
  %s0 = inlined_call_operand.vmem [shape: bf16[4,72], index: 0, kind: input, shape index: {}]
  %s1 = inlined_call_operand.vmem [shape: bf16[72,512], index: 1, kind: input, shape index: {}]
  %s2 = inlined_call_operand.vmem [shape: f32[4,1], index: 2, kind: input, shape index: {}]
  %s3 = inlined_call_operand.vmem [shape: f32[4,512], index: 3, kind: output, shape index: {}]
  %s4 = sld [smem:[#allocation0]]
  $region83: #{unet_forward.33} parent=0
    _
  %s6 = ssub.s32 1, %s4
  %s7 = scalar_select 0, %s6, %s4
  $region1: #{unet_forward.33} parent=0
    #allocation2 [shape = 'u8[73728]{0}', space=vmem, size = 0x12000, scoped, tag = 'input window, operand 1']
    loop: start=0, step=1, limit=4
    $region2: #{unet_forward.33} parent=1 // loop_pre_header
      _
    $region3: #{unet_forward.33} parent=1 // loop_header
      %s9 = sphi 0, %s13
      %p10 = scmp.ge.s32.totalorder %s9, 4
      %s17 = sphi 0, %s17
      %s19 = sphi 0, %s17
      %s20 = sphi 0, %s19
      %s34 = sphi 0, %s20
      %s40 = sphi 0, %s42
      %s43 = sphi 0, %s40
      %s44 = sphi 0, %s43
      %s60 = sphi 0, %s44
      %s64 = sphi 0, %s64
      %s66 = sphi 0, %s64
      %s67 = sphi 0, %s66
      %s81 = sphi 0, %s67
      %s87 = sphi 0, %s89
      %s90 = sphi 0, %s87
      %s91 = sphi 0, %s90
      %s107 = sphi 0, %s91
    $region4: #{unet_forward.33} parent=1 // loop_header_branch
      %12 = sbr.rel (%p10) target = $region8
    $region5: #{unet_forward.33} parent=1 // loop_body
      %s14 = ssub.s32 %s9, 1
      %s15 = ssub.s32 %s9, 2
      %s16 = sadd.s32 %s9, 1
      %s18 = sadd.s32 %s17, 1
      %p21 = scmp.eq.s32.totalorder %s9, 1
      %p22 = scmp.ne.s32.totalorder %s17, %s19
      %p23 = scmp.eq.s32.totalorder %s9, 0
      %p24 = por %p22, %p23
      %p25 = scmp.ne.s32.totalorder %s17, %s19
      %p26 = scmp.eq.s32.totalorder %s14, 1
      %p27 = por %p25, %p26
      %p28 = scmp.ne.s32.totalorder %s19, %s20
      %p29 = scmp.eq.s32.totalorder %s14, 0
      %p30 = por %p28, %p29
      %p31 = scmp.ne.s32.totalorder %s19, %s20
      %p32 = scmp.eq.s32.totalorder %s15, 1
      %p33 = por %p31, %p32
      %p35 = scmp.ne.s32.totalorder %s20, %s34
      %p36 = scmp.eq.s32.totalorder %s15, 0
      %p37 = por %p35, %p36
      %s38 = ssub.s32 %s9, %s16
      %p39 = scmp.eq.s32.totalorder %s38, 0
      %s41 = sadd.s32 %s40, 1
      %s42 = scalar_select %p39, %s40, %s41
      %p45 = pneg %p39
      %p46 = scmp.eq.s32.totalorder %s9, 1
      %p47 = por %p45, %p46
      %p48 = scmp.ne.s32.totalorder %s40, %s43
      %p49 = scmp.eq.s32.totalorder %s9, 0
      %p50 = por %p48, %p49
      %p51 = scmp.ne.s32.totalorder %s40, %s43
      %p52 = scmp.eq.s32.totalorder %s14, 1
      %p53 = por %p51, %p52
      %p54 = scmp.ne.s32.totalorder %s43, %s44
      %p55 = scmp.eq.s32.totalorder %s14, 0
      %p56 = por %p54, %p55
      %p57 = scmp.ne.s32.totalorder %s43, %s44
      %p58 = scmp.eq.s32.totalorder %s15, 1
      %p59 = por %p57, %p58
      %p61 = scmp.ne.s32.totalorder %s44, %s60
      %p62 = scmp.eq.s32.totalorder %s15, 0
      %p63 = por %p61, %p62
      %s65 = sadd.s32 %s64, 1
      %p68 = scmp.eq.s32.totalorder %s9, 1
      %p69 = scmp.ne.s32.totalorder %s64, %s66
      %p70 = scmp.eq.s32.totalorder %s9, 0
      %p71 = por %p69, %p70
      %p72 = scmp.ne.s32.totalorder %s64, %s66
      %p73 = scmp.eq.s32.totalorder %s14, 1
      %p74 = por %p72, %p73
      %p75 = scmp.ne.s32.totalorder %s66, %s67
      %p76 = scmp.eq.s32.totalorder %s14, 0
      %p77 = por %p75, %p76
      %p78 = scmp.ne.s32.totalorder %s66, %s67
      %p79 = scmp.eq.s32.totalorder %s15, 1
      %p80 = por %p78, %p79
      %p82 = scmp.ne.s32.totalorder %s67, %s81
      %p83 = scmp.eq.s32.totalorder %s15, 0
      %p84 = por %p82, %p83
      %s85 = ssub.s32 %s9, %s16
      %p86 = scmp.eq.s32.totalorder %s85, 0
      %s88 = sadd.s32 %s87, 1
      %s89 = scalar_select %p86, %s87, %s88
      %p92 = pneg %p86
      %p93 = scmp.eq.s32.totalorder %s9, 1
      %p94 = por %p92, %p93
      %p95 = scmp.ne.s32.totalorder %s87, %s90
      %p96 = scmp.eq.s32.totalorder %s9, 0
      %p97 = por %p95, %p96
      %p98 = scmp.ne.s32.totalorder %s87, %s90
      %p99 = scmp.eq.s32.totalorder %s14, 1
      %p100 = por %p98, %p99
      %p101 = scmp.ne.s32.totalorder %s90, %s91
      %p102 = scmp.eq.s32.totalorder %s14, 0
      %p103 = por %p101, %p102
      %p104 = scmp.ne.s32.totalorder %s90, %s91
      %p105 = scmp.eq.s32.totalorder %s15, 1
      %p106 = por %p104, %p105
      %p108 = scmp.ne.s32.totalorder %s91, %s107
      %p109 = scmp.eq.s32.totalorder %s15, 0
      %p110 = por %p108, %p109
      %p111 = scmp.le.s32.totalorder 1, %s9
      %p112 = scmp.lt.s32.totalorder %s9, 3
      %p113 = pnand %p111, %p112
      %p114 = pneg %p113
      // Predicated region
      $region9: #{unet_forward.33} parent=5 // pred_check
        _
      $region10: #{unet_forward.33} parent=5 // pred_check_branch
        %116 = sbr.rel (%p113) target = $region12
      $region11: #{unet_forward.33} parent=5 // pred_region
        %s117 = ssub.s32 %s9, 1
        // Predicated region
        $region13: #{unet_forward.33} parent=11 // pred_check
          %p118 = pneg %p30
        $region14: #{unet_forward.33} parent=11 // pred_check_branch
          %120 = sbr.rel (%p118) target = $region16
        $region15: #{unet_forward.33} parent=11 // pred_region
          _
        $region16: #{unet_forward.33} parent=11 // pred_fallthru
          _
        // Predicated region
        $region17: #{unet_forward.33} parent=11 // pred_check
          %p121 = pneg %p77
        $region18: #{unet_forward.33} parent=11 // pred_check_branch
          %123 = sbr.rel (%p121) target = $region20
        $region19: #{unet_forward.33} parent=11 // pred_region
          _
        $region20: #{unet_forward.33} parent=11 // pred_fallthru
          _
      $region12: #{unet_forward.33} parent=5 // pred_fallthru
        _
      %p124 = scmp.lt.s32.totalorder %s9, 2
      // Predicated region
      $region21: #{unet_forward.33} parent=5 // pred_check
        %p125 = pneg %p124
      $region22: #{unet_forward.33} parent=5 // pred_check_branch
        %127 = sbr.rel (%p125) target = $region24
      $region23: #{unet_forward.33} parent=5 // pred_region
        // Predicated region
        $region25: #{unet_forward.33} parent=23 // pred_check
          %p128 = pneg %p50
        $region26: #{unet_forward.33} parent=23 // pred_check_branch
          %130 = sbr.rel (%p128) target = $region28
        $region27: #{unet_forward.33} parent=23 // pred_region
          %s131 = sand.u32 %s40, 1
          %s132 = sand.u32 %s40, 1
          %s133 = smul.addr %s132, 72
          %s134 = scalar_lea.vmem [#allocation2], %s133
          %s135 = smul.u32 2, %s9
          %s136 = smul.addr %s135, 4
          %s137 = scalar_lea.vmem %s1, %s136
          // Predicated region
          $region29: #{unet_forward.33} parent=27 // pred_check
            _
          $region30: #{unet_forward.33} parent=27 // pred_check_branch
            %139 = sbr.rel (0) target = $region32
          $region31: #{unet_forward.33} parent=27 // pred_region
            // Predicated region
            $region33: #{unet_forward.33} parent=31 // pred_check
              _
            $region34: #{unet_forward.33} parent=31 // pred_check_branch
              %141 = sbr.rel (0) target = $region36
            $region35: #{unet_forward.33} parent=31 // pred_region
              // Predicated region
              $region48: #{unet_forward.33} parent=35 // pred_check
                _
              $region49: #{unet_forward.33} parent=35 // pred_check_branch
                %173 = sbr.rel (0) target = $region51
              $region50: #{unet_forward.33} parent=35 // pred_region
                loop: start=0, step=1, limit=1
                $region52: #{unet_forward.33} parent=50 // loop_pre_header
                  _
                $region53: #{unet_forward.33} parent=50 // loop_header
                  %s175 = sphi 0, %s179
                  %p176 = scmp.ge.s32.totalorder %s175, 1
                  %s180 = sphi %s137, %s137
                  %s181 = sphi %s134, %s134
                $region54: #{unet_forward.33} parent=50 // loop_header_branch
                  %178 = sbr.rel (%p176) target = $region58
                $region55: #{unet_forward.33} parent=50 // loop_body
                  %v182 = vld [vmem:[%s180] sm:$0xff]
                  %183 = vst [vmem:[%s181] sm:$0xff] %v182
                  %v184 = vld [vmem:[%s180 + $0x10] sm:$0xff]
                  %185 = vst [vmem:[%s181 + $0x8] sm:$0xff] %v184
                  %v186 = vld [vmem:[%s180 + $0x20] sm:$0xff]
                  %187 = vst [vmem:[%s181 + $0x10] sm:$0xff] %v186
                  %v188 = vld [vmem:[%s180 + $0x30] sm:$0xff]
                  %189 = vst [vmem:[%s181 + $0x18] sm:$0xff] %v188
                  %v190 = vld [vmem:[%s180 + $0x40] sm:$0xff]
                  %191 = vst [vmem:[%s181 + $0x20] sm:$0xff] %v190
                  %v192 = vld [vmem:[%s180 + $0x50] sm:$0xff]
                  %193 = vst [vmem:[%s181 + $0x28] sm:$0xff] %v192
                  %v194 = vld [vmem:[%s180 + $0x60] sm:$0xff]
                  %195 = vst [vmem:[%s181 + $0x30] sm:$0xff] %v194
                  %v196 = vld [vmem:[%s180 + $0x70] sm:$0xff]
                  %197 = vst [vmem:[%s181 + $0x38] sm:$0xff] %v196
                  %v198 = vld [vmem:[%s180 + $0x80] sm:$0xff]
                  %199 = vst [vmem:[%s181 + $0x40] sm:$0xff] %v198
                $region56: #{unet_forward.33} parent=50 // loop_footer
                  %s179 = sadd.s32 1, %s175
                $region57: #{unet_forward.33} parent=50 // loop_footer_branch
                  %174 = sbr.rel target = $region53
                $region58: #{unet_forward.33} parent=50 // loop_exit
                  _
              $region51: #{unet_forward.33} parent=35 // pred_fallthru
                _
              // Predicated region
              $region59: #{unet_forward.33} parent=35 // pred_check
                _
              $region60: #{unet_forward.33} parent=35 // pred_check_branch
                %201 = sbr.rel target = $region62
              $region61: #{unet_forward.33} parent=35 // pred_region
                _
              $region62: #{unet_forward.33} parent=35 // pred_fallthru
                _
            $region36: #{unet_forward.33} parent=31 // pred_fallthru
              _
            // Predicated region
            $region37: #{unet_forward.33} parent=31 // pred_check
              _
            $region38: #{unet_forward.33} parent=31 // pred_check_branch
              %143 = sbr.rel target = $region40
            $region39: #{unet_forward.33} parent=31 // pred_region
              %s145 = ssub.s32 256, 1
              loop: start=0, step=1, limit=1
              $region41: #{unet_forward.33} parent=39 // loop_pre_header
                _
              $region42: #{unet_forward.33} parent=39 // loop_header
                %s147 = sphi 0, %s151
                %p148 = scmp.ge.s32.totalorder %s147, 1
                %s152 = sphi %s137, %s137
                %s153 = sphi %s134, %s134
              $region43: #{unet_forward.33} parent=39 // loop_header_branch
                %150 = sbr.rel (%p148) target = $region47
              $region44: #{unet_forward.33} parent=39 // loop_body
                %v154 = vld [vmem:[%s152] sm:%s145]
                %155 = vst [vmem:[%s153] sm:%s145] %v154
                %v156 = vld [vmem:[%s152 + $0x10] sm:%s145]
                %157 = vst [vmem:[%s153 + $0x8] sm:%s145] %v156
                %v158 = vld [vmem:[%s152 + $0x20] sm:%s145]
                %159 = vst [vmem:[%s153 + $0x10] sm:%s145] %v158
                %v160 = vld [vmem:[%s152 + $0x30] sm:%s145]
                %161 = vst [vmem:[%s153 + $0x18] sm:%s145] %v160
                %v162 = vld [vmem:[%s152 + $0x40] sm:%s145]
                %163 = vst [vmem:[%s153 + $0x20] sm:%s145] %v162
                %v164 = vld [vmem:[%s152 + $0x50] sm:%s145]
                %165 = vst [vmem:[%s153 + $0x28] sm:%s145] %v164
                %v166 = vld [vmem:[%s152 + $0x60] sm:%s145]
                %167 = vst [vmem:[%s153 + $0x30] sm:%s145] %v166
                %v168 = vld [vmem:[%s152 + $0x70] sm:%s145]
                %169 = vst [vmem:[%s153 + $0x38] sm:%s145] %v168
                %v170 = vld [vmem:[%s152 + $0x80] sm:%s145]
                %171 = vst [vmem:[%s153 + $0x40] sm:%s145] %v170
              $region45: #{unet_forward.33} parent=39 // loop_footer
                %s151 = sadd.s32 1, %s147
              $region46: #{unet_forward.33} parent=39 // loop_footer_branch
                %146 = sbr.rel target = $region42
              $region47: #{unet_forward.33} parent=39 // loop_exit
                _
            $region40: #{unet_forward.33} parent=31 // pred_fallthru
              _
          $region32: #{unet_forward.33} parent=27 // pred_fallthru
            _
          %202 = vnop
        $region28: #{unet_forward.33} parent=23 // pred_fallthru
          _
      $region24: #{unet_forward.33} parent=5 // pred_fallthru
        _
      %p203 = scmp.le.s32.totalorder 1, %s9
      %p204 = scmp.lt.s32.totalorder %s9, 3
      %p205 = pnand %p203, %p204
      %p206 = pneg %p205
      // Predicated region
      $region63: #{unet_forward.33} parent=5 // pred_check
        _
      $region64: #{unet_forward.33} parent=5 // pred_check_branch
        %208 = sbr.rel (%p205) target = $region66
      $region65: #{unet_forward.33} parent=5 // pred_region
        %s209 = ssub.s32 %s9, 1
        %s210 = sand.u32 %s43, 1
        %s211 = sand.u32 %s43, 1
        %s212 = smul.addr %s211, 72
        %s213 = scalar_lea.vmem [#allocation2], %s212
        // Predicated region
        $region67: #{unet_forward.33} parent=65 // pred_check
          %p214 = pneg %p56
        $region68: #{unet_forward.33} parent=65 // pred_check_branch
          %216 = sbr.rel (%p214) target = $region70
        $region69: #{unet_forward.33} parent=65 // pred_region
          _
        $region70: #{unet_forward.33} parent=65 // pred_fallthru
          _
        %p217 = pneg %p30
        %p218 = pneg %p27
        %s219 = sand.u32 %s43, 1
        %s220 = sand.u32 %s43, 1
        %s221 = smul.addr %s220, 72
        %s222 = scalar_lea.vmem [#allocation2], %s221
        %p223 = pneg %p56
        %p224 = pneg %p53
        %p225 = pneg %p77
        %p226 = pneg %p74
        %p227 = pneg %p103
        %p228 = pneg %p100
        %s229 = smul.u32 2, %s14
        %p230 = scmp.lt.s32.totalorder %s229, 3
        %s231 = scalar_select %p230, %s229, 3
        %s232 = smul.addr %s231, 4
        %s233 = scalar_lea.vmem %s3, %s232
        %s234 = smul.u32 2, %s14
        %s235 = smul.u32 2, %s14
        %p236 = scmp.lt.s32.totalorder %s235, 3
        %s237 = scalar_select %p236, %s235, 3
        %s238 = smul.addr %s237, 4
        %s239 = scalar_lea.vmem %s3, %s238
        %s240 = smul.u32 2, %s14
        %v242 = vld [vmem:[%s0] sm:$0x3]
        %v243 = vld [vmem:[%s213] sm:$0xff]
        %v244 = vld [vmem:[%s213 + $0x8] sm:$0xff]
        %v245 = vld [vmem:[%s213 + $0x10] sm:$0xff]
        %v246 = vld [vmem:[%s213 + $0x18] sm:$0xff]
        %v247 = vld [vmem:[%s213 + $0x20] sm:$0xff]
        %v248 = vld [vmem:[%s213 + $0x28] sm:$0xff]
        %v249 = vld [vmem:[%s213 + $0x30] sm:$0xff]
        %v250 = vld [vmem:[%s213 + $0x38] sm:$0xff]
        %v251 = vld [vmem:[%s213 + $0x40] sm:$0xff]
        %v252 = vld [vmem:[%s2] sm:$0xf]
        %254 = vset.pattern.permute.xlu0 0
        %255 = vperm.xlu0 %254, %v252
        %v256 = vpop.permute.xlu0 %255
        %v267 = vunpack.c.l.b16 %v243
        %v268 = vunpack.c.h.b16 %v243
        %v269 = vunpack.c.l.b16 %v244
        %v270 = vunpack.c.h.b16 %v244
        %v271 = vunpack.c.l.b16 %v245
        %v272 = vunpack.c.h.b16 %v245
        %v273 = vunpack.c.l.b16 %v246
        %v274 = vunpack.c.h.b16 %v246
        %v275 = vunpack.c.l.b16 %v247
        %v276 = vunpack.c.h.b16 %v247
        %v277 = vunpack.c.l.b16 %v248
        %v278 = vunpack.c.h.b16 %v248
        %v279 = vunpack.c.l.b16 %v249
        %v280 = vunpack.c.h.b16 %v249
        %v281 = vunpack.c.l.b16 %v250
        %v282 = vunpack.c.h.b16 %v250
        %v283 = vunpack.c.l.b16 %v251
        %v284 = vunpack.c.h.b16 %v251
        %v285 = vpack.c.b16 %v269, %v267
        %v286 = vpack.c.b16 %v270, %v268
        %v287 = vpack.c.b16 %v273, %v271
        %v288 = vpack.c.b16 %v274, %v272
        %v289 = vpack.c.b16 %v277, %v275
        %v290 = vpack.c.b16 %v278, %v276
        %v291 = vpack.c.b16 %v281, %v279
        %v292 = vpack.c.b16 %v282, %v280
        %v293 = vpack.c.b16 %v283, %v283
        %v294 = vpack.c.b16 %v284, %v284
        %vm303 = vcmask 588800
        %v305 = vsel %vm303, %v242, 0
        %vm307 = vcmask 1043456
        %v309 = vsel %vm307, %v293, 0
        %v312 = vsel %vm307, %v294, 0
        %314 = vmatpush.bf16.msra.mxu0 0
        %315 = vmatpush.bf16.msra.mxu0 0
        %316 = vmatpush.bf16.msra.mxu0 0
        %317 = vmatpush.bf16.msra.mxu0 %v309
        %318 = vmatpush.bf16.msra.mxu0 %v291
        %319 = vmatpush.bf16.msra.mxu0 %v289
        %320 = vmatpush.bf16.msra.mxu0 %v287
        %321 = vmatpush.bf16.msra.mxu0 %v285
        %322 = vmatmul.bf16.gmra.mxu0 %v305
        %v323 = vpop.f32.mrf.mxu0
        %v324 = vadd.f32 %v256, %v323
        %v325 = vpop.f32.mrf.mxu0
        %326 = vdwg.mxu0
        %327 = vmatpush.bf16.msra.mxu0 0
        %328 = vmatpush.bf16.msra.mxu0 0
        %329 = vmatpush.bf16.msra.mxu0 0
        %330 = vmatpush.bf16.msra.mxu0 %v312
        %331 = vmatpush.bf16.msra.mxu0 %v292
        %332 = vmatpush.bf16.msra.mxu0 %v290
        %333 = vmatpush.bf16.msra.mxu0 %v288
        %334 = vmatpush.bf16.msra.mxu0 %v286
        %335 = vmatmul.bf16.gmra.mxu0 %v305
        %v336 = vpop.f32.mrf.mxu0
        %v337 = vadd.f32 %v256, %v336
        %v338 = vpop.f32.mrf.mxu0
        %339 = vdwg.mxu0
        %v340 = vtanh.pop %v324
        %v341 = vtanh.pop %v337
        %v344 = vrot.slane %v341, 4
        %v345 = vsel %vm307, %v340, %v344
        %347 = vst [vmem:[%s239] sm:$0xff] %v345
        %s348 = smul.u32 2, %s14
        %p349 = scmp.lt.s32.totalorder %s348, 3
        %s350 = scalar_select %p349, %s348, 3
        %s351 = smul.addr %s350, 4
        %s352 = scalar_lea.vmem %s3, %s351
        // Predicated region
        $region71: #{unet_forward.33} parent=65 // pred_check
          %p353 = pneg %p100
        $region72: #{unet_forward.33} parent=65 // pred_check_branch
          %355 = sbr.rel (%p353) target = $region74
        $region73: #{unet_forward.33} parent=65 // pred_region
          %s356 = smul.u32 2, %s14
        $region74: #{unet_forward.33} parent=65 // pred_fallthru
          _
      $region66: #{unet_forward.33} parent=5 // pred_fallthru
        _
      %p357 = scmp.le.s32.totalorder 2, %s9
      // Predicated region
      $region75: #{unet_forward.33} parent=5 // pred_check
        %p358 = pneg %p357
      $region76: #{unet_forward.33} parent=5 // pred_check_branch
        %360 = sbr.rel (%p358) target = $region78
      $region77: #{unet_forward.33} parent=5 // pred_region
        %s361 = ssub.s32 %s9, 2
        // Predicated region
        $region79: #{unet_forward.33} parent=77 // pred_check
          %p362 = pneg %p106
        $region80: #{unet_forward.33} parent=77 // pred_check_branch
          %364 = sbr.rel (%p362) target = $region82
        $region81: #{unet_forward.33} parent=77 // pred_region
          %s365 = smul.u32 2, %s15
          %p366 = scmp.lt.s32.totalorder %s365, 3
          %s367 = scalar_select %p366, %s365, 3
          %s368 = smul.addr %s367, 4
          %s369 = scalar_lea.vmem %s3, %s368
        $region82: #{unet_forward.33} parent=77 // pred_fallthru
          _
      $region78: #{unet_forward.33} parent=5 // pred_fallthru
        _
    $region6: #{unet_forward.33} parent=1 // loop_footer
      %s13 = sadd.s32 1, %s9
    $region7: #{unet_forward.33} parent=1 // loop_footer_branch
      %8 = sbr.rel target = $region3
    $region8: #{unet_forward.33} parent=1 // loop_exit
      _

// kernel: unet_forward.32
$region0: #{unet_forward.32}
  #allocation0 [shape = 'u32[]', space=smem, size = 0x4, offset = 0x4, fixed_abs, tag = 'smem constant byte address 0x4 - core index']
  #allocation1 [shape = 'u32[72,128]{1,0:T(1,128)}', space=vmem, size = 0x9000, scoped, tag = 'internal scratch']
  %s0 = inlined_call_operand.vmem [shape: bf16[144,512], index: 0, kind: input, shape index: {}]
  %s1 = inlined_call_operand.vmem [shape: bf16[8,144], index: 1, kind: input, shape index: {}]
  %s2 = inlined_call_operand.vmem [shape: f32[8,1], index: 2, kind: input, shape index: {}]
  %s3 = inlined_call_operand.vmem [shape: f32[8,1], index: 3, kind: input, shape index: {}]
  %s4 = inlined_call_operand.vmem [shape: f32[8,512], index: 4, kind: output, shape index: {}]
  %s5 = sld [smem:[#allocation0]]
  $region26: #{unet_forward.32} parent=0
    _
  %s7 = ssub.s32 1, %s5
  %s8 = scalar_select 0, %s7, %s5
  // Predicated region
  $region2: #{unet_forward.32} parent=0 // pred_check
    _
  $region3: #{unet_forward.32} parent=0 // pred_check_branch
    %10 = sbr.rel (0) target = $region5
  $region4: #{unet_forward.32} parent=0 // pred_region
    _
  $region5: #{unet_forward.32} parent=0 // pred_fallthru
    _
  // Predicated region
  $region6: #{unet_forward.32} parent=0 // pred_check
    _
  $region7: #{unet_forward.32} parent=0 // pred_check_branch
    %12 = sbr.rel (0) target = $region9
  $region8: #{unet_forward.32} parent=0 // pred_region
    _
  $region9: #{unet_forward.32} parent=0 // pred_fallthru
    _
  // Predicated region
  $region10: #{unet_forward.32} parent=0 // pred_check
    _
  $region11: #{unet_forward.32} parent=0 // pred_check_branch
    %14 = sbr.rel (0) target = $region13
  $region12: #{unet_forward.32} parent=0 // pred_region
    _
  $region13: #{unet_forward.32} parent=0 // pred_fallthru
    _
  // Predicated region
  $region14: #{unet_forward.32} parent=0 // pred_check
    _
  $region15: #{unet_forward.32} parent=0 // pred_check_branch
    %16 = sbr.rel (0) target = $region17
  $region16: #{unet_forward.32} parent=0 // pred_region
    _
  $region17: #{unet_forward.32} parent=0 // pred_fallthru
    _
  %v18 = vld [vmem:[%s1] sm:$0xff]
  %v19 = vld [vmem:[%s0] sm:$0xff]
  %v20 = vld [vmem:[%s0 + $0x8] sm:$0xff]
  %v21 = vld [vmem:[%s0 + $0x10] sm:$0xff]
  %v22 = vld [vmem:[%s0 + $0x18] sm:$0xff]
  %v23 = vld [vmem:[%s0 + $0x20] sm:$0xff]
  %v24 = vld [vmem:[%s0 + $0x28] sm:$0xff]
  %v25 = vld [vmem:[%s0 + $0x30] sm:$0xff]
  %v26 = vld [vmem:[%s0 + $0x38] sm:$0xff]
  %v27 = vld [vmem:[%s0 + $0x40] sm:$0xff]
  %v28 = vld [vmem:[%s0 + $0x48] sm:$0xff]
  %v29 = vld [vmem:[%s0 + $0x50] sm:$0xff]
  %v30 = vld [vmem:[%s0 + $0x58] sm:$0xff]
  %v31 = vld [vmem:[%s0 + $0x60] sm:$0xff]
  %v32 = vld [vmem:[%s0 + $0x68] sm:$0xff]
  %v33 = vld [vmem:[%s0 + $0x70] sm:$0xff]
  %v34 = vld [vmem:[%s0 + $0x78] sm:$0xff]
  %v35 = vld [vmem:[%s0 + $0x80] sm:$0xff]
  %v36 = vld [vmem:[%s0 + $0x88] sm:$0xff]
  %v37 = vld [vmem:[%s0 + $0x90] sm:$0xff]
  %v38 = vld [vmem:[%s0 + $0x98] sm:$0xff]
  %v39 = vld [vmem:[%s0 + $0xa0] sm:$0xff]
  %v40 = vld [vmem:[%s0 + $0xa8] sm:$0xff]
  %v41 = vld [vmem:[%s0 + $0xb0] sm:$0xff]
  %v42 = vld [vmem:[%s0 + $0xb8] sm:$0xff]
  %v43 = vld [vmem:[%s0 + $0xc0] sm:$0xff]
  %v44 = vld [vmem:[%s0 + $0xc8] sm:$0xff]
  %v45 = vld [vmem:[%s0 + $0xd0] sm:$0xff]
  %v46 = vld [vmem:[%s0 + $0xd8] sm:$0xff]
  %v47 = vld [vmem:[%s0 + $0xe0] sm:$0xff]
  %v48 = vld [vmem:[%s0 + $0xe8] sm:$0xff]
  %v49 = vld [vmem:[%s0 + $0xf0] sm:$0xff]
  %v50 = vld [vmem:[%s0 + $0xf8] sm:$0xff]
  %v51 = vld [vmem:[%s0 + $0x100] sm:$0xff]
  %v52 = vld [vmem:[%s0 + $0x108] sm:$0xff]
  %v53 = vld [vmem:[%s0 + $0x110] sm:$0xff]
  %v54 = vld [vmem:[%s0 + $0x118] sm:$0xff]
  %v56 = vunpack.c.l.b16 %v18
  %v57 = vunpack.c.h.b16 %v18
  %v58 = vpack.c.b16 %v56, %v56
  %v59 = vpack.c.b16 %v57, %v57
  %v97 = vunpack.c.l.b16 %v19
  %v98 = vunpack.c.h.b16 %v19
  %v99 = vunpack.c.l.b16 %v20
  %v100 = vunpack.c.h.b16 %v20
  %v101 = vunpack.c.l.b16 %v21
  %v102 = vunpack.c.h.b16 %v21
  %v103 = vunpack.c.l.b16 %v22
  %v104 = vunpack.c.h.b16 %v22
  %v105 = vunpack.c.l.b16 %v23
  %v106 = vunpack.c.h.b16 %v23
  %v107 = vunpack.c.l.b16 %v24
  %v108 = vunpack.c.h.b16 %v24
  %v109 = vunpack.c.l.b16 %v25
  %v110 = vunpack.c.h.b16 %v25
  %v111 = vunpack.c.l.b16 %v26
  %v112 = vunpack.c.h.b16 %v26
  %v113 = vunpack.c.l.b16 %v27
  %v114 = vunpack.c.h.b16 %v27
  %v115 = vunpack.c.l.b16 %v28
  %v116 = vunpack.c.h.b16 %v28
  %v117 = vunpack.c.l.b16 %v29
  %v118 = vunpack.c.h.b16 %v29
  %v119 = vunpack.c.l.b16 %v30
  %v120 = vunpack.c.h.b16 %v30
  %v121 = vunpack.c.l.b16 %v31
  %v122 = vunpack.c.h.b16 %v31
  %v123 = vunpack.c.l.b16 %v32
  %v124 = vunpack.c.h.b16 %v32
  %v125 = vunpack.c.l.b16 %v33
  %v126 = vunpack.c.h.b16 %v33
  %v127 = vunpack.c.l.b16 %v34
  %v128 = vunpack.c.h.b16 %v34
  %v129 = vunpack.c.l.b16 %v35
  %v130 = vunpack.c.h.b16 %v35
  %v131 = vunpack.c.l.b16 %v36
  %v132 = vunpack.c.h.b16 %v36
  %v133 = vunpack.c.l.b16 %v37
  %v134 = vunpack.c.h.b16 %v37
  %v135 = vunpack.c.l.b16 %v38
  %v136 = vunpack.c.h.b16 %v38
  %v137 = vunpack.c.l.b16 %v39
  %v138 = vunpack.c.h.b16 %v39
  %v139 = vunpack.c.l.b16 %v40
  %v140 = vunpack.c.h.b16 %v40
  %v141 = vunpack.c.l.b16 %v41
  %v142 = vunpack.c.h.b16 %v41
  %v143 = vunpack.c.l.b16 %v42
  %v144 = vunpack.c.h.b16 %v42
  %v145 = vunpack.c.l.b16 %v43
  %v146 = vunpack.c.h.b16 %v43
  %v147 = vunpack.c.l.b16 %v44
  %v148 = vunpack.c.h.b16 %v44
  %v149 = vunpack.c.l.b16 %v45
  %v150 = vunpack.c.h.b16 %v45
  %v151 = vunpack.c.l.b16 %v46
  %v152 = vunpack.c.h.b16 %v46
  %v153 = vunpack.c.l.b16 %v47
  %v154 = vunpack.c.h.b16 %v47
  %v155 = vunpack.c.l.b16 %v48
  %v156 = vunpack.c.h.b16 %v48
  %v157 = vunpack.c.l.b16 %v49
  %v158 = vunpack.c.h.b16 %v49
  %v159 = vunpack.c.l.b16 %v50
  %v160 = vunpack.c.h.b16 %v50
  %v161 = vunpack.c.l.b16 %v51
  %v162 = vunpack.c.h.b16 %v51
  %v163 = vunpack.c.l.b16 %v52
  %v164 = vunpack.c.h.b16 %v52
  %v165 = vunpack.c.l.b16 %v53
  %v166 = vunpack.c.h.b16 %v53
  %v167 = vunpack.c.l.b16 %v54
  %v168 = vunpack.c.h.b16 %v54
  %v169 = vpack.c.b16 %v101, %v97
  %v170 = vpack.c.b16 %v102, %v98
  %v171 = vpack.c.b16 %v103, %v99
  %v172 = vpack.c.b16 %v104, %v100
  %v173 = vpack.c.b16 %v109, %v105
  %v174 = vpack.c.b16 %v110, %v106
  %v175 = vpack.c.b16 %v111, %v107
  %v176 = vpack.c.b16 %v112, %v108
  %v177 = vpack.c.b16 %v117, %v113
  %v178 = vpack.c.b16 %v118, %v114
  %v179 = vpack.c.b16 %v119, %v115
  %v180 = vpack.c.b16 %v120, %v116
  %v181 = vpack.c.b16 %v125, %v121
  %v182 = vpack.c.b16 %v126, %v122
  %v183 = vpack.c.b16 %v127, %v123
  %v184 = vpack.c.b16 %v128, %v124
  %v185 = vpack.c.b16 %v133, %v129
  %v186 = vpack.c.b16 %v134, %v130
  %v187 = vpack.c.b16 %v135, %v131
  %v188 = vpack.c.b16 %v136, %v132
  %v189 = vpack.c.b16 %v141, %v137
  %v190 = vpack.c.b16 %v142, %v138
  %v191 = vpack.c.b16 %v143, %v139
  %v192 = vpack.c.b16 %v144, %v140
  %v193 = vpack.c.b16 %v149, %v145
  %v194 = vpack.c.b16 %v150, %v146
  %v195 = vpack.c.b16 %v151, %v147
  %v196 = vpack.c.b16 %v152, %v148
  %v197 = vpack.c.b16 %v157, %v153
  %v198 = vpack.c.b16 %v158, %v154
  %v199 = vpack.c.b16 %v159, %v155
  %v200 = vpack.c.b16 %v160, %v156
  %v201 = vpack.c.b16 %v165, %v161
  %v202 = vpack.c.b16 %v166, %v162
  %v203 = vpack.c.b16 %v167, %v163
  %v204 = vpack.c.b16 %v168, %v164
  %vm241 = vcmask 130048
  %v243 = vsel %vm241, %v59, 0
  %245 = vmatpush.bf16.msra.mxu0 %v197
  %246 = vmatpush.bf16.msra.mxu0 %v193
  %247 = vmatpush.bf16.msra.mxu0 %v189
  %248 = vmatpush.bf16.msra.mxu0 %v185
  %249 = vmatpush.bf16.msra.mxu0 %v181
  %250 = vmatpush.bf16.msra.mxu0 %v177
  %251 = vmatpush.bf16.msra.mxu0 %v173
  %252 = vmatpush.bf16.msra.mxu0 %v169
  %253 = vmatmul.bf16.gmra.mxu0 %v58
  %v254 = vpop.f32.mrf.mxu0
  %v255 = vadd.f32 0.0, %v254
  %v256 = vpop.f32.mrf.mxu0
  %257 = vdwg.mxu0
  %258 = vmatpush.bf16.msra.mxu0 0
  %259 = vmatpush.bf16.msra.mxu0 0
  %260 = vmatpush.bf16.msra.mxu0 0
  %261 = vmatpush.bf16.msra.mxu0 0
  %262 = vmatpush.bf16.msra.mxu0 0
  %263 = vmatpush.bf16.msra.mxu0 0
  %264 = vmatpush.bf16.msra.mxu0 0
  %265 = vmatpush.bf16.msra.mxu0 %v201
  %266 = vmatmul.bf16.gmra.mxu0 %v243
  %v267 = vpop.f32.mrf.mxu0
  %v268 = vadd.f32 %v255, %v267
  %v269 = vpop.f32.mrf.mxu0
  %270 = vdwg.mxu0
  %271 = vmatpush.bf16.msra.mxu0 %v198
  %272 = vmatpush.bf16.msra.mxu0 %v194
  %273 = vmatpush.bf16.msra.mxu0 %v190
  %274 = vmatpush.bf16.msra.mxu0 %v186
  %275 = vmatpush.bf16.msra.mxu0 %v182
  %276 = vmatpush.bf16.msra.mxu0 %v178
  %277 = vmatpush.bf16.msra.mxu0 %v174
  %278 = vmatpush.bf16.msra.mxu0 %v170
  %279 = vmatmul.bf16.gmra.mxu0 %v58
  %v280 = vpop.f32.mrf.mxu0
  %v281 = vadd.f32 0.0, %v280
  %v282 = vpop.f32.mrf.mxu0
  %283 = vdwg.mxu0
  %284 = vmatpush.bf16.msra.mxu0 0
  %285 = vmatpush.bf16.msra.mxu0 0
  %286 = vmatpush.bf16.msra.mxu0 0
  %287 = vmatpush.bf16.msra.mxu0 0
  %288 = vmatpush.bf16.msra.mxu0 0
  %289 = vmatpush.bf16.msra.mxu0 0
  %290 = vmatpush.bf16.msra.mxu0 0
  %291 = vmatpush.bf16.msra.mxu0 %v202
  %292 = vmatmul.bf16.gmra.mxu0 %v243
  %v293 = vpop.f32.mrf.mxu0
  %v294 = vadd.f32 %v281, %v293
  %v295 = vpop.f32.mrf.mxu0
  %296 = vdwg.mxu0
  %297 = vmatpush.bf16.msra.mxu0 %v199
  %298 = vmatpush.bf16.msra.mxu0 %v195
  %299 = vmatpush.bf16.msra.mxu0 %v191
  %300 = vmatpush.bf16.msra.mxu0 %v187
  %301 = vmatpush.bf16.msra.mxu0 %v183
  %302 = vmatpush.bf16.msra.mxu0 %v179
  %303 = vmatpush.bf16.msra.mxu0 %v175
  %304 = vmatpush.bf16.msra.mxu0 %v171
  %305 = vmatmul.bf16.gmra.mxu0 %v58
  %v306 = vpop.f32.mrf.mxu0
  %v307 = vadd.f32 0.0, %v306
  %v308 = vpop.f32.mrf.mxu0
  %309 = vdwg.mxu0
  %310 = vmatpush.bf16.msra.mxu0 0
  %311 = vmatpush.bf16.msra.mxu0 0
  %312 = vmatpush.bf16.msra.mxu0 0
  %313 = vmatpush.bf16.msra.mxu0 0
  %314 = vmatpush.bf16.msra.mxu0 0
  %315 = vmatpush.bf16.msra.mxu0 0
  %316 = vmatpush.bf16.msra.mxu0 0
  %317 = vmatpush.bf16.msra.mxu0 %v203
  %318 = vmatmul.bf16.gmra.mxu0 %v243
  %v319 = vpop.f32.mrf.mxu0
  %v320 = vadd.f32 %v307, %v319
  %v321 = vpop.f32.mrf.mxu0
  %322 = vdwg.mxu0
  %323 = vmatpush.bf16.msra.mxu0 %v200
  %324 = vmatpush.bf16.msra.mxu0 %v196
  %325 = vmatpush.bf16.msra.mxu0 %v192
  %326 = vmatpush.bf16.msra.mxu0 %v188
  %327 = vmatpush.bf16.msra.mxu0 %v184
  %328 = vmatpush.bf16.msra.mxu0 %v180
  %329 = vmatpush.bf16.msra.mxu0 %v176
  %330 = vmatpush.bf16.msra.mxu0 %v172
  %331 = vmatmul.bf16.gmra.mxu0 %v58
  %v332 = vpop.f32.mrf.mxu0
  %v333 = vadd.f32 0.0, %v332
  %v334 = vpop.f32.mrf.mxu0
  %335 = vdwg.mxu0
  %336 = vmatpush.bf16.msra.mxu0 0
  %337 = vmatpush.bf16.msra.mxu0 0
  %338 = vmatpush.bf16.msra.mxu0 0
  %339 = vmatpush.bf16.msra.mxu0 0
  %340 = vmatpush.bf16.msra.mxu0 0
  %341 = vmatpush.bf16.msra.mxu0 0
  %342 = vmatpush.bf16.msra.mxu0 0
  %343 = vmatpush.bf16.msra.mxu0 %v204
  %344 = vmatmul.bf16.gmra.mxu0 %v243
  %v345 = vpop.f32.mrf.mxu0
  %v346 = vadd.f32 %v333, %v345
  %v347 = vpop.f32.mrf.mxu0
  %348 = vdwg.mxu0
  %v349 = vadd.f32 %v268, %v294
  %v350 = vadd.f32 %v349, %v320
  %v351 = vadd.f32 %v350, %v346
  %352 = vadd.xlane.f32.xlu0 %v351
  %v353 = vpop.xlane.xlu0 %352
  %v354 = vmul.f32 %v353, 0.001953125
  %v355 = vmul.f32 %v268, %v268
  %v356 = vmul.f32 %v294, %v294
  %v357 = vmul.f32 %v320, %v320
  %v358 = vmul.f32 %v346, %v346
  %v359 = vadd.f32 %v355, %v356
  %v360 = vadd.f32 %v359, %v357
  %v361 = vadd.f32 %v360, %v358
  %362 = vadd.xlane.f32.xlu0 %v361
  %v363 = vpop.xlane.xlu0 %362
  %v364 = vmul.f32 %v363, 0.001953125
  %v365 = vmul.f32 %v354, %v354
  %v366 = vsub.f32 %v364, %v365
  %v367 = vmax.f32 %v366, 0.0
  %v368 = vld [vmem:[%s2] sm:$0xff]
  %v369 = vadd.f32 %v367, 1e-05
  %v370 = vrsqrt.pop %v369
  %v371 = vmul.f32 %v370, %v369
  %v372 = vmul.f32 %v371, %v370
  %v373 = vmul.f32 0.5, %v372
  %v374 = vsub.f32 1.5, %v373
  %v375 = vmul.f32 %v370, %v374
  %vm376 = vweird.f32 %v369
  %vm377 = vweird.f32 %v370
  %vm378 = vmor %vm376, %vm377
  %v379 = vsel %vm378, %v370, %v375
  %v380 = vmul.f32 %v368, %v379
  %v381 = vld [vmem:[%s3] sm:$0xff]
  %v382 = vmul.f32 %v354, %v380
  %v383 = vsub.f32 %v381, %v382
  %385 = vset.pattern.permute.xlu0 0
  %386 = vperm.xlu0 %385, %v380
  %v387 = vpop.permute.xlu0 %386
  %v389 = vmul.f32 %v268, %v387
  %v390 = vmul.f32 %v294, %v387
  %v391 = vmul.f32 %v320, %v387
  %v392 = vmul.f32 %v346, %v387
  %394 = vset.pattern.permute.xlu0 0
  %395 = vperm.xlu0 %394, %v383
  %v396 = vpop.permute.xlu0 %395
  %v398 = vadd.f32 %v389, %v396
  %v399 = vadd.f32 %v390, %v396
  %v400 = vadd.f32 %v391, %v396
  %v401 = vadd.f32 %v392, %v396
  %vm402 = vcmp.ge.f32.partialorder %v398, 0.0
  %vm403 = vcmp.ge.f32.partialorder %v399, 0.0
  %vm404 = vcmp.ge.f32.partialorder %v400, 0.0
  %vm405 = vcmp.ge.f32.partialorder %v401, 0.0
  %v406 = vmul.f32 %v398, 0.01
  %v407 = vmul.f32 %v399, 0.01
  %v408 = vmul.f32 %v400, 0.01
  %v409 = vmul.f32 %v401, 0.01
  %v410 = vsel %vm402, %v398, %v406
  %v411 = vsel %vm403, %v399, %v407
  %v412 = vsel %vm404, %v400, %v408
  %v413 = vsel %vm405, %v401, %v409
  %414 = vst [vmem:[%s4] sm:$0xff] %v410
  %415 = vst [vmem:[%s4 + $0x8] sm:$0xff] %v411
  %416 = vst [vmem:[%s4 + $0x10] sm:$0xff] %v412
  %417 = vst [vmem:[%s4 + $0x18] sm:$0xff] %v413
  // Predicated region
  $region18: #{unet_forward.32} parent=0 // pred_check
    _
  $region19: #{unet_forward.32} parent=0 // pred_check_branch
    %419 = sbr.rel (0) target = $region21
  $region20: #{unet_forward.32} parent=0 // pred_region
    _
  $region21: #{unet_forward.32} parent=0 // pred_fallthru
    _
  // Predicated region
  $region22: #{unet_forward.32} parent=0 // pred_check
    _
  $region23: #{unet_forward.32} parent=0 // pred_check_branch
    %421 = sbr.rel (0) target = $region25
  $region24: #{unet_forward.32} parent=0 // pred_region
    _
  $region25: #{unet_forward.32} parent=0 // pred_fallthru
    _

</llo_original>
